<compile_context>
chip_gen: v6e
topology: v6e:2x2x1
jax: 0.10.0
libtpu: 0.0.40
codegen_flags: <defaults>
</compile_context>

<pallas_src>
import functools

import jax
import jax.numpy as jnp
from jax.experimental import pallas as pl
from jax.experimental.pallas import tpu as pltpu

BN_EPS = 1e-5

# --------------------------------------------------------------------------------------
# Elementwise helpers (VPU/EUP only)
# --------------------------------------------------------------------------------------

_A1, _A2, _A3, _A4, _A5 = 0.254829592, -0.284496736, 1.421413741, -1.453152027, 1.061405429
_PERF = 0.3275911
_INV_SQRT2 = 0.7071067811865476


def _erf_approx(x):
    # Abramowitz & Stegun 7.1.26 (float32-accurate); only abs/where/exp/div.
    ax = jnp.abs(x)
    t = 1.0 / (1.0 + _PERF * ax)
    poly = ((((_A5 * t + _A4) * t + _A3) * t + _A2) * t + _A1) * t
    y = 1.0 - poly * jnp.exp(-ax * ax)
    return jnp.where(x < 0.0, -y, y)


def _gelu(x):
    # Exact (erf-form) GELU as used by nn.GELU().
    return 0.5 * x * (1.0 + _erf_approx(x * _INV_SQRT2))


# --------------------------------------------------------------------------------------
# In-kernel building blocks
# --------------------------------------------------------------------------------------

def _mm(x, w_ref):
    # MXU matmul: bf16 operands, f32 accumulation.
    return jnp.dot(x.astype(jnp.bfloat16), w_ref[...], preferred_element_type=jnp.float32)


def _im2col_windows(src_ref, h, w):
    # 4 contiguous (h, w, L) windows at offsets {0,1}^2 of an (h+1, w+1, L) VMEM ref,
    # flattened and concatenated along lanes -> (h*w, 4L).
    L = src_ref.shape[-1]
    cols = []
    for di in range(2):
        for dj in range(2):
            cols.append(src_ref[di:di + h, dj:dj + w, :].reshape(h * w, L))
    return jnp.concatenate(cols, axis=-1)


def _im2col_strided(src_ref, ho, wo, k, s):
    # k*k stride-s windows from a padded VMEM scratch -> (ho*wo, k*k*L).
    L = src_ref.shape[-1]
    cols = []
    for ki in range(k):
        for kj in range(k):
            win = src_ref[pl.ds(ki, ho, stride=s), pl.ds(kj, wo, stride=s), :]
            cols.append(win.reshape(ho * wo, L))
    return jnp.concatenate(cols, axis=-1)


def _pixel_shuffle_store(dst_ref, z, h, w, c):
    # z: (h*w, 4c) phase-stacked (lane index = (a*2+b)*c + ch) -> fine pixel (2i+a, 2j+b).
    # dst_ref: zeroed (2h+1, 2w+1, c) scratch (the +1 halo feeds the next transposed conv).
    # Static per-pixel slice stores keep the interleave off the lane<->sublane relayout path.
    for i in range(h):
        for j in range(w):
            r = i * w + j
            for a in range(2):
                for b in range(2):
                    lo = (a * 2 + b) * c
                    val = z[r:r + 1, lo:lo + c].reshape(1, 1, c)
                    dst_ref[2 * i + a:2 * i + a + 1, 2 * j + b:2 * j + b + 1, :] = val


# --------------------------------------------------------------------------------------
# The single fused kernel (one image per grid step; everything stays in VMEM)
# --------------------------------------------------------------------------------------

def _fused_attention_kernel(
        x_ref,                                             # (H/2+1, W/2+1, 4C) space-to-depth input
        w1_ref, b1_ref, w2_ref, b2_ref, w3_ref, b3_ref,     # folded to_qkv blocks
        wa1_ref, sa1_ref, ta1_ref,                           # folded adjust blocks
        wa2_ref, sa2_ref, ta2_ref,
        wa3_ref, sa3_ref, ta3_ref,
        wo_ref, bo_ref,                                      # to_out (block-diagonal over phases)
        o_ref,                                               # (H/2*W/2, 4C) phase-stacked output
        enc1_pad, enc2_pad, attn_sc, dec0_pad, dec1_pad, dec2_pad,
        *, C, heads, scale, H, W):
    H1, W1 = H // 2, W // 2
    H2, W2 = H // 4, W // 4
    H3, W3 = H // 8, W // 8

    # ---- to_qkv block 1 (HxW -> H1xW1): space-to-depth im2col, one K=16C matmul + GELU ----
    cols = _im2col_windows(x_ref, H1, W1)                          # (H1*W1, 16C)
    y = _gelu(_mm(cols, w1_ref) + b1_ref[...])                     # (H1*W1, C)
    enc1_pad[...] = jnp.zeros(enc1_pad.shape, jnp.float32)
    enc1_pad[1:H1 + 1, 1:W1 + 1, :] = y.reshape(H1, W1, C)

    # ---- to_qkv block 2 (H1xW1 -> H2xW2): stride-2 im2col from VMEM scratch ----
    cols = _im2col_strided(enc1_pad, H2, W2, 3, 2)                 # (H2*W2, 9C)
    y = _gelu(_mm(cols, w2_ref) + b2_ref[...])                     # (H2*W2, C)
    enc2_pad[...] = jnp.zeros(enc2_pad.shape, jnp.float32)
    enc2_pad[1:H2 + 1, 1:W2 + 1, :] = y.reshape(H2, W2, C)

    # ---- to_qkv block 3 (H2xW2 -> H3xW3, 3C channels) ----
    cols = _im2col_strided(enc2_pad, H3, W3, 3, 2)                 # (H3*W3, 9C)
    qkv = _gelu(_mm(cols, w3_ref) + b3_ref[...])                   # (H3*W3, 3C), [q | k | v]

    # ---- attention: per-head, exact softmax; each head writes its slice as it completes ----
    dh = C // heads
    for hd in range(heads):
        q = qkv[:, hd * dh:(hd + 1) * dh]
        k = qkv[:, C + hd * dh:C + (hd + 1) * dh]
        v = qkv[:, 2 * C + hd * dh:2 * C + (hd + 1) * dh]
        dots = jax.lax.dot_general(q, k, (((1,), (1,)), ((), ())),
                                   preferred_element_type=jnp.float32) * scale
        dots = dots - jnp.max(dots, axis=-1, keepdims=True)
        e = jnp.exp(dots)
        p = e / jnp.sum(e, axis=-1, keepdims=True)
        attn_sc[:, hd * dh:(hd + 1) * dh] = jnp.dot(p, v, preferred_element_type=jnp.float32)

    # ---- adjust block 1 (H3xW3 -> H2xW2): phase-stacked transposed conv + BN + GELU ----
    dec0_pad[...] = jnp.zeros(dec0_pad.shape, jnp.float32)
    dec0_pad[0:H3, 0:W3, :] = attn_sc[...].reshape(H3, W3, C)
    cols = _im2col_windows(dec0_pad, H3, W3)                       # (H3*W3, 4C)
    z = _gelu(_mm(cols, wa1_ref) * sa1_ref[...] + ta1_ref[...])    # (H3*W3, 4C)
    dec1_pad[...] = jnp.zeros(dec1_pad.shape, jnp.float32)
    _pixel_shuffle_store(dec1_pad, z, H3, W3, C)

    # ---- adjust block 2 (H2xW2 -> H1xW1) ----
    cols = _im2col_windows(dec1_pad, H2, W2)                       # (H2*W2, 4C)
    z = _gelu(_mm(cols, wa2_ref) * sa2_ref[...] + ta2_ref[...])
    dec2_pad[...] = jnp.zeros(dec2_pad.shape, jnp.float32)
    _pixel_shuffle_store(dec2_pad, z, H2, W2, C)

    # ---- adjust block 3 (H1xW1 -> HxW) + fused to_out 1x1 (block-diagonal over phases) ----
    cols = _im2col_windows(dec2_pad, H1, W1)                       # (H1*W1, 4C)
    z = _gelu(_mm(cols, wa3_ref) * sa3_ref[...] + ta3_ref[...])    # (H1*W1, 4C)
    o_ref[...] = _mm(z, wo_ref) + bo_ref[...]                      # lane-dense (H1*W1, 4C)


def _rep_spec(a):
    nd = a.ndim
    return pl.BlockSpec(a.shape, lambda b, _nd=nd: (0,) * _nd)


def attention_forward(f_nchw, params, *, heads, proj_kernel, proj_stride):
    # TODO(synk): kernel specialised to proj_kernel=3, proj_stride=2 (padding=1), the module's
    # configuration; other k/s would need a different phase/tap decomposition.
    assert proj_kernel == 3 and proj_stride == 2
    x = jnp.transpose(f_nchw, (0, 2, 3, 1)).astype(jnp.float32)    # NCHW -> NHWC (channels on lanes)
    B, H, W, C = x.shape
    assert H % 8 == 0 and W % 8 == 0 and C % heads == 0
    H1, W1 = H // 2, W // 2
    H2, W2 = H // 4, W // 4
    H3, W3 = H // 8, W // 8
    scale = float(C // heads) ** -0.5                              # matches (in_channels//heads)**-0.5

    # Space-to-depth: pack the 2x2 stride phases into lanes (4C = 128 dense lanes) and add one
    # coarse row/col of zeros at the top/left (covers the k=3, p=1 halo) so the in-kernel
    # window reads for to_qkv block 1 are contiguous.
    xs = x.reshape(B, H1, 2, W1, 2, C).transpose(0, 1, 3, 2, 4, 5).reshape(B, H1, W1, 4 * C)
    xs = jnp.pad(xs, ((0, 0), (1, 0), (1, 0), (0, 0)))

    kernel = functools.partial(_fused_attention_kernel, C=C, heads=heads, scale=scale, H=H, W=W)

    in_specs = [pl.BlockSpec((None, H1 + 1, W1 + 1, 4 * C), lambda b: (b, 0, 0, 0))]
    in_specs += [_rep_spec(p) for p in params]

    out = pl.pallas_call(
        kernel,
        out_shape=jax.ShapeDtypeStruct((B, H1 * W1, 4 * C), jnp.float32),
        grid=(B,),
        in_specs=in_specs,
        out_specs=pl.BlockSpec((None, H1 * W1, 4 * C), lambda b: (b, 0, 0)),
        scratch_shapes=[
            pltpu.VMEM((H1 + 2, W1 + 2, C), jnp.float32),   # padded to_qkv block-1 output
            pltpu.VMEM((H2 + 2, W2 + 2, C), jnp.float32),   # padded to_qkv block-2 output
            pltpu.VMEM((H3 * W3, C), jnp.float32),          # attention output (per-head slices)
            pltpu.VMEM((H3 + 1, W3 + 1, C), jnp.float32),   # padded attention fmap (adjust-1 in)
            pltpu.VMEM((H2 + 1, W2 + 1, C), jnp.float32),   # padded adjust-1 fine output
            pltpu.VMEM((H1 + 1, W1 + 1, C), jnp.float32),   # padded adjust-2 fine output
        ],
        compiler_params=pltpu.CompilerParams(
            dimension_semantics=("parallel",),               # B>=2: both v7x TCs get work
            vmem_limit_bytes=32 * 1024 * 1024),
    )(xs, *params)

    # Lane-dense phase-stacked output -> pixel shuffle (layout plumbing in XLA) -> NCHW.
    y = out.reshape(B, H1, W1, 2, 2, C).transpose(0, 1, 3, 2, 4, 5).reshape(B, H, W, C)
    return jnp.transpose(y, (0, 3, 1, 2))


# --------------------------------------------------------------------------------------
# Host-side weight preprocessing: fold BN affines, build im2col / phase-stacked matmul weights.
# --------------------------------------------------------------------------------------

def bn_affine(c):
    # BatchNorm2d in eval mode with default parameters/statistics -> per-channel affine.
    gamma = jnp.ones((c,), jnp.float32)
    beta = jnp.zeros((c,), jnp.float32)
    mean = jnp.zeros((c,), jnp.float32)
    var = jnp.ones((c,), jnp.float32)
    s = gamma / jnp.sqrt(var + BN_EPS)
    return s, beta - mean * s


def fold_dw_block_s2d(dw, pw, s1, b1, s2, b2):
    # DepthwiseConv2d block, space-to-depth im2col layout (stage 1).
    # dw: (C,3,3) depthwise weight; pw: (Cout,C) 1x1 weight; columns ordered (du,dv,a,b,c).
    C, Cout = dw.shape[0], pw.shape[0]
    core = dw * s1[:, None, None]
    Wf = jnp.zeros((2, 2, 2, 2, C, Cout), jnp.float32)
    for du in range(2):
        for a in range(2):
            ki = 2 * du + a - 1
            if not 0 <= ki < 3:
                continue
            for dv in range(2):
                for bb in range(2):
                    kj = 2 * dv + bb - 1
                    if not 0 <= kj < 3:
                        continue
                    Wf = Wf.at[du, dv, a, bb].set(core[:, ki, kj][:, None] * pw.T * s2[None, :])
    w = Wf.reshape(16 * C, Cout).astype(jnp.bfloat16)
    bias = (b1[None, :] @ pw.T) * s2[None, :] + b2[None, :]
    return w, bias


def fold_dw_block_strided(dw, pw, s1, b1, s2, b2):
    # DepthwiseConv2d block, strided im2col layout (stages 2/3); columns ordered (ki,kj,c).
    C, Cout = dw.shape[0], pw.shape[0]
    w = jnp.einsum('ckl,c,oc,o->klco', dw, s1, pw, s2).reshape(9 * C, Cout).astype(jnp.bfloat16)
    bias = (b1[None, :] @ pw.T) * s2[None, :] + b2[None, :]
    return w, bias


def fold_tconv(wt, tb, bn_s, bn_b):
    # TransposedConv2d(k=3, s=2, p=1, output_padding=1) as one phase-stacked matmul.
    # wt: (Cin, Cout, 3, 3); rows ordered (di,dj,cin), cols ordered (a,b,cout);
    # fine output pixel (2i+a, 2j+b) uses input (i+di, j+dj) with tap (kh,kw)=(a+1-2di, b+1-2dj).
    Cin, Cout = wt.shape[0], wt.shape[1]
    Wf = jnp.zeros((2, 2, Cin, 2, 2, Cout), jnp.float32)
    for di in range(2):
        for a in range(2):
            kh = a + 1 - 2 * di
            if not 0 <= kh < 3:
                continue
            for dj in range(2):
                for b in range(2):
                    kw = b + 1 - 2 * dj
                    if not 0 <= kw < 3:
                        continue
                    Wf = Wf.at[di, dj, :, a, b, :].set(wt[:, :, kh, kw])
    w = Wf.reshape(4 * Cin, 4 * Cout).astype(jnp.bfloat16)
    scale = jnp.tile(bn_s, 4)[None, :]                       # per-lane (a,b,cout) affine
    shift = jnp.tile(tb * bn_s + bn_b, 4)[None, :]           # conv bias folded through BN
    return w, scale, shift


def init_params(key, C, heads, dim_head):
    assert heads * dim_head == C, "to_out requires inner_channels == in_channels"
    ks = jax.random.split(key, 14)

    def nrm(k, shape, fan_in):
        return jax.random.normal(k, shape, jnp.float32) / jnp.sqrt(float(fan_in))

    params = []
    # to_qkv: three DepthwiseConv2d blocks (last one outputs 3*C channels).
    for i, cout in enumerate([C, C, 3 * C]):
        dw = nrm(ks[2 * i], (C, 3, 3), 9.0)                  # Conv2d(C,C,3,groups=C,bias=False)
        pw = nrm(ks[2 * i + 1], (cout, C), C)                # Conv2d(C,cout,1,bias=False)
        s1, b1 = bn_affine(C)
        # TODO(synk): reference uses BatchNorm2d(in_channels) after the 1x1 conv even when
        # out_channels == 3*in_channels (shape-inconsistent); with default eval stats it is an
        # identity per-output-channel affine, which is what we fold here.
        s2, b2 = bn_affine(cout)
        fold = fold_dw_block_s2d if i == 0 else fold_dw_block_strided
        w, bias = fold(dw, pw, s1, b1, s2, b2)
        params += [w, bias]

    # adjust: three TransposedConv2d blocks.
    # TODO(synk): the source TransposedConv2d defines no forward() and passes the undefined name
    # `padding` as output_padding; we use forward(x)=net(x) and output_padding = proj_stride - 1,
    # which restores the original spatial resolution.
    for i in range(3):
        wt = nrm(ks[6 + 2 * i], (C, C, 3, 3), 9.0 * C)       # ConvTranspose2d weight (Cin,Cout,kh,kw)
        tb = 0.01 * jax.random.normal(ks[7 + 2 * i], (C,), jnp.float32)
        bs, bb = bn_affine(C)
        w, sc, sh = fold_tconv(wt, tb, bs, bb)
        params += [w, sc, sh]

    # to_out: Conv2d(inner_channels, C, 1) applied per sub-pixel phase -> block-diagonal matmul.
    ow = nrm(ks[12], (C, C), C)                              # [cin, cout]
    ob = 0.01 * jax.random.normal(ks[13], (C,), jnp.float32)
    wo = jnp.kron(jnp.eye(4, dtype=jnp.float32), ow).astype(jnp.bfloat16)
    bo = jnp.tile(ob, 4)[None, :]
    params += [wo, bo]                                       # Dropout in to_out: identity (eval)
    return tuple(params)


# --------------------------------------------------------------------------------------

if __name__ == "__main__":
    B, C, H, W = 2, 32, 16, 16
    heads, dim_head = 4, 8          # heads * dim_head == in_channels so to_out shapes are consistent
    proj_kernel, proj_stride = 3, 2

    key = jax.random.PRNGKey(0)
    kf, kp = jax.random.split(key)
    f = jax.random.normal(kf, (B, C, H, W), jnp.float32)
    params = init_params(kp, C, heads, dim_head)

    fwd = jax.jit(functools.partial(attention_forward, heads=heads,
                                    proj_kernel=proj_kernel, proj_stride=proj_stride))
    out = jax.block_until_ready(fwd(f, params))

    assert out.shape == (B, C, H, W), out.shape
    assert bool(jnp.all(jnp.isfinite(out)))
    print("KERNEL_OK")
</pallas_src>

<mosaic_0001>
module attributes {stable_mosaic.version = 11 : i64} {
  func.func @_fused_attention_kernel(%arg0: i32, %arg1: memref<1x9x9x128xf32, #tpu.memory_space<vmem>>, %arg2: memref<512x32xbf16, #tpu.memory_space<vmem>>, %arg3: memref<1x32xf32, #tpu.memory_space<vmem>>, %arg4: memref<288x32xbf16, #tpu.memory_space<vmem>>, %arg5: memref<1x32xf32, #tpu.memory_space<vmem>>, %arg6: memref<288x96xbf16, #tpu.memory_space<vmem>>, %arg7: memref<1x96xf32, #tpu.memory_space<vmem>>, %arg8: memref<128x128xbf16, #tpu.memory_space<vmem>>, %arg9: memref<1x128xf32, #tpu.memory_space<vmem>>, %arg10: memref<1x128xf32, #tpu.memory_space<vmem>>, %arg11: memref<128x128xbf16, #tpu.memory_space<vmem>>, %arg12: memref<1x128xf32, #tpu.memory_space<vmem>>, %arg13: memref<1x128xf32, #tpu.memory_space<vmem>>, %arg14: memref<128x128xbf16, #tpu.memory_space<vmem>>, %arg15: memref<1x128xf32, #tpu.memory_space<vmem>>, %arg16: memref<1x128xf32, #tpu.memory_space<vmem>>, %arg17: memref<128x128xbf16, #tpu.memory_space<vmem>>, %arg18: memref<1x128xf32, #tpu.memory_space<vmem>>, %arg19: memref<1x64x128xf32, #tpu.memory_space<vmem>>, %arg20: memref<10x10x32xf32, #tpu.memory_space<vmem>>, %arg21: memref<6x6x32xf32, #tpu.memory_space<vmem>>, %arg22: memref<4x32xf32, #tpu.memory_space<vmem>>, %arg23: memref<3x3x32xf32, #tpu.memory_space<vmem>>, %arg24: memref<5x5x32xf32, #tpu.memory_space<vmem>>, %arg25: memref<9x9x32xf32, #tpu.memory_space<vmem>>) attributes {dimension_semantics = [#tpu.dimension_semantics<parallel>], iteration_bounds = array<i64: 2>, scalar_prefetch = 0 : i64, scratch_operands = 6 : i64, tpu.core_type = #tpu.core_type<tc>, window_params = [{transform_indices = @transform_0, window_bounds = array<i64: 1, 9, 9, 128>}, {pipeline_mode = #tpu.pipeline_mode<synchronous>, transform_indices = @transform_1, window_bounds = array<i64: 512, 32>}, {pipeline_mode = #tpu.pipeline_mode<synchronous>, transform_indices = @transform_2, window_bounds = array<i64: 1, 32>}, {pipeline_mode = #tpu.pipeline_mode<synchronous>, transform_indices = @transform_3, window_bounds = array<i64: 288, 32>}, {pipeline_mode = #tpu.pipeline_mode<synchronous>, transform_indices = @transform_4, window_bounds = array<i64: 1, 32>}, {pipeline_mode = #tpu.pipeline_mode<synchronous>, transform_indices = @transform_5, window_bounds = array<i64: 288, 96>}, {pipeline_mode = #tpu.pipeline_mode<synchronous>, transform_indices = @transform_6, window_bounds = array<i64: 1, 96>}, {pipeline_mode = #tpu.pipeline_mode<synchronous>, transform_indices = @transform_7, window_bounds = array<i64: 128, 128>}, {pipeline_mode = #tpu.pipeline_mode<synchronous>, transform_indices = @transform_8, window_bounds = array<i64: 1, 128>}, {pipeline_mode = #tpu.pipeline_mode<synchronous>, transform_indices = @transform_9, window_bounds = array<i64: 1, 128>}, {pipeline_mode = #tpu.pipeline_mode<synchronous>, transform_indices = @transform_10, window_bounds = array<i64: 128, 128>}, {pipeline_mode = #tpu.pipeline_mode<synchronous>, transform_indices = @transform_11, window_bounds = array<i64: 1, 128>}, {pipeline_mode = #tpu.pipeline_mode<synchronous>, transform_indices = @transform_12, window_bounds = array<i64: 1, 128>}, {pipeline_mode = #tpu.pipeline_mode<synchronous>, transform_indices = @transform_13, window_bounds = array<i64: 128, 128>}, {pipeline_mode = #tpu.pipeline_mode<synchronous>, transform_indices = @transform_14, window_bounds = array<i64: 1, 128>}, {pipeline_mode = #tpu.pipeline_mode<synchronous>, transform_indices = @transform_15, window_bounds = array<i64: 1, 128>}, {pipeline_mode = #tpu.pipeline_mode<synchronous>, transform_indices = @transform_16, window_bounds = array<i64: 128, 128>}, {pipeline_mode = #tpu.pipeline_mode<synchronous>, transform_indices = @transform_17, window_bounds = array<i64: 1, 128>}, {transform_indices = @transform_18, window_bounds = array<i64: 1, 64, 128>}]} {
    %c0 = arith.constant 0 : index
    %c0_0 = arith.constant 0 : index
    %c0_1 = arith.constant 0 : index
    %c0_2 = arith.constant 0 : index
    %0 = vector.load %arg1[%c0, %c0_0, %c0_1, %c0_2] : memref<1x9x9x128xf32, #tpu.memory_space<vmem>>, vector<1x8x8x128xf32>
    %1 = vector.shape_cast %0 : vector<1x8x8x128xf32> to vector<8x8x128xf32>
    %2 = vector.shape_cast %1 : vector<8x8x128xf32> to vector<64x128xf32>
    %c0_3 = arith.constant 0 : index
    %c0_4 = arith.constant 0 : index
    %c1 = arith.constant 1 : index
    %c0_5 = arith.constant 0 : index
    %3 = vector.load %arg1[%c0_3, %c0_4, %c1, %c0_5] : memref<1x9x9x128xf32, #tpu.memory_space<vmem>>, vector<1x8x8x128xf32>
    %4 = vector.shape_cast %3 : vector<1x8x8x128xf32> to vector<8x8x128xf32>
    %5 = vector.shape_cast %4 : vector<8x8x128xf32> to vector<64x128xf32>
    %c0_6 = arith.constant 0 : index
    %c1_7 = arith.constant 1 : index
    %c0_8 = arith.constant 0 : index
    %c0_9 = arith.constant 0 : index
    %6 = vector.load %arg1[%c0_6, %c1_7, %c0_8, %c0_9] : memref<1x9x9x128xf32, #tpu.memory_space<vmem>>, vector<1x8x8x128xf32>
    %7 = vector.shape_cast %6 : vector<1x8x8x128xf32> to vector<8x8x128xf32>
    %8 = vector.shape_cast %7 : vector<8x8x128xf32> to vector<64x128xf32>
    %c0_10 = arith.constant 0 : index
    %c1_11 = arith.constant 1 : index
    %c1_12 = arith.constant 1 : index
    %c0_13 = arith.constant 0 : index
    %9 = vector.load %arg1[%c0_10, %c1_11, %c1_12, %c0_13] : memref<1x9x9x128xf32, #tpu.memory_space<vmem>>, vector<1x8x8x128xf32>
    %10 = vector.shape_cast %9 : vector<1x8x8x128xf32> to vector<8x8x128xf32>
    %11 = vector.shape_cast %10 : vector<8x8x128xf32> to vector<64x128xf32>
    %12 = tpu.concatenate %2, %5, %8, %11 in 1 : vector<64x128xf32>, vector<64x128xf32>, vector<64x128xf32>, vector<64x128xf32> -> vector<64x512xf32>
    %13 = arith.truncf %12 : vector<64x512xf32> to vector<64x512xbf16>
    %c0_14 = arith.constant 0 : index
    %c0_15 = arith.constant 0 : index
    %14 = vector.load %arg2[%c0_14, %c0_15] : memref<512x32xbf16, #tpu.memory_space<vmem>>, vector<512x32xbf16>
    %cst = arith.constant dense<0.000000e+00> : vector<64x32xf32>
    %15 = tpu.matmul %13, %14, %cst {dimension_numbers = #tpu.dot_dimension_numbers<[1], [0], [0], [1], [0, 0, 1, 1], [], []>} : vector<64x512xbf16>, vector<512x32xbf16>, vector<64x32xf32> -> vector<64x32xf32>
    %c0_16 = arith.constant 0 : index
    %c0_17 = arith.constant 0 : index
    %16 = vector.load %arg3[%c0_16, %c0_17] : memref<1x32xf32, #tpu.memory_space<vmem>>, vector<1x32xf32>
    %17 = vector.broadcast %16 : vector<1x32xf32> to vector<64x32xf32>
    %18 = arith.addf %15, %17 : vector<64x32xf32>
    %cst_18 = arith.constant 5.000000e-01 : f32
    %19 = vector.broadcast %cst_18 : f32 to vector<64x32xf32>
    %20 = arith.mulf %19, %18 : vector<64x32xf32>
    %cst_19 = arith.constant 0.707106769 : f32
    %21 = vector.broadcast %cst_19 : f32 to vector<64x32xf32>
    %22 = arith.mulf %18, %21 : vector<64x32xf32>
    %23 = math.absf %22 : vector<64x32xf32>
    %cst_20 = arith.constant 0.327591091 : f32
    %24 = vector.broadcast %cst_20 : f32 to vector<64x32xf32>
    %25 = arith.mulf %24, %23 : vector<64x32xf32>
    %cst_21 = arith.constant 1.000000e+00 : f32
    %26 = vector.broadcast %cst_21 : f32 to vector<64x32xf32>
    %27 = arith.addf %26, %25 : vector<64x32xf32>
    %cst_22 = arith.constant 1.000000e+00 : f32
    %28 = vector.broadcast %cst_22 : f32 to vector<64x32xf32>
    %29 = arith.divf %28, %27 : vector<64x32xf32>
    %cst_23 = arith.constant 1.06140542 : f32
    %30 = vector.broadcast %cst_23 : f32 to vector<64x32xf32>
    %31 = arith.mulf %30, %29 : vector<64x32xf32>
    %cst_24 = arith.constant -1.45315206 : f32
    %32 = vector.broadcast %cst_24 : f32 to vector<64x32xf32>
    %33 = arith.addf %31, %32 : vector<64x32xf32>
    %34 = arith.mulf %33, %29 : vector<64x32xf32>
    %cst_25 = arith.constant 1.42141378 : f32
    %35 = vector.broadcast %cst_25 : f32 to vector<64x32xf32>
    %36 = arith.addf %34, %35 : vector<64x32xf32>
    %37 = arith.mulf %36, %29 : vector<64x32xf32>
    %cst_26 = arith.constant -0.284496725 : f32
    %38 = vector.broadcast %cst_26 : f32 to vector<64x32xf32>
    %39 = arith.addf %37, %38 : vector<64x32xf32>
    %40 = arith.mulf %39, %29 : vector<64x32xf32>
    %cst_27 = arith.constant 0.254829586 : f32
    %41 = vector.broadcast %cst_27 : f32 to vector<64x32xf32>
    %42 = arith.addf %40, %41 : vector<64x32xf32>
    %43 = arith.mulf %42, %29 : vector<64x32xf32>
    %cst_28 = arith.constant 0.000000e+00 : f32
    %44 = vector.broadcast %cst_28 : f32 to vector<64x32xf32>
    %45 = arith.subf %44, %23 : vector<64x32xf32>
    %46 = arith.mulf %45, %23 : vector<64x32xf32>
    %47 = math.exp %46 : vector<64x32xf32>
    %48 = arith.mulf %43, %47 : vector<64x32xf32>
    %cst_29 = arith.constant 1.000000e+00 : f32
    %49 = vector.broadcast %cst_29 : f32 to vector<64x32xf32>
    %50 = arith.subf %49, %48 : vector<64x32xf32>
    %cst_30 = arith.constant 0.000000e+00 : f32
    %51 = vector.broadcast %cst_30 : f32 to vector<64x32xf32>
    %52 = arith.cmpf olt, %22, %51 : vector<64x32xf32>
    %cst_31 = arith.constant 0.000000e+00 : f32
    %53 = vector.broadcast %cst_31 : f32 to vector<64x32xf32>
    %54 = arith.subf %53, %50 : vector<64x32xf32>
    %55 = arith.select %52, %54, %50 : vector<64x32xi1>, vector<64x32xf32>
    %cst_32 = arith.constant 1.000000e+00 : f32
    %56 = vector.broadcast %cst_32 : f32 to vector<64x32xf32>
    %57 = arith.addf %56, %55 : vector<64x32xf32>
    %58 = arith.mulf %20, %57 : vector<64x32xf32>
    %cst_33 = arith.constant 0.000000e+00 : f32
    %59 = vector.broadcast %cst_33 : f32 to vector<10x10x32xf32>
    %c0_34 = arith.constant 0 : index
    %c0_35 = arith.constant 0 : index
    %c0_36 = arith.constant 0 : index
    %60 = vector.load %arg20[%c0_34, %c0_35, %c0_36] : memref<10x10x32xf32, #tpu.memory_space<vmem>>, vector<10x10x32xf32>
    tpu.vector_store %arg20[%c0_34, %c0_35, %c0_36], %59 {strides = array<i32>} : memref<10x10x32xf32, #tpu.memory_space<vmem>>, vector<10x10x32xf32>,
    %61 = vector.shape_cast %58 : vector<64x32xf32> to vector<8x8x32xf32>
    %c1_37 = arith.constant 1 : index
    %c1_38 = arith.constant 1 : index
    %c0_39 = arith.constant 0 : index
    %62 = vector.load %arg20[%c1_37, %c1_38, %c0_39] : memref<10x10x32xf32, #tpu.memory_space<vmem>>, vector<8x8x32xf32>
    tpu.vector_store %arg20[%c1_37, %c1_38, %c0_39], %61 {strides = array<i32>} : memref<10x10x32xf32, #tpu.memory_space<vmem>>, vector<8x8x32xf32>,
    %c0_40 = arith.constant 0 : index
    %c0_41 = arith.constant 0 : index
    %c0_42 = arith.constant 0 : index
    %63 = tpu.strided_load %arg20[%c0_40, %c0_41, %c0_42] {strides = array<i32: 2, 2, 1>} : memref<10x10x32xf32, #tpu.memory_space<vmem>>, vector<4x4x32xf32>
    %64 = vector.shape_cast %63 : vector<4x4x32xf32> to vector<16x32xf32>
    %c0_43 = arith.constant 0 : index
    %c1_44 = arith.constant 1 : index
    %c0_45 = arith.constant 0 : index
    %65 = tpu.strided_load %arg20[%c0_43, %c1_44, %c0_45] {strides = array<i32: 2, 2, 1>} : memref<10x10x32xf32, #tpu.memory_space<vmem>>, vector<4x4x32xf32>
    %66 = vector.shape_cast %65 : vector<4x4x32xf32> to vector<16x32xf32>
    %c0_46 = arith.constant 0 : index
    %c2 = arith.constant 2 : index
    %c0_47 = arith.constant 0 : index
    %67 = tpu.strided_load %arg20[%c0_46, %c2, %c0_47] {strides = array<i32: 2, 2, 1>} : memref<10x10x32xf32, #tpu.memory_space<vmem>>, vector<4x4x32xf32>
    %68 = vector.shape_cast %67 : vector<4x4x32xf32> to vector<16x32xf32>
    %c1_48 = arith.constant 1 : index
    %c0_49 = arith.constant 0 : index
    %c0_50 = arith.constant 0 : index
    %69 = tpu.strided_load %arg20[%c1_48, %c0_49, %c0_50] {strides = array<i32: 2, 2, 1>} : memref<10x10x32xf32, #tpu.memory_space<vmem>>, vector<4x4x32xf32>
    %70 = vector.shape_cast %69 : vector<4x4x32xf32> to vector<16x32xf32>
    %c1_51 = arith.constant 1 : index
    %c1_52 = arith.constant 1 : index
    %c0_53 = arith.constant 0 : index
    %71 = tpu.strided_load %arg20[%c1_51, %c1_52, %c0_53] {strides = array<i32: 2, 2, 1>} : memref<10x10x32xf32, #tpu.memory_space<vmem>>, vector<4x4x32xf32>
    %72 = vector.shape_cast %71 : vector<4x4x32xf32> to vector<16x32xf32>
    %c1_54 = arith.constant 1 : index
    %c2_55 = arith.constant 2 : index
    %c0_56 = arith.constant 0 : index
    %73 = tpu.strided_load %arg20[%c1_54, %c2_55, %c0_56] {strides = array<i32: 2, 2, 1>} : memref<10x10x32xf32, #tpu.memory_space<vmem>>, vector<4x4x32xf32>
    %74 = vector.shape_cast %73 : vector<4x4x32xf32> to vector<16x32xf32>
    %c2_57 = arith.constant 2 : index
    %c0_58 = arith.constant 0 : index
    %c0_59 = arith.constant 0 : index
    %75 = tpu.strided_load %arg20[%c2_57, %c0_58, %c0_59] {strides = array<i32: 2, 2, 1>} : memref<10x10x32xf32, #tpu.memory_space<vmem>>, vector<4x4x32xf32>
    %76 = vector.shape_cast %75 : vector<4x4x32xf32> to vector<16x32xf32>
    %c2_60 = arith.constant 2 : index
    %c1_61 = arith.constant 1 : index
    %c0_62 = arith.constant 0 : index
    %77 = tpu.strided_load %arg20[%c2_60, %c1_61, %c0_62] {strides = array<i32: 2, 2, 1>} : memref<10x10x32xf32, #tpu.memory_space<vmem>>, vector<4x4x32xf32>
    %78 = vector.shape_cast %77 : vector<4x4x32xf32> to vector<16x32xf32>
    %c2_63 = arith.constant 2 : index
    %c2_64 = arith.constant 2 : index
    %c0_65 = arith.constant 0 : index
    %79 = tpu.strided_load %arg20[%c2_63, %c2_64, %c0_65] {strides = array<i32: 2, 2, 1>} : memref<10x10x32xf32, #tpu.memory_space<vmem>>, vector<4x4x32xf32>
    %80 = vector.shape_cast %79 : vector<4x4x32xf32> to vector<16x32xf32>
    %81 = tpu.concatenate %64, %66, %68, %70, %72, %74, %76, %78, %80 in 1 : vector<16x32xf32>, vector<16x32xf32>, vector<16x32xf32>, vector<16x32xf32>, vector<16x32xf32>, vector<16x32xf32>, vector<16x32xf32>, vector<16x32xf32>, vector<16x32xf32> -> vector<16x288xf32>
    %82 = arith.truncf %81 : vector<16x288xf32> to vector<16x288xbf16>
    %c0_66 = arith.constant 0 : index
    %c0_67 = arith.constant 0 : index
    %83 = vector.load %arg4[%c0_66, %c0_67] : memref<288x32xbf16, #tpu.memory_space<vmem>>, vector<288x32xbf16>
    %cst_68 = arith.constant dense<0.000000e+00> : vector<16x32xf32>
    %84 = tpu.matmul %82, %83, %cst_68 {dimension_numbers = #tpu.dot_dimension_numbers<[1], [0], [0], [1], [0, 0, 1, 1], [], []>} : vector<16x288xbf16>, vector<288x32xbf16>, vector<16x32xf32> -> vector<16x32xf32>
    %c0_69 = arith.constant 0 : index
    %c0_70 = arith.constant 0 : index
    %85 = vector.load %arg5[%c0_69, %c0_70] : memref<1x32xf32, #tpu.memory_space<vmem>>, vector<1x32xf32>
    %86 = vector.broadcast %85 : vector<1x32xf32> to vector<16x32xf32>
    %87 = arith.addf %84, %86 : vector<16x32xf32>
    %cst_71 = arith.constant 5.000000e-01 : f32
    %88 = vector.broadcast %cst_71 : f32 to vector<16x32xf32>
    %89 = arith.mulf %88, %87 : vector<16x32xf32>
    %cst_72 = arith.constant 0.707106769 : f32
    %90 = vector.broadcast %cst_72 : f32 to vector<16x32xf32>
    %91 = arith.mulf %87, %90 : vector<16x32xf32>
    %92 = math.absf %91 : vector<16x32xf32>
    %cst_73 = arith.constant 0.327591091 : f32
    %93 = vector.broadcast %cst_73 : f32 to vector<16x32xf32>
    %94 = arith.mulf %93, %92 : vector<16x32xf32>
    %cst_74 = arith.constant 1.000000e+00 : f32
    %95 = vector.broadcast %cst_74 : f32 to vector<16x32xf32>
    %96 = arith.addf %95, %94 : vector<16x32xf32>
    %cst_75 = arith.constant 1.000000e+00 : f32
    %97 = vector.broadcast %cst_75 : f32 to vector<16x32xf32>
    %98 = arith.divf %97, %96 : vector<16x32xf32>
    %cst_76 = arith.constant 1.06140542 : f32
    %99 = vector.broadcast %cst_76 : f32 to vector<16x32xf32>
    %100 = arith.mulf %99, %98 : vector<16x32xf32>
    %cst_77 = arith.constant -1.45315206 : f32
    %101 = vector.broadcast %cst_77 : f32 to vector<16x32xf32>
    %102 = arith.addf %100, %101 : vector<16x32xf32>
    %103 = arith.mulf %102, %98 : vector<16x32xf32>
    %cst_78 = arith.constant 1.42141378 : f32
    %104 = vector.broadcast %cst_78 : f32 to vector<16x32xf32>
    %105 = arith.addf %103, %104 : vector<16x32xf32>
    %106 = arith.mulf %105, %98 : vector<16x32xf32>
    %cst_79 = arith.constant -0.284496725 : f32
    %107 = vector.broadcast %cst_79 : f32 to vector<16x32xf32>
    %108 = arith.addf %106, %107 : vector<16x32xf32>
    %109 = arith.mulf %108, %98 : vector<16x32xf32>
    %cst_80 = arith.constant 0.254829586 : f32
    %110 = vector.broadcast %cst_80 : f32 to vector<16x32xf32>
    %111 = arith.addf %109, %110 : vector<16x32xf32>
    %112 = arith.mulf %111, %98 : vector<16x32xf32>
    %cst_81 = arith.constant 0.000000e+00 : f32
    %113 = vector.broadcast %cst_81 : f32 to vector<16x32xf32>
    %114 = arith.subf %113, %92 : vector<16x32xf32>
    %115 = arith.mulf %114, %92 : vector<16x32xf32>
    %116 = math.exp %115 : vector<16x32xf32>
    %117 = arith.mulf %112, %116 : vector<16x32xf32>
    %cst_82 = arith.constant 1.000000e+00 : f32
    %118 = vector.broadcast %cst_82 : f32 to vector<16x32xf32>
    %119 = arith.subf %118, %117 : vector<16x32xf32>
    %cst_83 = arith.constant 0.000000e+00 : f32
    %120 = vector.broadcast %cst_83 : f32 to vector<16x32xf32>
    %121 = arith.cmpf olt, %91, %120 : vector<16x32xf32>
    %cst_84 = arith.constant 0.000000e+00 : f32
    %122 = vector.broadcast %cst_84 : f32 to vector<16x32xf32>
    %123 = arith.subf %122, %119 : vector<16x32xf32>
    %124 = arith.select %121, %123, %119 : vector<16x32xi1>, vector<16x32xf32>
    %cst_85 = arith.constant 1.000000e+00 : f32
    %125 = vector.broadcast %cst_85 : f32 to vector<16x32xf32>
    %126 = arith.addf %125, %124 : vector<16x32xf32>
    %127 = arith.mulf %89, %126 : vector<16x32xf32>
    %cst_86 = arith.constant 0.000000e+00 : f32
    %128 = vector.broadcast %cst_86 : f32 to vector<6x6x32xf32>
    %c0_87 = arith.constant 0 : index
    %c0_88 = arith.constant 0 : index
    %c0_89 = arith.constant 0 : index
    %129 = vector.load %arg21[%c0_87, %c0_88, %c0_89] : memref<6x6x32xf32, #tpu.memory_space<vmem>>, vector<6x6x32xf32>
    tpu.vector_store %arg21[%c0_87, %c0_88, %c0_89], %128 {strides = array<i32>} : memref<6x6x32xf32, #tpu.memory_space<vmem>>, vector<6x6x32xf32>,
    %130 = vector.shape_cast %127 : vector<16x32xf32> to vector<4x4x32xf32>
    %c1_90 = arith.constant 1 : index
    %c1_91 = arith.constant 1 : index
    %c0_92 = arith.constant 0 : index
    %131 = vector.load %arg21[%c1_90, %c1_91, %c0_92] : memref<6x6x32xf32, #tpu.memory_space<vmem>>, vector<4x4x32xf32>
    tpu.vector_store %arg21[%c1_90, %c1_91, %c0_92], %130 {strides = array<i32>} : memref<6x6x32xf32, #tpu.memory_space<vmem>>, vector<4x4x32xf32>,
    %c0_93 = arith.constant 0 : index
    %c0_94 = arith.constant 0 : index
    %c0_95 = arith.constant 0 : index
    %132 = tpu.strided_load %arg21[%c0_93, %c0_94, %c0_95] {strides = array<i32: 2, 2, 1>} : memref<6x6x32xf32, #tpu.memory_space<vmem>>, vector<2x2x32xf32>
    %133 = vector.shape_cast %132 : vector<2x2x32xf32> to vector<4x32xf32>
    %c0_96 = arith.constant 0 : index
    %c1_97 = arith.constant 1 : index
    %c0_98 = arith.constant 0 : index
    %134 = tpu.strided_load %arg21[%c0_96, %c1_97, %c0_98] {strides = array<i32: 2, 2, 1>} : memref<6x6x32xf32, #tpu.memory_space<vmem>>, vector<2x2x32xf32>
    %135 = vector.shape_cast %134 : vector<2x2x32xf32> to vector<4x32xf32>
    %c0_99 = arith.constant 0 : index
    %c2_100 = arith.constant 2 : index
    %c0_101 = arith.constant 0 : index
    %136 = tpu.strided_load %arg21[%c0_99, %c2_100, %c0_101] {strides = array<i32: 2, 2, 1>} : memref<6x6x32xf32, #tpu.memory_space<vmem>>, vector<2x2x32xf32>
    %137 = vector.shape_cast %136 : vector<2x2x32xf32> to vector<4x32xf32>
    %c1_102 = arith.constant 1 : index
    %c0_103 = arith.constant 0 : index
    %c0_104 = arith.constant 0 : index
    %138 = tpu.strided_load %arg21[%c1_102, %c0_103, %c0_104] {strides = array<i32: 2, 2, 1>} : memref<6x6x32xf32, #tpu.memory_space<vmem>>, vector<2x2x32xf32>
    %139 = vector.shape_cast %138 : vector<2x2x32xf32> to vector<4x32xf32>
    %c1_105 = arith.constant 1 : index
    %c1_106 = arith.constant 1 : index
    %c0_107 = arith.constant 0 : index
    %140 = tpu.strided_load %arg21[%c1_105, %c1_106, %c0_107] {strides = array<i32: 2, 2, 1>} : memref<6x6x32xf32, #tpu.memory_space<vmem>>, vector<2x2x32xf32>
    %141 = vector.shape_cast %140 : vector<2x2x32xf32> to vector<4x32xf32>
    %c1_108 = arith.constant 1 : index
    %c2_109 = arith.constant 2 : index
    %c0_110 = arith.constant 0 : index
    %142 = tpu.strided_load %arg21[%c1_108, %c2_109, %c0_110] {strides = array<i32: 2, 2, 1>} : memref<6x6x32xf32, #tpu.memory_space<vmem>>, vector<2x2x32xf32>
    %143 = vector.shape_cast %142 : vector<2x2x32xf32> to vector<4x32xf32>
    %c2_111 = arith.constant 2 : index
    %c0_112 = arith.constant 0 : index
    %c0_113 = arith.constant 0 : index
    %144 = tpu.strided_load %arg21[%c2_111, %c0_112, %c0_113] {strides = array<i32: 2, 2, 1>} : memref<6x6x32xf32, #tpu.memory_space<vmem>>, vector<2x2x32xf32>
    %145 = vector.shape_cast %144 : vector<2x2x32xf32> to vector<4x32xf32>
    %c2_114 = arith.constant 2 : index
    %c1_115 = arith.constant 1 : index
    %c0_116 = arith.constant 0 : index
    %146 = tpu.strided_load %arg21[%c2_114, %c1_115, %c0_116] {strides = array<i32: 2, 2, 1>} : memref<6x6x32xf32, #tpu.memory_space<vmem>>, vector<2x2x32xf32>
    %147 = vector.shape_cast %146 : vector<2x2x32xf32> to vector<4x32xf32>
    %c2_117 = arith.constant 2 : index
    %c2_118 = arith.constant 2 : index
    %c0_119 = arith.constant 0 : index
    %148 = tpu.strided_load %arg21[%c2_117, %c2_118, %c0_119] {strides = array<i32: 2, 2, 1>} : memref<6x6x32xf32, #tpu.memory_space<vmem>>, vector<2x2x32xf32>
    %149 = vector.shape_cast %148 : vector<2x2x32xf32> to vector<4x32xf32>
    %150 = tpu.concatenate %133, %135, %137, %139, %141, %143, %145, %147, %149 in 1 : vector<4x32xf32>, vector<4x32xf32>, vector<4x32xf32>, vector<4x32xf32>, vector<4x32xf32>, vector<4x32xf32>, vector<4x32xf32>, vector<4x32xf32>, vector<4x32xf32> -> vector<4x288xf32>
    %151 = arith.truncf %150 : vector<4x288xf32> to vector<4x288xbf16>
    %c0_120 = arith.constant 0 : index
    %c0_121 = arith.constant 0 : index
    %152 = vector.load %arg6[%c0_120, %c0_121] : memref<288x96xbf16, #tpu.memory_space<vmem>>, vector<288x96xbf16>
    %cst_122 = arith.constant dense<0.000000e+00> : vector<4x96xf32>
    %153 = tpu.matmul %151, %152, %cst_122 {dimension_numbers = #tpu.dot_dimension_numbers<[1], [0], [0], [1], [0, 0, 1, 1], [], []>} : vector<4x288xbf16>, vector<288x96xbf16>, vector<4x96xf32> -> vector<4x96xf32>
    %c0_123 = arith.constant 0 : index
    %c0_124 = arith.constant 0 : index
    %154 = vector.load %arg7[%c0_123, %c0_124] : memref<1x96xf32, #tpu.memory_space<vmem>>, vector<1x96xf32>
    %155 = vector.broadcast %154 : vector<1x96xf32> to vector<4x96xf32>
    %156 = arith.addf %153, %155 : vector<4x96xf32>
    %cst_125 = arith.constant 5.000000e-01 : f32
    %157 = vector.broadcast %cst_125 : f32 to vector<4x96xf32>
    %158 = arith.mulf %157, %156 : vector<4x96xf32>
    %cst_126 = arith.constant 0.707106769 : f32
    %159 = vector.broadcast %cst_126 : f32 to vector<4x96xf32>
    %160 = arith.mulf %156, %159 : vector<4x96xf32>
    %161 = math.absf %160 : vector<4x96xf32>
    %cst_127 = arith.constant 0.327591091 : f32
    %162 = vector.broadcast %cst_127 : f32 to vector<4x96xf32>
    %163 = arith.mulf %162, %161 : vector<4x96xf32>
    %cst_128 = arith.constant 1.000000e+00 : f32
    %164 = vector.broadcast %cst_128 : f32 to vector<4x96xf32>
    %165 = arith.addf %164, %163 : vector<4x96xf32>
    %cst_129 = arith.constant 1.000000e+00 : f32
    %166 = vector.broadcast %cst_129 : f32 to vector<4x96xf32>
    %167 = arith.divf %166, %165 : vector<4x96xf32>
    %cst_130 = arith.constant 1.06140542 : f32
    %168 = vector.broadcast %cst_130 : f32 to vector<4x96xf32>
    %169 = arith.mulf %168, %167 : vector<4x96xf32>
    %cst_131 = arith.constant -1.45315206 : f32
    %170 = vector.broadcast %cst_131 : f32 to vector<4x96xf32>
    %171 = arith.addf %169, %170 : vector<4x96xf32>
    %172 = arith.mulf %171, %167 : vector<4x96xf32>
    %cst_132 = arith.constant 1.42141378 : f32
    %173 = vector.broadcast %cst_132 : f32 to vector<4x96xf32>
    %174 = arith.addf %172, %173 : vector<4x96xf32>
    %175 = arith.mulf %174, %167 : vector<4x96xf32>
    %cst_133 = arith.constant -0.284496725 : f32
    %176 = vector.broadcast %cst_133 : f32 to vector<4x96xf32>
    %177 = arith.addf %175, %176 : vector<4x96xf32>
    %178 = arith.mulf %177, %167 : vector<4x96xf32>
    %cst_134 = arith.constant 0.254829586 : f32
    %179 = vector.broadcast %cst_134 : f32 to vector<4x96xf32>
    %180 = arith.addf %178, %179 : vector<4x96xf32>
    %181 = arith.mulf %180, %167 : vector<4x96xf32>
    %cst_135 = arith.constant 0.000000e+00 : f32
    %182 = vector.broadcast %cst_135 : f32 to vector<4x96xf32>
    %183 = arith.subf %182, %161 : vector<4x96xf32>
    %184 = arith.mulf %183, %161 : vector<4x96xf32>
    %185 = math.exp %184 : vector<4x96xf32>
    %186 = arith.mulf %181, %185 : vector<4x96xf32>
    %cst_136 = arith.constant 1.000000e+00 : f32
    %187 = vector.broadcast %cst_136 : f32 to vector<4x96xf32>
    %188 = arith.subf %187, %186 : vector<4x96xf32>
    %cst_137 = arith.constant 0.000000e+00 : f32
    %189 = vector.broadcast %cst_137 : f32 to vector<4x96xf32>
    %190 = arith.cmpf olt, %160, %189 : vector<4x96xf32>
    %cst_138 = arith.constant 0.000000e+00 : f32
    %191 = vector.broadcast %cst_138 : f32 to vector<4x96xf32>
    %192 = arith.subf %191, %188 : vector<4x96xf32>
    %193 = arith.select %190, %192, %188 : vector<4x96xi1>, vector<4x96xf32>
    %cst_139 = arith.constant 1.000000e+00 : f32
    %194 = vector.broadcast %cst_139 : f32 to vector<4x96xf32>
    %195 = arith.addf %194, %193 : vector<4x96xf32>
    %196 = arith.mulf %158, %195 : vector<4x96xf32>
    %197 = vector.extract_strided_slice %196 {offsets = [0, 0], sizes = [4, 8], strides = [1, 1]} : vector<4x96xf32> to vector<4x8xf32>
    %198 = vector.extract_strided_slice %196 {offsets = [0, 32], sizes = [4, 8], strides = [1, 1]} : vector<4x96xf32> to vector<4x8xf32>
    %199 = vector.extract_strided_slice %196 {offsets = [0, 64], sizes = [4, 8], strides = [1, 1]} : vector<4x96xf32> to vector<4x8xf32>
    %cst_140 = arith.constant dense<0.000000e+00> : vector<4x4xf32>
    %200 = tpu.matmul %197, %198, %cst_140 {dimension_numbers = #tpu.dot_dimension_numbers<[1], [1], [0], [0], [0, 0, 1, 0], [], []>} : vector<4x8xf32>, vector<4x8xf32>, vector<4x4xf32> -> vector<4x4xf32>
    %cst_141 = arith.constant 0.353553385 : f32
    %201 = vector.broadcast %cst_141 : f32 to vector<4x4xf32>
    %202 = arith.mulf %200, %201 : vector<4x4xf32>
    %cst_142 = arith.constant dense<0xFF800000> : vector<4xf32>
    %203 = vector.multi_reduction <maximumf>, %202, %cst_142 [1] : vector<4x4xf32> to vector<4xf32>
    %204 = vector.shape_cast %203 : vector<4xf32> to vector<4x1xf32>
    %205 = vector.broadcast %204 : vector<4x1xf32> to vector<4x4xf32>
    %206 = arith.subf %202, %205 : vector<4x4xf32>
    %207 = math.exp %206 : vector<4x4xf32>
    %cst_143 = arith.constant dense<0.000000e+00> : vector<4xf32>
    %208 = vector.multi_reduction <add>, %207, %cst_143 [1] : vector<4x4xf32> to vector<4xf32>
    %209 = vector.shape_cast %208 : vector<4xf32> to vector<4x1xf32>
    %210 = vector.broadcast %209 : vector<4x1xf32> to vector<4x4xf32>
    %211 = arith.divf %207, %210 : vector<4x4xf32>
    %cst_144 = arith.constant dense<0.000000e+00> : vector<4x8xf32>
    %212 = tpu.matmul %211, %199, %cst_144 {dimension_numbers = #tpu.dot_dimension_numbers<[1], [0], [0], [1], [0, 0, 1, 1], [], []>} : vector<4x4xf32>, vector<4x8xf32>, vector<4x8xf32> -> vector<4x8xf32>
    %c0_145 = arith.constant 0 : index
    %c0_146 = arith.constant 0 : index
    %213 = vector.load %arg22[%c0_145, %c0_146] : memref<4x32xf32, #tpu.memory_space<vmem>>, vector<4x8xf32>
    tpu.vector_store %arg22[%c0_145, %c0_146], %212 {strides = array<i32>} : memref<4x32xf32, #tpu.memory_space<vmem>>, vector<4x8xf32>,
    %214 = vector.extract_strided_slice %196 {offsets = [0, 8], sizes = [4, 8], strides = [1, 1]} : vector<4x96xf32> to vector<4x8xf32>
    %215 = vector.extract_strided_slice %196 {offsets = [0, 40], sizes = [4, 8], strides = [1, 1]} : vector<4x96xf32> to vector<4x8xf32>
    %216 = vector.extract_strided_slice %196 {offsets = [0, 72], sizes = [4, 8], strides = [1, 1]} : vector<4x96xf32> to vector<4x8xf32>
    %cst_147 = arith.constant dense<0.000000e+00> : vector<4x4xf32>
    %217 = tpu.matmul %214, %215, %cst_147 {dimension_numbers = #tpu.dot_dimension_numbers<[1], [1], [0], [0], [0, 0, 1, 0], [], []>} : vector<4x8xf32>, vector<4x8xf32>, vector<4x4xf32> -> vector<4x4xf32>
    %cst_148 = arith.constant 0.353553385 : f32
    %218 = vector.broadcast %cst_148 : f32 to vector<4x4xf32>
    %219 = arith.mulf %217, %218 : vector<4x4xf32>
    %cst_149 = arith.constant dense<0xFF800000> : vector<4xf32>
    %220 = vector.multi_reduction <maximumf>, %219, %cst_149 [1] : vector<4x4xf32> to vector<4xf32>
    %221 = vector.shape_cast %220 : vector<4xf32> to vector<4x1xf32>
    %222 = vector.broadcast %221 : vector<4x1xf32> to vector<4x4xf32>
    %223 = arith.subf %219, %222 : vector<4x4xf32>
    %224 = math.exp %223 : vector<4x4xf32>
    %cst_150 = arith.constant dense<0.000000e+00> : vector<4xf32>
    %225 = vector.multi_reduction <add>, %224, %cst_150 [1] : vector<4x4xf32> to vector<4xf32>
    %226 = vector.shape_cast %225 : vector<4xf32> to vector<4x1xf32>
    %227 = vector.broadcast %226 : vector<4x1xf32> to vector<4x4xf32>
    %228 = arith.divf %224, %227 : vector<4x4xf32>
    %cst_151 = arith.constant dense<0.000000e+00> : vector<4x8xf32>
    %229 = tpu.matmul %228, %216, %cst_151 {dimension_numbers = #tpu.dot_dimension_numbers<[1], [0], [0], [1], [0, 0, 1, 1], [], []>} : vector<4x4xf32>, vector<4x8xf32>, vector<4x8xf32> -> vector<4x8xf32>
    %c0_152 = arith.constant 0 : index
    %c8 = arith.constant 8 : index
    %230 = vector.load %arg22[%c0_152, %c8] : memref<4x32xf32, #tpu.memory_space<vmem>>, vector<4x8xf32>
    tpu.vector_store %arg22[%c0_152, %c8], %229 {strides = array<i32>} : memref<4x32xf32, #tpu.memory_space<vmem>>, vector<4x8xf32>,
    %231 = vector.extract_strided_slice %196 {offsets = [0, 16], sizes = [4, 8], strides = [1, 1]} : vector<4x96xf32> to vector<4x8xf32>
    %232 = vector.extract_strided_slice %196 {offsets = [0, 48], sizes = [4, 8], strides = [1, 1]} : vector<4x96xf32> to vector<4x8xf32>
    %233 = vector.extract_strided_slice %196 {offsets = [0, 80], sizes = [4, 8], strides = [1, 1]} : vector<4x96xf32> to vector<4x8xf32>
    %cst_153 = arith.constant dense<0.000000e+00> : vector<4x4xf32>
    %234 = tpu.matmul %231, %232, %cst_153 {dimension_numbers = #tpu.dot_dimension_numbers<[1], [1], [0], [0], [0, 0, 1, 0], [], []>} : vector<4x8xf32>, vector<4x8xf32>, vector<4x4xf32> -> vector<4x4xf32>
    %cst_154 = arith.constant 0.353553385 : f32
    %235 = vector.broadcast %cst_154 : f32 to vector<4x4xf32>
    %236 = arith.mulf %234, %235 : vector<4x4xf32>
    %cst_155 = arith.constant dense<0xFF800000> : vector<4xf32>
    %237 = vector.multi_reduction <maximumf>, %236, %cst_155 [1] : vector<4x4xf32> to vector<4xf32>
    %238 = vector.shape_cast %237 : vector<4xf32> to vector<4x1xf32>
    %239 = vector.broadcast %238 : vector<4x1xf32> to vector<4x4xf32>
    %240 = arith.subf %236, %239 : vector<4x4xf32>
    %241 = math.exp %240 : vector<4x4xf32>
    %cst_156 = arith.constant dense<0.000000e+00> : vector<4xf32>
    %242 = vector.multi_reduction <add>, %241, %cst_156 [1] : vector<4x4xf32> to vector<4xf32>
    %243 = vector.shape_cast %242 : vector<4xf32> to vector<4x1xf32>
    %244 = vector.broadcast %243 : vector<4x1xf32> to vector<4x4xf32>
    %245 = arith.divf %241, %244 : vector<4x4xf32>
    %cst_157 = arith.constant dense<0.000000e+00> : vector<4x8xf32>
    %246 = tpu.matmul %245, %233, %cst_157 {dimension_numbers = #tpu.dot_dimension_numbers<[1], [0], [0], [1], [0, 0, 1, 1], [], []>} : vector<4x4xf32>, vector<4x8xf32>, vector<4x8xf32> -> vector<4x8xf32>
    %c0_158 = arith.constant 0 : index
    %c16 = arith.constant 16 : index
    %247 = vector.load %arg22[%c0_158, %c16] : memref<4x32xf32, #tpu.memory_space<vmem>>, vector<4x8xf32>
    tpu.vector_store %arg22[%c0_158, %c16], %246 {strides = array<i32>} : memref<4x32xf32, #tpu.memory_space<vmem>>, vector<4x8xf32>,
    %248 = vector.extract_strided_slice %196 {offsets = [0, 24], sizes = [4, 8], strides = [1, 1]} : vector<4x96xf32> to vector<4x8xf32>
    %249 = vector.extract_strided_slice %196 {offsets = [0, 56], sizes = [4, 8], strides = [1, 1]} : vector<4x96xf32> to vector<4x8xf32>
    %250 = vector.extract_strided_slice %196 {offsets = [0, 88], sizes = [4, 8], strides = [1, 1]} : vector<4x96xf32> to vector<4x8xf32>
    %cst_159 = arith.constant dense<0.000000e+00> : vector<4x4xf32>
    %251 = tpu.matmul %248, %249, %cst_159 {dimension_numbers = #tpu.dot_dimension_numbers<[1], [1], [0], [0], [0, 0, 1, 0], [], []>} : vector<4x8xf32>, vector<4x8xf32>, vector<4x4xf32> -> vector<4x4xf32>
    %cst_160 = arith.constant 0.353553385 : f32
    %252 = vector.broadcast %cst_160 : f32 to vector<4x4xf32>
    %253 = arith.mulf %251, %252 : vector<4x4xf32>
    %cst_161 = arith.constant dense<0xFF800000> : vector<4xf32>
    %254 = vector.multi_reduction <maximumf>, %253, %cst_161 [1] : vector<4x4xf32> to vector<4xf32>
    %255 = vector.shape_cast %254 : vector<4xf32> to vector<4x1xf32>
    %256 = vector.broadcast %255 : vector<4x1xf32> to vector<4x4xf32>
    %257 = arith.subf %253, %256 : vector<4x4xf32>
    %258 = math.exp %257 : vector<4x4xf32>
    %cst_162 = arith.constant dense<0.000000e+00> : vector<4xf32>
    %259 = vector.multi_reduction <add>, %258, %cst_162 [1] : vector<4x4xf32> to vector<4xf32>
    %260 = vector.shape_cast %259 : vector<4xf32> to vector<4x1xf32>
    %261 = vector.broadcast %260 : vector<4x1xf32> to vector<4x4xf32>
    %262 = arith.divf %258, %261 : vector<4x4xf32>
    %cst_163 = arith.constant dense<0.000000e+00> : vector<4x8xf32>
    %263 = tpu.matmul %262, %250, %cst_163 {dimension_numbers = #tpu.dot_dimension_numbers<[1], [0], [0], [1], [0, 0, 1, 1], [], []>} : vector<4x4xf32>, vector<4x8xf32>, vector<4x8xf32> -> vector<4x8xf32>
    %c0_164 = arith.constant 0 : index
    %c24 = arith.constant 24 : index
    %264 = vector.load %arg22[%c0_164, %c24] : memref<4x32xf32, #tpu.memory_space<vmem>>, vector<4x8xf32>
    tpu.vector_store %arg22[%c0_164, %c24], %263 {strides = array<i32>} : memref<4x32xf32, #tpu.memory_space<vmem>>, vector<4x8xf32>,
    %cst_165 = arith.constant 0.000000e+00 : f32
    %265 = vector.broadcast %cst_165 : f32 to vector<3x3x32xf32>
    %c0_166 = arith.constant 0 : index
    %c0_167 = arith.constant 0 : index
    %c0_168 = arith.constant 0 : index
    %266 = vector.load %arg23[%c0_166, %c0_167, %c0_168] : memref<3x3x32xf32, #tpu.memory_space<vmem>>, vector<3x3x32xf32>
    tpu.vector_store %arg23[%c0_166, %c0_167, %c0_168], %265 {strides = array<i32>} : memref<3x3x32xf32, #tpu.memory_space<vmem>>, vector<3x3x32xf32>,
    %c0_169 = arith.constant 0 : index
    %c0_170 = arith.constant 0 : index
    %267 = vector.load %arg22[%c0_169, %c0_170] : memref<4x32xf32, #tpu.memory_space<vmem>>, vector<4x32xf32>
    %268 = vector.shape_cast %267 : vector<4x32xf32> to vector<2x2x32xf32>
    %c0_171 = arith.constant 0 : index
    %c0_172 = arith.constant 0 : index
    %c0_173 = arith.constant 0 : index
    %269 = vector.load %arg23[%c0_171, %c0_172, %c0_173] : memref<3x3x32xf32, #tpu.memory_space<vmem>>, vector<2x2x32xf32>
    tpu.vector_store %arg23[%c0_171, %c0_172, %c0_173], %268 {strides = array<i32>} : memref<3x3x32xf32, #tpu.memory_space<vmem>>, vector<2x2x32xf32>,
    %c0_174 = arith.constant 0 : index
    %c0_175 = arith.constant 0 : index
    %c0_176 = arith.constant 0 : index
    %270 = vector.load %arg23[%c0_174, %c0_175, %c0_176] : memref<3x3x32xf32, #tpu.memory_space<vmem>>, vector<2x2x32xf32>
    %271 = vector.shape_cast %270 : vector<2x2x32xf32> to vector<4x32xf32>
    %c0_177 = arith.constant 0 : index
    %c1_178 = arith.constant 1 : index
    %c0_179 = arith.constant 0 : index
    %272 = vector.load %arg23[%c0_177, %c1_178, %c0_179] : memref<3x3x32xf32, #tpu.memory_space<vmem>>, vector<2x2x32xf32>
    %273 = vector.shape_cast %272 : vector<2x2x32xf32> to vector<4x32xf32>
    %c1_180 = arith.constant 1 : index
    %c0_181 = arith.constant 0 : index
    %c0_182 = arith.constant 0 : index
    %274 = vector.load %arg23[%c1_180, %c0_181, %c0_182] : memref<3x3x32xf32, #tpu.memory_space<vmem>>, vector<2x2x32xf32>
    %275 = vector.shape_cast %274 : vector<2x2x32xf32> to vector<4x32xf32>
    %c1_183 = arith.constant 1 : index
    %c1_184 = arith.constant 1 : index
    %c0_185 = arith.constant 0 : index
    %276 = vector.load %arg23[%c1_183, %c1_184, %c0_185] : memref<3x3x32xf32, #tpu.memory_space<vmem>>, vector<2x2x32xf32>
    %277 = vector.shape_cast %276 : vector<2x2x32xf32> to vector<4x32xf32>
    %278 = tpu.concatenate %271, %273, %275, %277 in 1 : vector<4x32xf32>, vector<4x32xf32>, vector<4x32xf32>, vector<4x32xf32> -> vector<4x128xf32>
    %279 = arith.truncf %278 : vector<4x128xf32> to vector<4x128xbf16>
    %c0_186 = arith.constant 0 : index
    %c0_187 = arith.constant 0 : index
    %280 = vector.load %arg8[%c0_186, %c0_187] : memref<128x128xbf16, #tpu.memory_space<vmem>>, vector<128x128xbf16>
    %cst_188 = arith.constant dense<0.000000e+00> : vector<4x128xf32>
    %281 = tpu.matmul %279, %280, %cst_188 {dimension_numbers = #tpu.dot_dimension_numbers<[1], [0], [0], [1], [0, 0, 1, 1], [], []>} : vector<4x128xbf16>, vector<128x128xbf16>, vector<4x128xf32> -> vector<4x128xf32>
    %c0_189 = arith.constant 0 : index
    %c0_190 = arith.constant 0 : index
    %282 = vector.load %arg9[%c0_189, %c0_190] : memref<1x128xf32, #tpu.memory_space<vmem>>, vector<1x128xf32>
    %283 = vector.broadcast %282 : vector<1x128xf32> to vector<4x128xf32>
    %284 = arith.mulf %281, %283 : vector<4x128xf32>
    %c0_191 = arith.constant 0 : index
    %c0_192 = arith.constant 0 : index
    %285 = vector.load %arg10[%c0_191, %c0_192] : memref<1x128xf32, #tpu.memory_space<vmem>>, vector<1x128xf32>
    %286 = vector.broadcast %285 : vector<1x128xf32> to vector<4x128xf32>
    %287 = arith.addf %284, %286 : vector<4x128xf32>
    %cst_193 = arith.constant 5.000000e-01 : f32
    %288 = vector.broadcast %cst_193 : f32 to vector<4x128xf32>
    %289 = arith.mulf %288, %287 : vector<4x128xf32>
    %cst_194 = arith.constant 0.707106769 : f32
    %290 = vector.broadcast %cst_194 : f32 to vector<4x128xf32>
    %291 = arith.mulf %287, %290 : vector<4x128xf32>
    %292 = math.absf %291 : vector<4x128xf32>
    %cst_195 = arith.constant 0.327591091 : f32
    %293 = vector.broadcast %cst_195 : f32 to vector<4x128xf32>
    %294 = arith.mulf %293, %292 : vector<4x128xf32>
    %cst_196 = arith.constant 1.000000e+00 : f32
    %295 = vector.broadcast %cst_196 : f32 to vector<4x128xf32>
    %296 = arith.addf %295, %294 : vector<4x128xf32>
    %cst_197 = arith.constant 1.000000e+00 : f32
    %297 = vector.broadcast %cst_197 : f32 to vector<4x128xf32>
    %298 = arith.divf %297, %296 : vector<4x128xf32>
    %cst_198 = arith.constant 1.06140542 : f32
    %299 = vector.broadcast %cst_198 : f32 to vector<4x128xf32>
    %300 = arith.mulf %299, %298 : vector<4x128xf32>
    %cst_199 = arith.constant -1.45315206 : f32
    %301 = vector.broadcast %cst_199 : f32 to vector<4x128xf32>
    %302 = arith.addf %300, %301 : vector<4x128xf32>
    %303 = arith.mulf %302, %298 : vector<4x128xf32>
    %cst_200 = arith.constant 1.42141378 : f32
    %304 = vector.broadcast %cst_200 : f32 to vector<4x128xf32>
    %305 = arith.addf %303, %304 : vector<4x128xf32>
    %306 = arith.mulf %305, %298 : vector<4x128xf32>
    %cst_201 = arith.constant -0.284496725 : f32
    %307 = vector.broadcast %cst_201 : f32 to vector<4x128xf32>
    %308 = arith.addf %306, %307 : vector<4x128xf32>
    %309 = arith.mulf %308, %298 : vector<4x128xf32>
    %cst_202 = arith.constant 0.254829586 : f32
    %310 = vector.broadcast %cst_202 : f32 to vector<4x128xf32>
    %311 = arith.addf %309, %310 : vector<4x128xf32>
    %312 = arith.mulf %311, %298 : vector<4x128xf32>
    %cst_203 = arith.constant 0.000000e+00 : f32
    %313 = vector.broadcast %cst_203 : f32 to vector<4x128xf32>
    %314 = arith.subf %313, %292 : vector<4x128xf32>
    %315 = arith.mulf %314, %292 : vector<4x128xf32>
    %316 = math.exp %315 : vector<4x128xf32>
    %317 = arith.mulf %312, %316 : vector<4x128xf32>
    %cst_204 = arith.constant 1.000000e+00 : f32
    %318 = vector.broadcast %cst_204 : f32 to vector<4x128xf32>
    %319 = arith.subf %318, %317 : vector<4x128xf32>
    %cst_205 = arith.constant 0.000000e+00 : f32
    %320 = vector.broadcast %cst_205 : f32 to vector<4x128xf32>
    %321 = arith.cmpf olt, %291, %320 : vector<4x128xf32>
    %cst_206 = arith.constant 0.000000e+00 : f32
    %322 = vector.broadcast %cst_206 : f32 to vector<4x128xf32>
    %323 = arith.subf %322, %319 : vector<4x128xf32>
    %324 = arith.select %321, %323, %319 : vector<4x128xi1>, vector<4x128xf32>
    %cst_207 = arith.constant 1.000000e+00 : f32
    %325 = vector.broadcast %cst_207 : f32 to vector<4x128xf32>
    %326 = arith.addf %325, %324 : vector<4x128xf32>
    %327 = arith.mulf %289, %326 : vector<4x128xf32>
    %cst_208 = arith.constant 0.000000e+00 : f32
    %328 = vector.broadcast %cst_208 : f32 to vector<5x5x32xf32>
    %c0_209 = arith.constant 0 : index
    %c0_210 = arith.constant 0 : index
    %c0_211 = arith.constant 0 : index
    %329 = vector.load %arg24[%c0_209, %c0_210, %c0_211] : memref<5x5x32xf32, #tpu.memory_space<vmem>>, vector<5x5x32xf32>
    tpu.vector_store %arg24[%c0_209, %c0_210, %c0_211], %328 {strides = array<i32>} : memref<5x5x32xf32, #tpu.memory_space<vmem>>, vector<5x5x32xf32>,
    %330 = vector.extract_strided_slice %327 {offsets = [0, 0], sizes = [1, 32], strides = [1, 1]} : vector<4x128xf32> to vector<1x32xf32>
    %331 = vector.shape_cast %330 : vector<1x32xf32> to vector<1x1x32xf32>
    %c0_212 = arith.constant 0 : index
    %c0_213 = arith.constant 0 : index
    %c0_214 = arith.constant 0 : index
    %332 = vector.load %arg24[%c0_212, %c0_213, %c0_214] : memref<5x5x32xf32, #tpu.memory_space<vmem>>, vector<1x1x32xf32>
    tpu.vector_store %arg24[%c0_212, %c0_213, %c0_214], %331 {strides = array<i32>} : memref<5x5x32xf32, #tpu.memory_space<vmem>>, vector<1x1x32xf32>,
    %333 = vector.extract_strided_slice %327 {offsets = [0, 32], sizes = [1, 32], strides = [1, 1]} : vector<4x128xf32> to vector<1x32xf32>
    %334 = vector.shape_cast %333 : vector<1x32xf32> to vector<1x1x32xf32>
    %c0_215 = arith.constant 0 : index
    %c1_216 = arith.constant 1 : index
    %c0_217 = arith.constant 0 : index
    %335 = vector.load %arg24[%c0_215, %c1_216, %c0_217] : memref<5x5x32xf32, #tpu.memory_space<vmem>>, vector<1x1x32xf32>
    tpu.vector_store %arg24[%c0_215, %c1_216, %c0_217], %334 {strides = array<i32>} : memref<5x5x32xf32, #tpu.memory_space<vmem>>, vector<1x1x32xf32>,
    %336 = vector.extract_strided_slice %327 {offsets = [0, 64], sizes = [1, 32], strides = [1, 1]} : vector<4x128xf32> to vector<1x32xf32>
    %337 = vector.shape_cast %336 : vector<1x32xf32> to vector<1x1x32xf32>
    %c1_218 = arith.constant 1 : index
    %c0_219 = arith.constant 0 : index
    %c0_220 = arith.constant 0 : index
    %338 = vector.load %arg24[%c1_218, %c0_219, %c0_220] : memref<5x5x32xf32, #tpu.memory_space<vmem>>, vector<1x1x32xf32>
    tpu.vector_store %arg24[%c1_218, %c0_219, %c0_220], %337 {strides = array<i32>} : memref<5x5x32xf32, #tpu.memory_space<vmem>>, vector<1x1x32xf32>,
    %339 = vector.extract_strided_slice %327 {offsets = [0, 96], sizes = [1, 32], strides = [1, 1]} : vector<4x128xf32> to vector<1x32xf32>
    %340 = vector.shape_cast %339 : vector<1x32xf32> to vector<1x1x32xf32>
    %c1_221 = arith.constant 1 : index
    %c1_222 = arith.constant 1 : index
    %c0_223 = arith.constant 0 : index
    %341 = vector.load %arg24[%c1_221, %c1_222, %c0_223] : memref<5x5x32xf32, #tpu.memory_space<vmem>>, vector<1x1x32xf32>
    tpu.vector_store %arg24[%c1_221, %c1_222, %c0_223], %340 {strides = array<i32>} : memref<5x5x32xf32, #tpu.memory_space<vmem>>, vector<1x1x32xf32>,
    %342 = vector.extract_strided_slice %327 {offsets = [1, 0], sizes = [1, 32], strides = [1, 1]} : vector<4x128xf32> to vector<1x32xf32>
    %343 = vector.shape_cast %342 : vector<1x32xf32> to vector<1x1x32xf32>
    %c0_224 = arith.constant 0 : index
    %c2_225 = arith.constant 2 : index
    %c0_226 = arith.constant 0 : index
    %344 = vector.load %arg24[%c0_224, %c2_225, %c0_226] : memref<5x5x32xf32, #tpu.memory_space<vmem>>, vector<1x1x32xf32>
    tpu.vector_store %arg24[%c0_224, %c2_225, %c0_226], %343 {strides = array<i32>} : memref<5x5x32xf32, #tpu.memory_space<vmem>>, vector<1x1x32xf32>,
    %345 = vector.extract_strided_slice %327 {offsets = [1, 32], sizes = [1, 32], strides = [1, 1]} : vector<4x128xf32> to vector<1x32xf32>
    %346 = vector.shape_cast %345 : vector<1x32xf32> to vector<1x1x32xf32>
    %c0_227 = arith.constant 0 : index
    %c3 = arith.constant 3 : index
    %c0_228 = arith.constant 0 : index
    %347 = vector.load %arg24[%c0_227, %c3, %c0_228] : memref<5x5x32xf32, #tpu.memory_space<vmem>>, vector<1x1x32xf32>
    tpu.vector_store %arg24[%c0_227, %c3, %c0_228], %346 {strides = array<i32>} : memref<5x5x32xf32, #tpu.memory_space<vmem>>, vector<1x1x32xf32>,
    %348 = vector.extract_strided_slice %327 {offsets = [1, 64], sizes = [1, 32], strides = [1, 1]} : vector<4x128xf32> to vector<1x32xf32>
    %349 = vector.shape_cast %348 : vector<1x32xf32> to vector<1x1x32xf32>
    %c1_229 = arith.constant 1 : index
    %c2_230 = arith.constant 2 : index
    %c0_231 = arith.constant 0 : index
    %350 = vector.load %arg24[%c1_229, %c2_230, %c0_231] : memref<5x5x32xf32, #tpu.memory_space<vmem>>, vector<1x1x32xf32>
    tpu.vector_store %arg24[%c1_229, %c2_230, %c0_231], %349 {strides = array<i32>} : memref<5x5x32xf32, #tpu.memory_space<vmem>>, vector<1x1x32xf32>,
    %351 = vector.extract_strided_slice %327 {offsets = [1, 96], sizes = [1, 32], strides = [1, 1]} : vector<4x128xf32> to vector<1x32xf32>
    %352 = vector.shape_cast %351 : vector<1x32xf32> to vector<1x1x32xf32>
    %c1_232 = arith.constant 1 : index
    %c3_233 = arith.constant 3 : index
    %c0_234 = arith.constant 0 : index
    %353 = vector.load %arg24[%c1_232, %c3_233, %c0_234] : memref<5x5x32xf32, #tpu.memory_space<vmem>>, vector<1x1x32xf32>
    tpu.vector_store %arg24[%c1_232, %c3_233, %c0_234], %352 {strides = array<i32>} : memref<5x5x32xf32, #tpu.memory_space<vmem>>, vector<1x1x32xf32>,
    %354 = vector.extract_strided_slice %327 {offsets = [2, 0], sizes = [1, 32], strides = [1, 1]} : vector<4x128xf32> to vector<1x32xf32>
    %355 = vector.shape_cast %354 : vector<1x32xf32> to vector<1x1x32xf32>
    %c2_235 = arith.constant 2 : index
    %c0_236 = arith.constant 0 : index
    %c0_237 = arith.constant 0 : index
    %356 = vector.load %arg24[%c2_235, %c0_236, %c0_237] : memref<5x5x32xf32, #tpu.memory_space<vmem>>, vector<1x1x32xf32>
    tpu.vector_store %arg24[%c2_235, %c0_236, %c0_237], %355 {strides = array<i32>} : memref<5x5x32xf32, #tpu.memory_space<vmem>>, vector<1x1x32xf32>,
    %357 = vector.extract_strided_slice %327 {offsets = [2, 32], sizes = [1, 32], strides = [1, 1]} : vector<4x128xf32> to vector<1x32xf32>
    %358 = vector.shape_cast %357 : vector<1x32xf32> to vector<1x1x32xf32>
    %c2_238 = arith.constant 2 : index
    %c1_239 = arith.constant 1 : index
    %c0_240 = arith.constant 0 : index
    %359 = vector.load %arg24[%c2_238, %c1_239, %c0_240] : memref<5x5x32xf32, #tpu.memory_space<vmem>>, vector<1x1x32xf32>
    tpu.vector_store %arg24[%c2_238, %c1_239, %c0_240], %358 {strides = array<i32>} : memref<5x5x32xf32, #tpu.memory_space<vmem>>, vector<1x1x32xf32>,
    %360 = vector.extract_strided_slice %327 {offsets = [2, 64], sizes = [1, 32], strides = [1, 1]} : vector<4x128xf32> to vector<1x32xf32>
    %361 = vector.shape_cast %360 : vector<1x32xf32> to vector<1x1x32xf32>
    %c3_241 = arith.constant 3 : index
    %c0_242 = arith.constant 0 : index
    %c0_243 = arith.constant 0 : index
    %362 = vector.load %arg24[%c3_241, %c0_242, %c0_243] : memref<5x5x32xf32, #tpu.memory_space<vmem>>, vector<1x1x32xf32>
    tpu.vector_store %arg24[%c3_241, %c0_242, %c0_243], %361 {strides = array<i32>} : memref<5x5x32xf32, #tpu.memory_space<vmem>>, vector<1x1x32xf32>,
    %363 = vector.extract_strided_slice %327 {offsets = [2, 96], sizes = [1, 32], strides = [1, 1]} : vector<4x128xf32> to vector<1x32xf32>
    %364 = vector.shape_cast %363 : vector<1x32xf32> to vector<1x1x32xf32>
    %c3_244 = arith.constant 3 : index
    %c1_245 = arith.constant 1 : index
    %c0_246 = arith.constant 0 : index
    %365 = vector.load %arg24[%c3_244, %c1_245, %c0_246] : memref<5x5x32xf32, #tpu.memory_space<vmem>>, vector<1x1x32xf32>
    tpu.vector_store %arg24[%c3_244, %c1_245, %c0_246], %364 {strides = array<i32>} : memref<5x5x32xf32, #tpu.memory_space<vmem>>, vector<1x1x32xf32>,
    %366 = vector.extract_strided_slice %327 {offsets = [3, 0], sizes = [1, 32], strides = [1, 1]} : vector<4x128xf32> to vector<1x32xf32>
    %367 = vector.shape_cast %366 : vector<1x32xf32> to vector<1x1x32xf32>
    %c2_247 = arith.constant 2 : index
    %c2_248 = arith.constant 2 : index
    %c0_249 = arith.constant 0 : index
    %368 = vector.load %arg24[%c2_247, %c2_248, %c0_249] : memref<5x5x32xf32, #tpu.memory_space<vmem>>, vector<1x1x32xf32>
    tpu.vector_store %arg24[%c2_247, %c2_248, %c0_249], %367 {strides = array<i32>} : memref<5x5x32xf32, #tpu.memory_space<vmem>>, vector<1x1x32xf32>,
    %369 = vector.extract_strided_slice %327 {offsets = [3, 32], sizes = [1, 32], strides = [1, 1]} : vector<4x128xf32> to vector<1x32xf32>
    %370 = vector.shape_cast %369 : vector<1x32xf32> to vector<1x1x32xf32>
    %c2_250 = arith.constant 2 : index
    %c3_251 = arith.constant 3 : index
    %c0_252 = arith.constant 0 : index
    %371 = vector.load %arg24[%c2_250, %c3_251, %c0_252] : memref<5x5x32xf32, #tpu.memory_space<vmem>>, vector<1x1x32xf32>
    tpu.vector_store %arg24[%c2_250, %c3_251, %c0_252], %370 {strides = array<i32>} : memref<5x5x32xf32, #tpu.memory_space<vmem>>, vector<1x1x32xf32>,
    %372 = vector.extract_strided_slice %327 {offsets = [3, 64], sizes = [1, 32], strides = [1, 1]} : vector<4x128xf32> to vector<1x32xf32>
    %373 = vector.shape_cast %372 : vector<1x32xf32> to vector<1x1x32xf32>
    %c3_253 = arith.constant 3 : index
    %c2_254 = arith.constant 2 : index
    %c0_255 = arith.constant 0 : index
    %374 = vector.load %arg24[%c3_253, %c2_254, %c0_255] : memref<5x5x32xf32, #tpu.memory_space<vmem>>, vector<1x1x32xf32>
    tpu.vector_store %arg24[%c3_253, %c2_254, %c0_255], %373 {strides = array<i32>} : memref<5x5x32xf32, #tpu.memory_space<vmem>>, vector<1x1x32xf32>,
    %375 = vector.extract_strided_slice %327 {offsets = [3, 96], sizes = [1, 32], strides = [1, 1]} : vector<4x128xf32> to vector<1x32xf32>
    %376 = vector.shape_cast %375 : vector<1x32xf32> to vector<1x1x32xf32>
    %c3_256 = arith.constant 3 : index
    %c3_257 = arith.constant 3 : index
    %c0_258 = arith.constant 0 : index
    %377 = vector.load %arg24[%c3_256, %c3_257, %c0_258] : memref<5x5x32xf32, #tpu.memory_space<vmem>>, vector<1x1x32xf32>
    tpu.vector_store %arg24[%c3_256, %c3_257, %c0_258], %376 {strides = array<i32>} : memref<5x5x32xf32, #tpu.memory_space<vmem>>, vector<1x1x32xf32>,
    %c0_259 = arith.constant 0 : index
    %c0_260 = arith.constant 0 : index
    %c0_261 = arith.constant 0 : index
    %378 = vector.load %arg24[%c0_259, %c0_260, %c0_261] : memref<5x5x32xf32, #tpu.memory_space<vmem>>, vector<4x4x32xf32>
    %379 = vector.shape_cast %378 : vector<4x4x32xf32> to vector<16x32xf32>
    %c0_262 = arith.constant 0 : index
    %c1_263 = arith.constant 1 : index
    %c0_264 = arith.constant 0 : index
    %380 = vector.load %arg24[%c0_262, %c1_263, %c0_264] : memref<5x5x32xf32, #tpu.memory_space<vmem>>, vector<4x4x32xf32>
    %381 = vector.shape_cast %380 : vector<4x4x32xf32> to vector<16x32xf32>
    %c1_265 = arith.constant 1 : index
    %c0_266 = arith.constant 0 : index
    %c0_267 = arith.constant 0 : index
    %382 = vector.load %arg24[%c1_265, %c0_266, %c0_267] : memref<5x5x32xf32, #tpu.memory_space<vmem>>, vector<4x4x32xf32>
    %383 = vector.shape_cast %382 : vector<4x4x32xf32> to vector<16x32xf32>
    %c1_268 = arith.constant 1 : index
    %c1_269 = arith.constant 1 : index
    %c0_270 = arith.constant 0 : index
    %384 = vector.load %arg24[%c1_268, %c1_269, %c0_270] : memref<5x5x32xf32, #tpu.memory_space<vmem>>, vector<4x4x32xf32>
    %385 = vector.shape_cast %384 : vector<4x4x32xf32> to vector<16x32xf32>
    %386 = tpu.concatenate %379, %381, %383, %385 in 1 : vector<16x32xf32>, vector<16x32xf32>, vector<16x32xf32>, vector<16x32xf32> -> vector<16x128xf32>
    %387 = arith.truncf %386 : vector<16x128xf32> to vector<16x128xbf16>
    %c0_271 = arith.constant 0 : index
    %c0_272 = arith.constant 0 : index
    %388 = vector.load %arg11[%c0_271, %c0_272] : memref<128x128xbf16, #tpu.memory_space<vmem>>, vector<128x128xbf16>
    %cst_273 = arith.constant dense<0.000000e+00> : vector<16x128xf32>
    %389 = tpu.matmul %387, %388, %cst_273 {dimension_numbers = #tpu.dot_dimension_numbers<[1], [0], [0], [1], [0, 0, 1, 1], [], []>} : vector<16x128xbf16>, vector<128x128xbf16>, vector<16x128xf32> -> vector<16x128xf32>
    %c0_274 = arith.constant 0 : index
    %c0_275 = arith.constant 0 : index
    %390 = vector.load %arg12[%c0_274, %c0_275] : memref<1x128xf32, #tpu.memory_space<vmem>>, vector<1x128xf32>
    %391 = vector.broadcast %390 : vector<1x128xf32> to vector<16x128xf32>
    %392 = arith.mulf %389, %391 : vector<16x128xf32>
    %c0_276 = arith.constant 0 : index
    %c0_277 = arith.constant 0 : index
    %393 = vector.load %arg13[%c0_276, %c0_277] : memref<1x128xf32, #tpu.memory_space<vmem>>, vector<1x128xf32>
    %394 = vector.broadcast %393 : vector<1x128xf32> to vector<16x128xf32>
    %395 = arith.addf %392, %394 : vector<16x128xf32>
    %cst_278 = arith.constant 5.000000e-01 : f32
    %396 = vector.broadcast %cst_278 : f32 to vector<16x128xf32>
    %397 = arith.mulf %396, %395 : vector<16x128xf32>
    %cst_279 = arith.constant 0.707106769 : f32
    %398 = vector.broadcast %cst_279 : f32 to vector<16x128xf32>
    %399 = arith.mulf %395, %398 : vector<16x128xf32>
    %400 = math.absf %399 : vector<16x128xf32>
    %cst_280 = arith.constant 0.327591091 : f32
    %401 = vector.broadcast %cst_280 : f32 to vector<16x128xf32>
    %402 = arith.mulf %401, %400 : vector<16x128xf32>
    %cst_281 = arith.constant 1.000000e+00 : f32
    %403 = vector.broadcast %cst_281 : f32 to vector<16x128xf32>
    %404 = arith.addf %403, %402 : vector<16x128xf32>
    %cst_282 = arith.constant 1.000000e+00 : f32
    %405 = vector.broadcast %cst_282 : f32 to vector<16x128xf32>
    %406 = arith.divf %405, %404 : vector<16x128xf32>
    %cst_283 = arith.constant 1.06140542 : f32
    %407 = vector.broadcast %cst_283 : f32 to vector<16x128xf32>
    %408 = arith.mulf %407, %406 : vector<16x128xf32>
    %cst_284 = arith.constant -1.45315206 : f32
    %409 = vector.broadcast %cst_284 : f32 to vector<16x128xf32>
    %410 = arith.addf %408, %409 : vector<16x128xf32>
    %411 = arith.mulf %410, %406 : vector<16x128xf32>
    %cst_285 = arith.constant 1.42141378 : f32
    %412 = vector.broadcast %cst_285 : f32 to vector<16x128xf32>
    %413 = arith.addf %411, %412 : vector<16x128xf32>
    %414 = arith.mulf %413, %406 : vector<16x128xf32>
    %cst_286 = arith.constant -0.284496725 : f32
    %415 = vector.broadcast %cst_286 : f32 to vector<16x128xf32>
    %416 = arith.addf %414, %415 : vector<16x128xf32>
    %417 = arith.mulf %416, %406 : vector<16x128xf32>
    %cst_287 = arith.constant 0.254829586 : f32
    %418 = vector.broadcast %cst_287 : f32 to vector<16x128xf32>
    %419 = arith.addf %417, %418 : vector<16x128xf32>
    %420 = arith.mulf %419, %406 : vector<16x128xf32>
    %cst_288 = arith.constant 0.000000e+00 : f32
    %421 = vector.broadcast %cst_288 : f32 to vector<16x128xf32>
    %422 = arith.subf %421, %400 : vector<16x128xf32>
    %423 = arith.mulf %422, %400 : vector<16x128xf32>
    %424 = math.exp %423 : vector<16x128xf32>
    %425 = arith.mulf %420, %424 : vector<16x128xf32>
    %cst_289 = arith.constant 1.000000e+00 : f32
    %426 = vector.broadcast %cst_289 : f32 to vector<16x128xf32>
    %427 = arith.subf %426, %425 : vector<16x128xf32>
    %cst_290 = arith.constant 0.000000e+00 : f32
    %428 = vector.broadcast %cst_290 : f32 to vector<16x128xf32>
    %429 = arith.cmpf olt, %399, %428 : vector<16x128xf32>
    %cst_291 = arith.constant 0.000000e+00 : f32
    %430 = vector.broadcast %cst_291 : f32 to vector<16x128xf32>
    %431 = arith.subf %430, %427 : vector<16x128xf32>
    %432 = arith.select %429, %431, %427 : vector<16x128xi1>, vector<16x128xf32>
    %cst_292 = arith.constant 1.000000e+00 : f32
    %433 = vector.broadcast %cst_292 : f32 to vector<16x128xf32>
    %434 = arith.addf %433, %432 : vector<16x128xf32>
    %435 = arith.mulf %397, %434 : vector<16x128xf32>
    %cst_293 = arith.constant 0.000000e+00 : f32
    %436 = vector.broadcast %cst_293 : f32 to vector<9x9x32xf32>
    %c0_294 = arith.constant 0 : index
    %c0_295 = arith.constant 0 : index
    %c0_296 = arith.constant 0 : index
    %437 = vector.load %arg25[%c0_294, %c0_295, %c0_296] : memref<9x9x32xf32, #tpu.memory_space<vmem>>, vector<9x9x32xf32>
    tpu.vector_store %arg25[%c0_294, %c0_295, %c0_296], %436 {strides = array<i32>} : memref<9x9x32xf32, #tpu.memory_space<vmem>>, vector<9x9x32xf32>,
    %438 = vector.extract_strided_slice %435 {offsets = [0, 0], sizes = [1, 32], strides = [1, 1]} : vector<16x128xf32> to vector<1x32xf32>
    %439 = vector.shape_cast %438 : vector<1x32xf32> to vector<1x1x32xf32>
    %c0_297 = arith.constant 0 : index
    %c0_298 = arith.constant 0 : index
    %c0_299 = arith.constant 0 : index
    %440 = vector.load %arg25[%c0_297, %c0_298, %c0_299] : memref<9x9x32xf32, #tpu.memory_space<vmem>>, vector<1x1x32xf32>
    tpu.vector_store %arg25[%c0_297, %c0_298, %c0_299], %439 {strides = array<i32>} : memref<9x9x32xf32, #tpu.memory_space<vmem>>, vector<1x1x32xf32>,
    %441 = vector.extract_strided_slice %435 {offsets = [0, 32], sizes = [1, 32], strides = [1, 1]} : vector<16x128xf32> to vector<1x32xf32>
    %442 = vector.shape_cast %441 : vector<1x32xf32> to vector<1x1x32xf32>
    %c0_300 = arith.constant 0 : index
    %c1_301 = arith.constant 1 : index
    %c0_302 = arith.constant 0 : index
    %443 = vector.load %arg25[%c0_300, %c1_301, %c0_302] : memref<9x9x32xf32, #tpu.memory_space<vmem>>, vector<1x1x32xf32>
    tpu.vector_store %arg25[%c0_300, %c1_301, %c0_302], %442 {strides = array<i32>} : memref<9x9x32xf32, #tpu.memory_space<vmem>>, vector<1x1x32xf32>,
    %444 = vector.extract_strided_slice %435 {offsets = [0, 64], sizes = [1, 32], strides = [1, 1]} : vector<16x128xf32> to vector<1x32xf32>
    %445 = vector.shape_cast %444 : vector<1x32xf32> to vector<1x1x32xf32>
    %c1_303 = arith.constant 1 : index
    %c0_304 = arith.constant 0 : index
    %c0_305 = arith.constant 0 : index
    %446 = vector.load %arg25[%c1_303, %c0_304, %c0_305] : memref<9x9x32xf32, #tpu.memory_space<vmem>>, vector<1x1x32xf32>
    tpu.vector_store %arg25[%c1_303, %c0_304, %c0_305], %445 {strides = array<i32>} : memref<9x9x32xf32, #tpu.memory_space<vmem>>, vector<1x1x32xf32>,
    %447 = vector.extract_strided_slice %435 {offsets = [0, 96], sizes = [1, 32], strides = [1, 1]} : vector<16x128xf32> to vector<1x32xf32>
    %448 = vector.shape_cast %447 : vector<1x32xf32> to vector<1x1x32xf32>
    %c1_306 = arith.constant 1 : index
    %c1_307 = arith.constant 1 : index
    %c0_308 = arith.constant 0 : index
    %449 = vector.load %arg25[%c1_306, %c1_307, %c0_308] : memref<9x9x32xf32, #tpu.memory_space<vmem>>, vector<1x1x32xf32>
    tpu.vector_store %arg25[%c1_306, %c1_307, %c0_308], %448 {strides = array<i32>} : memref<9x9x32xf32, #tpu.memory_space<vmem>>, vector<1x1x32xf32>,
    %450 = vector.extract_strided_slice %435 {offsets = [1, 0], sizes = [1, 32], strides = [1, 1]} : vector<16x128xf32> to vector<1x32xf32>
    %451 = vector.shape_cast %450 : vector<1x32xf32> to vector<1x1x32xf32>
    %c0_309 = arith.constant 0 : index
    %c2_310 = arith.constant 2 : index
    %c0_311 = arith.constant 0 : index
    %452 = vector.load %arg25[%c0_309, %c2_310, %c0_311] : memref<9x9x32xf32, #tpu.memory_space<vmem>>, vector<1x1x32xf32>
    tpu.vector_store %arg25[%c0_309, %c2_310, %c0_311], %451 {strides = array<i32>} : memref<9x9x32xf32, #tpu.memory_space<vmem>>, vector<1x1x32xf32>,
    %453 = vector.extract_strided_slice %435 {offsets = [1, 32], sizes = [1, 32], strides = [1, 1]} : vector<16x128xf32> to vector<1x32xf32>
    %454 = vector.shape_cast %453 : vector<1x32xf32> to vector<1x1x32xf32>
    %c0_312 = arith.constant 0 : index
    %c3_313 = arith.constant 3 : index
    %c0_314 = arith.constant 0 : index
    %455 = vector.load %arg25[%c0_312, %c3_313, %c0_314] : memref<9x9x32xf32, #tpu.memory_space<vmem>>, vector<1x1x32xf32>
    tpu.vector_store %arg25[%c0_312, %c3_313, %c0_314], %454 {strides = array<i32>} : memref<9x9x32xf32, #tpu.memory_space<vmem>>, vector<1x1x32xf32>,
    %456 = vector.extract_strided_slice %435 {offsets = [1, 64], sizes = [1, 32], strides = [1, 1]} : vector<16x128xf32> to vector<1x32xf32>
    %457 = vector.shape_cast %456 : vector<1x32xf32> to vector<1x1x32xf32>
    %c1_315 = arith.constant 1 : index
    %c2_316 = arith.constant 2 : index
    %c0_317 = arith.constant 0 : index
    %458 = vector.load %arg25[%c1_315, %c2_316, %c0_317] : memref<9x9x32xf32, #tpu.memory_space<vmem>>, vector<1x1x32xf32>
    tpu.vector_store %arg25[%c1_315, %c2_316, %c0_317], %457 {strides = array<i32>} : memref<9x9x32xf32, #tpu.memory_space<vmem>>, vector<1x1x32xf32>,
    %459 = vector.extract_strided_slice %435 {offsets = [1, 96], sizes = [1, 32], strides = [1, 1]} : vector<16x128xf32> to vector<1x32xf32>
    %460 = vector.shape_cast %459 : vector<1x32xf32> to vector<1x1x32xf32>
    %c1_318 = arith.constant 1 : index
    %c3_319 = arith.constant 3 : index
    %c0_320 = arith.constant 0 : index
    %461 = vector.load %arg25[%c1_318, %c3_319, %c0_320] : memref<9x9x32xf32, #tpu.memory_space<vmem>>, vector<1x1x32xf32>
    tpu.vector_store %arg25[%c1_318, %c3_319, %c0_320], %460 {strides = array<i32>} : memref<9x9x32xf32, #tpu.memory_space<vmem>>, vector<1x1x32xf32>,
    %462 = vector.extract_strided_slice %435 {offsets = [2, 0], sizes = [1, 32], strides = [1, 1]} : vector<16x128xf32> to vector<1x32xf32>
    %463 = vector.shape_cast %462 : vector<1x32xf32> to vector<1x1x32xf32>
    %c0_321 = arith.constant 0 : index
    %c4 = arith.constant 4 : index
    %c0_322 = arith.constant 0 : index
    %464 = vector.load %arg25[%c0_321, %c4, %c0_322] : memref<9x9x32xf32, #tpu.memory_space<vmem>>, vector<1x1x32xf32>
    tpu.vector_store %arg25[%c0_321, %c4, %c0_322], %463 {strides = array<i32>} : memref<9x9x32xf32, #tpu.memory_space<vmem>>, vector<1x1x32xf32>,
    %465 = vector.extract_strided_slice %435 {offsets = [2, 32], sizes = [1, 32], strides = [1, 1]} : vector<16x128xf32> to vector<1x32xf32>
    %466 = vector.shape_cast %465 : vector<1x32xf32> to vector<1x1x32xf32>
    %c0_323 = arith.constant 0 : index
    %c5 = arith.constant 5 : index
    %c0_324 = arith.constant 0 : index
    %467 = vector.load %arg25[%c0_323, %c5, %c0_324] : memref<9x9x32xf32, #tpu.memory_space<vmem>>, vector<1x1x32xf32>
    tpu.vector_store %arg25[%c0_323, %c5, %c0_324], %466 {strides = array<i32>} : memref<9x9x32xf32, #tpu.memory_space<vmem>>, vector<1x1x32xf32>,
    %468 = vector.extract_strided_slice %435 {offsets = [2, 64], sizes = [1, 32], strides = [1, 1]} : vector<16x128xf32> to vector<1x32xf32>
    %469 = vector.shape_cast %468 : vector<1x32xf32> to vector<1x1x32xf32>
    %c1_325 = arith.constant 1 : index
    %c4_326 = arith.constant 4 : index
    %c0_327 = arith.constant 0 : index
    %470 = vector.load %arg25[%c1_325, %c4_326, %c0_327] : memref<9x9x32xf32, #tpu.memory_space<vmem>>, vector<1x1x32xf32>
    tpu.vector_store %arg25[%c1_325, %c4_326, %c0_327], %469 {strides = array<i32>} : memref<9x9x32xf32, #tpu.memory_space<vmem>>, vector<1x1x32xf32>,
    %471 = vector.extract_strided_slice %435 {offsets = [2, 96], sizes = [1, 32], strides = [1, 1]} : vector<16x128xf32> to vector<1x32xf32>
    %472 = vector.shape_cast %471 : vector<1x32xf32> to vector<1x1x32xf32>
    %c1_328 = arith.constant 1 : index
    %c5_329 = arith.constant 5 : index
    %c0_330 = arith.constant 0 : index
    %473 = vector.load %arg25[%c1_328, %c5_329, %c0_330] : memref<9x9x32xf32, #tpu.memory_space<vmem>>, vector<1x1x32xf32>
    tpu.vector_store %arg25[%c1_328, %c5_329, %c0_330], %472 {strides = array<i32>} : memref<9x9x32xf32, #tpu.memory_space<vmem>>, vector<1x1x32xf32>,
    %474 = vector.extract_strided_slice %435 {offsets = [3, 0], sizes = [1, 32], strides = [1, 1]} : vector<16x128xf32> to vector<1x32xf32>
    %475 = vector.shape_cast %474 : vector<1x32xf32> to vector<1x1x32xf32>
    %c0_331 = arith.constant 0 : index
    %c6 = arith.constant 6 : index
    %c0_332 = arith.constant 0 : index
    %476 = vector.load %arg25[%c0_331, %c6, %c0_332] : memref<9x9x32xf32, #tpu.memory_space<vmem>>, vector<1x1x32xf32>
    tpu.vector_store %arg25[%c0_331, %c6, %c0_332], %475 {strides = array<i32>} : memref<9x9x32xf32, #tpu.memory_space<vmem>>, vector<1x1x32xf32>,
    %477 = vector.extract_strided_slice %435 {offsets = [3, 32], sizes = [1, 32], strides = [1, 1]} : vector<16x128xf32> to vector<1x32xf32>
    %478 = vector.shape_cast %477 : vector<1x32xf32> to vector<1x1x32xf32>
    %c0_333 = arith.constant 0 : index
    %c7 = arith.constant 7 : index
    %c0_334 = arith.constant 0 : index
    %479 = vector.load %arg25[%c0_333, %c7, %c0_334] : memref<9x9x32xf32, #tpu.memory_space<vmem>>, vector<1x1x32xf32>
    tpu.vector_store %arg25[%c0_333, %c7, %c0_334], %478 {strides = array<i32>} : memref<9x9x32xf32, #tpu.memory_space<vmem>>, vector<1x1x32xf32>,
    %480 = vector.extract_strided_slice %435 {offsets = [3, 64], sizes = [1, 32], strides = [1, 1]} : vector<16x128xf32> to vector<1x32xf32>
    %481 = vector.shape_cast %480 : vector<1x32xf32> to vector<1x1x32xf32>
    %c1_335 = arith.constant 1 : index
    %c6_336 = arith.constant 6 : index
    %c0_337 = arith.constant 0 : index
    %482 = vector.load %arg25[%c1_335, %c6_336, %c0_337] : memref<9x9x32xf32, #tpu.memory_space<vmem>>, vector<1x1x32xf32>
    tpu.vector_store %arg25[%c1_335, %c6_336, %c0_337], %481 {strides = array<i32>} : memref<9x9x32xf32, #tpu.memory_space<vmem>>, vector<1x1x32xf32>,
    %483 = vector.extract_strided_slice %435 {offsets = [3, 96], sizes = [1, 32], strides = [1, 1]} : vector<16x128xf32> to vector<1x32xf32>
    %484 = vector.shape_cast %483 : vector<1x32xf32> to vector<1x1x32xf32>
    %c1_338 = arith.constant 1 : index
    %c7_339 = arith.constant 7 : index
    %c0_340 = arith.constant 0 : index
    %485 = vector.load %arg25[%c1_338, %c7_339, %c0_340] : memref<9x9x32xf32, #tpu.memory_space<vmem>>, vector<1x1x32xf32>
    tpu.vector_store %arg25[%c1_338, %c7_339, %c0_340], %484 {strides = array<i32>} : memref<9x9x32xf32, #tpu.memory_space<vmem>>, vector<1x1x32xf32>,
    %486 = vector.extract_strided_slice %435 {offsets = [4, 0], sizes = [1, 32], strides = [1, 1]} : vector<16x128xf32> to vector<1x32xf32>
    %487 = vector.shape_cast %486 : vector<1x32xf32> to vector<1x1x32xf32>
    %c2_341 = arith.constant 2 : index
    %c0_342 = arith.constant 0 : index
    %c0_343 = arith.constant 0 : index
    %488 = vector.load %arg25[%c2_341, %c0_342, %c0_343] : memref<9x9x32xf32, #tpu.memory_space<vmem>>, vector<1x1x32xf32>
    tpu.vector_store %arg25[%c2_341, %c0_342, %c0_343], %487 {strides = array<i32>} : memref<9x9x32xf32, #tpu.memory_space<vmem>>, vector<1x1x32xf32>,
    %489 = vector.extract_strided_slice %435 {offsets = [4, 32], sizes = [1, 32], strides = [1, 1]} : vector<16x128xf32> to vector<1x32xf32>
    %490 = vector.shape_cast %489 : vector<1x32xf32> to vector<1x1x32xf32>
    %c2_344 = arith.constant 2 : index
    %c1_345 = arith.constant 1 : index
    %c0_346 = arith.constant 0 : index
    %491 = vector.load %arg25[%c2_344, %c1_345, %c0_346] : memref<9x9x32xf32, #tpu.memory_space<vmem>>, vector<1x1x32xf32>
    tpu.vector_store %arg25[%c2_344, %c1_345, %c0_346], %490 {strides = array<i32>} : memref<9x9x32xf32, #tpu.memory_space<vmem>>, vector<1x1x32xf32>,
    %492 = vector.extract_strided_slice %435 {offsets = [4, 64], sizes = [1, 32], strides = [1, 1]} : vector<16x128xf32> to vector<1x32xf32>
    %493 = vector.shape_cast %492 : vector<1x32xf32> to vector<1x1x32xf32>
    %c3_347 = arith.constant 3 : index
    %c0_348 = arith.constant 0 : index
    %c0_349 = arith.constant 0 : index
    %494 = vector.load %arg25[%c3_347, %c0_348, %c0_349] : memref<9x9x32xf32, #tpu.memory_space<vmem>>, vector<1x1x32xf32>
    tpu.vector_store %arg25[%c3_347, %c0_348, %c0_349], %493 {strides = array<i32>} : memref<9x9x32xf32, #tpu.memory_space<vmem>>, vector<1x1x32xf32>,
    %495 = vector.extract_strided_slice %435 {offsets = [4, 96], sizes = [1, 32], strides = [1, 1]} : vector<16x128xf32> to vector<1x32xf32>
    %496 = vector.shape_cast %495 : vector<1x32xf32> to vector<1x1x32xf32>
    %c3_350 = arith.constant 3 : index
    %c1_351 = arith.constant 1 : index
    %c0_352 = arith.constant 0 : index
    %497 = vector.load %arg25[%c3_350, %c1_351, %c0_352] : memref<9x9x32xf32, #tpu.memory_space<vmem>>, vector<1x1x32xf32>
    tpu.vector_store %arg25[%c3_350, %c1_351, %c0_352], %496 {strides = array<i32>} : memref<9x9x32xf32, #tpu.memory_space<vmem>>, vector<1x1x32xf32>,
    %498 = vector.extract_strided_slice %435 {offsets = [5, 0], sizes = [1, 32], strides = [1, 1]} : vector<16x128xf32> to vector<1x32xf32>
    %499 = vector.shape_cast %498 : vector<1x32xf32> to vector<1x1x32xf32>
    %c2_353 = arith.constant 2 : index
    %c2_354 = arith.constant 2 : index
    %c0_355 = arith.constant 0 : index
    %500 = vector.load %arg25[%c2_353, %c2_354, %c0_355] : memref<9x9x32xf32, #tpu.memory_space<vmem>>, vector<1x1x32xf32>
    tpu.vector_store %arg25[%c2_353, %c2_354, %c0_355], %499 {strides = array<i32>} : memref<9x9x32xf32, #tpu.memory_space<vmem>>, vector<1x1x32xf32>,
    %501 = vector.extract_strided_slice %435 {offsets = [5, 32], sizes = [1, 32], strides = [1, 1]} : vector<16x128xf32> to vector<1x32xf32>
    %502 = vector.shape_cast %501 : vector<1x32xf32> to vector<1x1x32xf32>
    %c2_356 = arith.constant 2 : index
    %c3_357 = arith.constant 3 : index
    %c0_358 = arith.constant 0 : index
    %503 = vector.load %arg25[%c2_356, %c3_357, %c0_358] : memref<9x9x32xf32, #tpu.memory_space<vmem>>, vector<1x1x32xf32>
    tpu.vector_store %arg25[%c2_356, %c3_357, %c0_358], %502 {strides = array<i32>} : memref<9x9x32xf32, #tpu.memory_space<vmem>>, vector<1x1x32xf32>,
    %504 = vector.extract_strided_slice %435 {offsets = [5, 64], sizes = [1, 32], strides = [1, 1]} : vector<16x128xf32> to vector<1x32xf32>
    %505 = vector.shape_cast %504 : vector<1x32xf32> to vector<1x1x32xf32>
    %c3_359 = arith.constant 3 : index
    %c2_360 = arith.constant 2 : index
    %c0_361 = arith.constant 0 : index
    %506 = vector.load %arg25[%c3_359, %c2_360, %c0_361] : memref<9x9x32xf32, #tpu.memory_space<vmem>>, vector<1x1x32xf32>
    tpu.vector_store %arg25[%c3_359, %c2_360, %c0_361], %505 {strides = array<i32>} : memref<9x9x32xf32, #tpu.memory_space<vmem>>, vector<1x1x32xf32>,
    %507 = vector.extract_strided_slice %435 {offsets = [5, 96], sizes = [1, 32], strides = [1, 1]} : vector<16x128xf32> to vector<1x32xf32>
    %508 = vector.shape_cast %507 : vector<1x32xf32> to vector<1x1x32xf32>
    %c3_362 = arith.constant 3 : index
    %c3_363 = arith.constant 3 : index
    %c0_364 = arith.constant 0 : index
    %509 = vector.load %arg25[%c3_362, %c3_363, %c0_364] : memref<9x9x32xf32, #tpu.memory_space<vmem>>, vector<1x1x32xf32>
    tpu.vector_store %arg25[%c3_362, %c3_363, %c0_364], %508 {strides = array<i32>} : memref<9x9x32xf32, #tpu.memory_space<vmem>>, vector<1x1x32xf32>,
    %510 = vector.extract_strided_slice %435 {offsets = [6, 0], sizes = [1, 32], strides = [1, 1]} : vector<16x128xf32> to vector<1x32xf32>
    %511 = vector.shape_cast %510 : vector<1x32xf32> to vector<1x1x32xf32>
    %c2_365 = arith.constant 2 : index
    %c4_366 = arith.constant 4 : index
    %c0_367 = arith.constant 0 : index
    %512 = vector.load %arg25[%c2_365, %c4_366, %c0_367] : memref<9x9x32xf32, #tpu.memory_space<vmem>>, vector<1x1x32xf32>
    tpu.vector_store %arg25[%c2_365, %c4_366, %c0_367], %511 {strides = array<i32>} : memref<9x9x32xf32, #tpu.memory_space<vmem>>, vector<1x1x32xf32>,
    %513 = vector.extract_strided_slice %435 {offsets = [6, 32], sizes = [1, 32], strides = [1, 1]} : vector<16x128xf32> to vector<1x32xf32>
    %514 = vector.shape_cast %513 : vector<1x32xf32> to vector<1x1x32xf32>
    %c2_368 = arith.constant 2 : index
    %c5_369 = arith.constant 5 : index
    %c0_370 = arith.constant 0 : index
    %515 = vector.load %arg25[%c2_368, %c5_369, %c0_370] : memref<9x9x32xf32, #tpu.memory_space<vmem>>, vector<1x1x32xf32>
    tpu.vector_store %arg25[%c2_368, %c5_369, %c0_370], %514 {strides = array<i32>} : memref<9x9x32xf32, #tpu.memory_space<vmem>>, vector<1x1x32xf32>,
    %516 = vector.extract_strided_slice %435 {offsets = [6, 64], sizes = [1, 32], strides = [1, 1]} : vector<16x128xf32> to vector<1x32xf32>
    %517 = vector.shape_cast %516 : vector<1x32xf32> to vector<1x1x32xf32>
    %c3_371 = arith.constant 3 : index
    %c4_372 = arith.constant 4 : index
    %c0_373 = arith.constant 0 : index
    %518 = vector.load %arg25[%c3_371, %c4_372, %c0_373] : memref<9x9x32xf32, #tpu.memory_space<vmem>>, vector<1x1x32xf32>
    tpu.vector_store %arg25[%c3_371, %c4_372, %c0_373], %517 {strides = array<i32>} : memref<9x9x32xf32, #tpu.memory_space<vmem>>, vector<1x1x32xf32>,
    %519 = vector.extract_strided_slice %435 {offsets = [6, 96], sizes = [1, 32], strides = [1, 1]} : vector<16x128xf32> to vector<1x32xf32>
    %520 = vector.shape_cast %519 : vector<1x32xf32> to vector<1x1x32xf32>
    %c3_374 = arith.constant 3 : index
    %c5_375 = arith.constant 5 : index
    %c0_376 = arith.constant 0 : index
    %521 = vector.load %arg25[%c3_374, %c5_375, %c0_376] : memref<9x9x32xf32, #tpu.memory_space<vmem>>, vector<1x1x32xf32>
    tpu.vector_store %arg25[%c3_374, %c5_375, %c0_376], %520 {strides = array<i32>} : memref<9x9x32xf32, #tpu.memory_space<vmem>>, vector<1x1x32xf32>,
    %522 = vector.extract_strided_slice %435 {offsets = [7, 0], sizes = [1, 32], strides = [1, 1]} : vector<16x128xf32> to vector<1x32xf32>
    %523 = vector.shape_cast %522 : vector<1x32xf32> to vector<1x1x32xf32>
    %c2_377 = arith.constant 2 : index
    %c6_378 = arith.constant 6 : index
    %c0_379 = arith.constant 0 : index
    %524 = vector.load %arg25[%c2_377, %c6_378, %c0_379] : memref<9x9x32xf32, #tpu.memory_space<vmem>>, vector<1x1x32xf32>
    tpu.vector_store %arg25[%c2_377, %c6_378, %c0_379], %523 {strides = array<i32>} : memref<9x9x32xf32, #tpu.memory_space<vmem>>, vector<1x1x32xf32>,
    %525 = vector.extract_strided_slice %435 {offsets = [7, 32], sizes = [1, 32], strides = [1, 1]} : vector<16x128xf32> to vector<1x32xf32>
    %526 = vector.shape_cast %525 : vector<1x32xf32> to vector<1x1x32xf32>
    %c2_380 = arith.constant 2 : index
    %c7_381 = arith.constant 7 : index
    %c0_382 = arith.constant 0 : index
    %527 = vector.load %arg25[%c2_380, %c7_381, %c0_382] : memref<9x9x32xf32, #tpu.memory_space<vmem>>, vector<1x1x32xf32>
    tpu.vector_store %arg25[%c2_380, %c7_381, %c0_382], %526 {strides = array<i32>} : memref<9x9x32xf32, #tpu.memory_space<vmem>>, vector<1x1x32xf32>,
    %528 = vector.extract_strided_slice %435 {offsets = [7, 64], sizes = [1, 32], strides = [1, 1]} : vector<16x128xf32> to vector<1x32xf32>
    %529 = vector.shape_cast %528 : vector<1x32xf32> to vector<1x1x32xf32>
    %c3_383 = arith.constant 3 : index
    %c6_384 = arith.constant 6 : index
    %c0_385 = arith.constant 0 : index
    %530 = vector.load %arg25[%c3_383, %c6_384, %c0_385] : memref<9x9x32xf32, #tpu.memory_space<vmem>>, vector<1x1x32xf32>
    tpu.vector_store %arg25[%c3_383, %c6_384, %c0_385], %529 {strides = array<i32>} : memref<9x9x32xf32, #tpu.memory_space<vmem>>, vector<1x1x32xf32>,
    %531 = vector.extract_strided_slice %435 {offsets = [7, 96], sizes = [1, 32], strides = [1, 1]} : vector<16x128xf32> to vector<1x32xf32>
    %532 = vector.shape_cast %531 : vector<1x32xf32> to vector<1x1x32xf32>
    %c3_386 = arith.constant 3 : index
    %c7_387 = arith.constant 7 : index
    %c0_388 = arith.constant 0 : index
    %533 = vector.load %arg25[%c3_386, %c7_387, %c0_388] : memref<9x9x32xf32, #tpu.memory_space<vmem>>, vector<1x1x32xf32>
    tpu.vector_store %arg25[%c3_386, %c7_387, %c0_388], %532 {strides = array<i32>} : memref<9x9x32xf32, #tpu.memory_space<vmem>>, vector<1x1x32xf32>,
    %534 = vector.extract_strided_slice %435 {offsets = [8, 0], sizes = [1, 32], strides = [1, 1]} : vector<16x128xf32> to vector<1x32xf32>
    %535 = vector.shape_cast %534 : vector<1x32xf32> to vector<1x1x32xf32>
    %c4_389 = arith.constant 4 : index
    %c0_390 = arith.constant 0 : index
    %c0_391 = arith.constant 0 : index
    %536 = vector.load %arg25[%c4_389, %c0_390, %c0_391] : memref<9x9x32xf32, #tpu.memory_space<vmem>>, vector<1x1x32xf32>
    tpu.vector_store %arg25[%c4_389, %c0_390, %c0_391], %535 {strides = array<i32>} : memref<9x9x32xf32, #tpu.memory_space<vmem>>, vector<1x1x32xf32>,
    %537 = vector.extract_strided_slice %435 {offsets = [8, 32], sizes = [1, 32], strides = [1, 1]} : vector<16x128xf32> to vector<1x32xf32>
    %538 = vector.shape_cast %537 : vector<1x32xf32> to vector<1x1x32xf32>
    %c4_392 = arith.constant 4 : index
    %c1_393 = arith.constant 1 : index
    %c0_394 = arith.constant 0 : index
    %539 = vector.load %arg25[%c4_392, %c1_393, %c0_394] : memref<9x9x32xf32, #tpu.memory_space<vmem>>, vector<1x1x32xf32>
    tpu.vector_store %arg25[%c4_392, %c1_393, %c0_394], %538 {strides = array<i32>} : memref<9x9x32xf32, #tpu.memory_space<vmem>>, vector<1x1x32xf32>,
    %540 = vector.extract_strided_slice %435 {offsets = [8, 64], sizes = [1, 32], strides = [1, 1]} : vector<16x128xf32> to vector<1x32xf32>
    %541 = vector.shape_cast %540 : vector<1x32xf32> to vector<1x1x32xf32>
    %c5_395 = arith.constant 5 : index
    %c0_396 = arith.constant 0 : index
    %c0_397 = arith.constant 0 : index
    %542 = vector.load %arg25[%c5_395, %c0_396, %c0_397] : memref<9x9x32xf32, #tpu.memory_space<vmem>>, vector<1x1x32xf32>
    tpu.vector_store %arg25[%c5_395, %c0_396, %c0_397], %541 {strides = array<i32>} : memref<9x9x32xf32, #tpu.memory_space<vmem>>, vector<1x1x32xf32>,
    %543 = vector.extract_strided_slice %435 {offsets = [8, 96], sizes = [1, 32], strides = [1, 1]} : vector<16x128xf32> to vector<1x32xf32>
    %544 = vector.shape_cast %543 : vector<1x32xf32> to vector<1x1x32xf32>
    %c5_398 = arith.constant 5 : index
    %c1_399 = arith.constant 1 : index
    %c0_400 = arith.constant 0 : index
    %545 = vector.load %arg25[%c5_398, %c1_399, %c0_400] : memref<9x9x32xf32, #tpu.memory_space<vmem>>, vector<1x1x32xf32>
    tpu.vector_store %arg25[%c5_398, %c1_399, %c0_400], %544 {strides = array<i32>} : memref<9x9x32xf32, #tpu.memory_space<vmem>>, vector<1x1x32xf32>,
    %546 = vector.extract_strided_slice %435 {offsets = [9, 0], sizes = [1, 32], strides = [1, 1]} : vector<16x128xf32> to vector<1x32xf32>
    %547 = vector.shape_cast %546 : vector<1x32xf32> to vector<1x1x32xf32>
    %c4_401 = arith.constant 4 : index
    %c2_402 = arith.constant 2 : index
    %c0_403 = arith.constant 0 : index
    %548 = vector.load %arg25[%c4_401, %c2_402, %c0_403] : memref<9x9x32xf32, #tpu.memory_space<vmem>>, vector<1x1x32xf32>
    tpu.vector_store %arg25[%c4_401, %c2_402, %c0_403], %547 {strides = array<i32>} : memref<9x9x32xf32, #tpu.memory_space<vmem>>, vector<1x1x32xf32>,
    %549 = vector.extract_strided_slice %435 {offsets = [9, 32], sizes = [1, 32], strides = [1, 1]} : vector<16x128xf32> to vector<1x32xf32>
    %550 = vector.shape_cast %549 : vector<1x32xf32> to vector<1x1x32xf32>
    %c4_404 = arith.constant 4 : index
    %c3_405 = arith.constant 3 : index
    %c0_406 = arith.constant 0 : index
    %551 = vector.load %arg25[%c4_404, %c3_405, %c0_406] : memref<9x9x32xf32, #tpu.memory_space<vmem>>, vector<1x1x32xf32>
    tpu.vector_store %arg25[%c4_404, %c3_405, %c0_406], %550 {strides = array<i32>} : memref<9x9x32xf32, #tpu.memory_space<vmem>>, vector<1x1x32xf32>,
    %552 = vector.extract_strided_slice %435 {offsets = [9, 64], sizes = [1, 32], strides = [1, 1]} : vector<16x128xf32> to vector<1x32xf32>
    %553 = vector.shape_cast %552 : vector<1x32xf32> to vector<1x1x32xf32>
    %c5_407 = arith.constant 5 : index
    %c2_408 = arith.constant 2 : index
    %c0_409 = arith.constant 0 : index
    %554 = vector.load %arg25[%c5_407, %c2_408, %c0_409] : memref<9x9x32xf32, #tpu.memory_space<vmem>>, vector<1x1x32xf32>
    tpu.vector_store %arg25[%c5_407, %c2_408, %c0_409], %553 {strides = array<i32>} : memref<9x9x32xf32, #tpu.memory_space<vmem>>, vector<1x1x32xf32>,
    %555 = vector.extract_strided_slice %435 {offsets = [9, 96], sizes = [1, 32], strides = [1, 1]} : vector<16x128xf32> to vector<1x32xf32>
    %556 = vector.shape_cast %555 : vector<1x32xf32> to vector<1x1x32xf32>
    %c5_410 = arith.constant 5 : index
    %c3_411 = arith.constant 3 : index
    %c0_412 = arith.constant 0 : index
    %557 = vector.load %arg25[%c5_410, %c3_411, %c0_412] : memref<9x9x32xf32, #tpu.memory_space<vmem>>, vector<1x1x32xf32>
    tpu.vector_store %arg25[%c5_410, %c3_411, %c0_412], %556 {strides = array<i32>} : memref<9x9x32xf32, #tpu.memory_space<vmem>>, vector<1x1x32xf32>,
    %558 = vector.extract_strided_slice %435 {offsets = [10, 0], sizes = [1, 32], strides = [1, 1]} : vector<16x128xf32> to vector<1x32xf32>
    %559 = vector.shape_cast %558 : vector<1x32xf32> to vector<1x1x32xf32>
    %c4_413 = arith.constant 4 : index
    %c4_414 = arith.constant 4 : index
    %c0_415 = arith.constant 0 : index
    %560 = vector.load %arg25[%c4_413, %c4_414, %c0_415] : memref<9x9x32xf32, #tpu.memory_space<vmem>>, vector<1x1x32xf32>
    tpu.vector_store %arg25[%c4_413, %c4_414, %c0_415], %559 {strides = array<i32>} : memref<9x9x32xf32, #tpu.memory_space<vmem>>, vector<1x1x32xf32>,
    %561 = vector.extract_strided_slice %435 {offsets = [10, 32], sizes = [1, 32], strides = [1, 1]} : vector<16x128xf32> to vector<1x32xf32>
    %562 = vector.shape_cast %561 : vector<1x32xf32> to vector<1x1x32xf32>
    %c4_416 = arith.constant 4 : index
    %c5_417 = arith.constant 5 : index
    %c0_418 = arith.constant 0 : index
    %563 = vector.load %arg25[%c4_416, %c5_417, %c0_418] : memref<9x9x32xf32, #tpu.memory_space<vmem>>, vector<1x1x32xf32>
    tpu.vector_store %arg25[%c4_416, %c5_417, %c0_418], %562 {strides = array<i32>} : memref<9x9x32xf32, #tpu.memory_space<vmem>>, vector<1x1x32xf32>,
    %564 = vector.extract_strided_slice %435 {offsets = [10, 64], sizes = [1, 32], strides = [1, 1]} : vector<16x128xf32> to vector<1x32xf32>
    %565 = vector.shape_cast %564 : vector<1x32xf32> to vector<1x1x32xf32>
    %c5_419 = arith.constant 5 : index
    %c4_420 = arith.constant 4 : index
    %c0_421 = arith.constant 0 : index
    %566 = vector.load %arg25[%c5_419, %c4_420, %c0_421] : memref<9x9x32xf32, #tpu.memory_space<vmem>>, vector<1x1x32xf32>
    tpu.vector_store %arg25[%c5_419, %c4_420, %c0_421], %565 {strides = array<i32>} : memref<9x9x32xf32, #tpu.memory_space<vmem>>, vector<1x1x32xf32>,
    %567 = vector.extract_strided_slice %435 {offsets = [10, 96], sizes = [1, 32], strides = [1, 1]} : vector<16x128xf32> to vector<1x32xf32>
    %568 = vector.shape_cast %567 : vector<1x32xf32> to vector<1x1x32xf32>
    %c5_422 = arith.constant 5 : index
    %c5_423 = arith.constant 5 : index
    %c0_424 = arith.constant 0 : index
    %569 = vector.load %arg25[%c5_422, %c5_423, %c0_424] : memref<9x9x32xf32, #tpu.memory_space<vmem>>, vector<1x1x32xf32>
    tpu.vector_store %arg25[%c5_422, %c5_423, %c0_424], %568 {strides = array<i32>} : memref<9x9x32xf32, #tpu.memory_space<vmem>>, vector<1x1x32xf32>,
    %570 = vector.extract_strided_slice %435 {offsets = [11, 0], sizes = [1, 32], strides = [1, 1]} : vector<16x128xf32> to vector<1x32xf32>
    %571 = vector.shape_cast %570 : vector<1x32xf32> to vector<1x1x32xf32>
    %c4_425 = arith.constant 4 : index
    %c6_426 = arith.constant 6 : index
    %c0_427 = arith.constant 0 : index
    %572 = vector.load %arg25[%c4_425, %c6_426, %c0_427] : memref<9x9x32xf32, #tpu.memory_space<vmem>>, vector<1x1x32xf32>
    tpu.vector_store %arg25[%c4_425, %c6_426, %c0_427], %571 {strides = array<i32>} : memref<9x9x32xf32, #tpu.memory_space<vmem>>, vector<1x1x32xf32>,
    %573 = vector.extract_strided_slice %435 {offsets = [11, 32], sizes = [1, 32], strides = [1, 1]} : vector<16x128xf32> to vector<1x32xf32>
    %574 = vector.shape_cast %573 : vector<1x32xf32> to vector<1x1x32xf32>
    %c4_428 = arith.constant 4 : index
    %c7_429 = arith.constant 7 : index
    %c0_430 = arith.constant 0 : index
    %575 = vector.load %arg25[%c4_428, %c7_429, %c0_430] : memref<9x9x32xf32, #tpu.memory_space<vmem>>, vector<1x1x32xf32>
    tpu.vector_store %arg25[%c4_428, %c7_429, %c0_430], %574 {strides = array<i32>} : memref<9x9x32xf32, #tpu.memory_space<vmem>>, vector<1x1x32xf32>,
    %576 = vector.extract_strided_slice %435 {offsets = [11, 64], sizes = [1, 32], strides = [1, 1]} : vector<16x128xf32> to vector<1x32xf32>
    %577 = vector.shape_cast %576 : vector<1x32xf32> to vector<1x1x32xf32>
    %c5_431 = arith.constant 5 : index
    %c6_432 = arith.constant 6 : index
    %c0_433 = arith.constant 0 : index
    %578 = vector.load %arg25[%c5_431, %c6_432, %c0_433] : memref<9x9x32xf32, #tpu.memory_space<vmem>>, vector<1x1x32xf32>
    tpu.vector_store %arg25[%c5_431, %c6_432, %c0_433], %577 {strides = array<i32>} : memref<9x9x32xf32, #tpu.memory_space<vmem>>, vector<1x1x32xf32>,
    %579 = vector.extract_strided_slice %435 {offsets = [11, 96], sizes = [1, 32], strides = [1, 1]} : vector<16x128xf32> to vector<1x32xf32>
    %580 = vector.shape_cast %579 : vector<1x32xf32> to vector<1x1x32xf32>
    %c5_434 = arith.constant 5 : index
    %c7_435 = arith.constant 7 : index
    %c0_436 = arith.constant 0 : index
    %581 = vector.load %arg25[%c5_434, %c7_435, %c0_436] : memref<9x9x32xf32, #tpu.memory_space<vmem>>, vector<1x1x32xf32>
    tpu.vector_store %arg25[%c5_434, %c7_435, %c0_436], %580 {strides = array<i32>} : memref<9x9x32xf32, #tpu.memory_space<vmem>>, vector<1x1x32xf32>,
    %582 = vector.extract_strided_slice %435 {offsets = [12, 0], sizes = [1, 32], strides = [1, 1]} : vector<16x128xf32> to vector<1x32xf32>
    %583 = vector.shape_cast %582 : vector<1x32xf32> to vector<1x1x32xf32>
    %c6_437 = arith.constant 6 : index
    %c0_438 = arith.constant 0 : index
    %c0_439 = arith.constant 0 : index
    %584 = vector.load %arg25[%c6_437, %c0_438, %c0_439] : memref<9x9x32xf32, #tpu.memory_space<vmem>>, vector<1x1x32xf32>
    tpu.vector_store %arg25[%c6_437, %c0_438, %c0_439], %583 {strides = array<i32>} : memref<9x9x32xf32, #tpu.memory_space<vmem>>, vector<1x1x32xf32>,
    %585 = vector.extract_strided_slice %435 {offsets = [12, 32], sizes = [1, 32], strides = [1, 1]} : vector<16x128xf32> to vector<1x32xf32>
    %586 = vector.shape_cast %585 : vector<1x32xf32> to vector<1x1x32xf32>
    %c6_440 = arith.constant 6 : index
    %c1_441 = arith.constant 1 : index
    %c0_442 = arith.constant 0 : index
    %587 = vector.load %arg25[%c6_440, %c1_441, %c0_442] : memref<9x9x32xf32, #tpu.memory_space<vmem>>, vector<1x1x32xf32>
    tpu.vector_store %arg25[%c6_440, %c1_441, %c0_442], %586 {strides = array<i32>} : memref<9x9x32xf32, #tpu.memory_space<vmem>>, vector<1x1x32xf32>,
    %588 = vector.extract_strided_slice %435 {offsets = [12, 64], sizes = [1, 32], strides = [1, 1]} : vector<16x128xf32> to vector<1x32xf32>
    %589 = vector.shape_cast %588 : vector<1x32xf32> to vector<1x1x32xf32>
    %c7_443 = arith.constant 7 : index
    %c0_444 = arith.constant 0 : index
    %c0_445 = arith.constant 0 : index
    %590 = vector.load %arg25[%c7_443, %c0_444, %c0_445] : memref<9x9x32xf32, #tpu.memory_space<vmem>>, vector<1x1x32xf32>
    tpu.vector_store %arg25[%c7_443, %c0_444, %c0_445], %589 {strides = array<i32>} : memref<9x9x32xf32, #tpu.memory_space<vmem>>, vector<1x1x32xf32>,
    %591 = vector.extract_strided_slice %435 {offsets = [12, 96], sizes = [1, 32], strides = [1, 1]} : vector<16x128xf32> to vector<1x32xf32>
    %592 = vector.shape_cast %591 : vector<1x32xf32> to vector<1x1x32xf32>
    %c7_446 = arith.constant 7 : index
    %c1_447 = arith.constant 1 : index
    %c0_448 = arith.constant 0 : index
    %593 = vector.load %arg25[%c7_446, %c1_447, %c0_448] : memref<9x9x32xf32, #tpu.memory_space<vmem>>, vector<1x1x32xf32>
    tpu.vector_store %arg25[%c7_446, %c1_447, %c0_448], %592 {strides = array<i32>} : memref<9x9x32xf32, #tpu.memory_space<vmem>>, vector<1x1x32xf32>,
    %594 = vector.extract_strided_slice %435 {offsets = [13, 0], sizes = [1, 32], strides = [1, 1]} : vector<16x128xf32> to vector<1x32xf32>
    %595 = vector.shape_cast %594 : vector<1x32xf32> to vector<1x1x32xf32>
    %c6_449 = arith.constant 6 : index
    %c2_450 = arith.constant 2 : index
    %c0_451 = arith.constant 0 : index
    %596 = vector.load %arg25[%c6_449, %c2_450, %c0_451] : memref<9x9x32xf32, #tpu.memory_space<vmem>>, vector<1x1x32xf32>
    tpu.vector_store %arg25[%c6_449, %c2_450, %c0_451], %595 {strides = array<i32>} : memref<9x9x32xf32, #tpu.memory_space<vmem>>, vector<1x1x32xf32>,
    %597 = vector.extract_strided_slice %435 {offsets = [13, 32], sizes = [1, 32], strides = [1, 1]} : vector<16x128xf32> to vector<1x32xf32>
    %598 = vector.shape_cast %597 : vector<1x32xf32> to vector<1x1x32xf32>
    %c6_452 = arith.constant 6 : index
    %c3_453 = arith.constant 3 : index
    %c0_454 = arith.constant 0 : index
    %599 = vector.load %arg25[%c6_452, %c3_453, %c0_454] : memref<9x9x32xf32, #tpu.memory_space<vmem>>, vector<1x1x32xf32>
    tpu.vector_store %arg25[%c6_452, %c3_453, %c0_454], %598 {strides = array<i32>} : memref<9x9x32xf32, #tpu.memory_space<vmem>>, vector<1x1x32xf32>,
    %600 = vector.extract_strided_slice %435 {offsets = [13, 64], sizes = [1, 32], strides = [1, 1]} : vector<16x128xf32> to vector<1x32xf32>
    %601 = vector.shape_cast %600 : vector<1x32xf32> to vector<1x1x32xf32>
    %c7_455 = arith.constant 7 : index
    %c2_456 = arith.constant 2 : index
    %c0_457 = arith.constant 0 : index
    %602 = vector.load %arg25[%c7_455, %c2_456, %c0_457] : memref<9x9x32xf32, #tpu.memory_space<vmem>>, vector<1x1x32xf32>
    tpu.vector_store %arg25[%c7_455, %c2_456, %c0_457], %601 {strides = array<i32>} : memref<9x9x32xf32, #tpu.memory_space<vmem>>, vector<1x1x32xf32>,
    %603 = vector.extract_strided_slice %435 {offsets = [13, 96], sizes = [1, 32], strides = [1, 1]} : vector<16x128xf32> to vector<1x32xf32>
    %604 = vector.shape_cast %603 : vector<1x32xf32> to vector<1x1x32xf32>
    %c7_458 = arith.constant 7 : index
    %c3_459 = arith.constant 3 : index
    %c0_460 = arith.constant 0 : index
    %605 = vector.load %arg25[%c7_458, %c3_459, %c0_460] : memref<9x9x32xf32, #tpu.memory_space<vmem>>, vector<1x1x32xf32>
    tpu.vector_store %arg25[%c7_458, %c3_459, %c0_460], %604 {strides = array<i32>} : memref<9x9x32xf32, #tpu.memory_space<vmem>>, vector<1x1x32xf32>,
    %606 = vector.extract_strided_slice %435 {offsets = [14, 0], sizes = [1, 32], strides = [1, 1]} : vector<16x128xf32> to vector<1x32xf32>
    %607 = vector.shape_cast %606 : vector<1x32xf32> to vector<1x1x32xf32>
    %c6_461 = arith.constant 6 : index
    %c4_462 = arith.constant 4 : index
    %c0_463 = arith.constant 0 : index
    %608 = vector.load %arg25[%c6_461, %c4_462, %c0_463] : memref<9x9x32xf32, #tpu.memory_space<vmem>>, vector<1x1x32xf32>
    tpu.vector_store %arg25[%c6_461, %c4_462, %c0_463], %607 {strides = array<i32>} : memref<9x9x32xf32, #tpu.memory_space<vmem>>, vector<1x1x32xf32>,
    %609 = vector.extract_strided_slice %435 {offsets = [14, 32], sizes = [1, 32], strides = [1, 1]} : vector<16x128xf32> to vector<1x32xf32>
    %610 = vector.shape_cast %609 : vector<1x32xf32> to vector<1x1x32xf32>
    %c6_464 = arith.constant 6 : index
    %c5_465 = arith.constant 5 : index
    %c0_466 = arith.constant 0 : index
    %611 = vector.load %arg25[%c6_464, %c5_465, %c0_466] : memref<9x9x32xf32, #tpu.memory_space<vmem>>, vector<1x1x32xf32>
    tpu.vector_store %arg25[%c6_464, %c5_465, %c0_466], %610 {strides = array<i32>} : memref<9x9x32xf32, #tpu.memory_space<vmem>>, vector<1x1x32xf32>,
    %612 = vector.extract_strided_slice %435 {offsets = [14, 64], sizes = [1, 32], strides = [1, 1]} : vector<16x128xf32> to vector<1x32xf32>
    %613 = vector.shape_cast %612 : vector<1x32xf32> to vector<1x1x32xf32>
    %c7_467 = arith.constant 7 : index
    %c4_468 = arith.constant 4 : index
    %c0_469 = arith.constant 0 : index
    %614 = vector.load %arg25[%c7_467, %c4_468, %c0_469] : memref<9x9x32xf32, #tpu.memory_space<vmem>>, vector<1x1x32xf32>
    tpu.vector_store %arg25[%c7_467, %c4_468, %c0_469], %613 {strides = array<i32>} : memref<9x9x32xf32, #tpu.memory_space<vmem>>, vector<1x1x32xf32>,
    %615 = vector.extract_strided_slice %435 {offsets = [14, 96], sizes = [1, 32], strides = [1, 1]} : vector<16x128xf32> to vector<1x32xf32>
    %616 = vector.shape_cast %615 : vector<1x32xf32> to vector<1x1x32xf32>
    %c7_470 = arith.constant 7 : index
    %c5_471 = arith.constant 5 : index
    %c0_472 = arith.constant 0 : index
    %617 = vector.load %arg25[%c7_470, %c5_471, %c0_472] : memref<9x9x32xf32, #tpu.memory_space<vmem>>, vector<1x1x32xf32>
    tpu.vector_store %arg25[%c7_470, %c5_471, %c0_472], %616 {strides = array<i32>} : memref<9x9x32xf32, #tpu.memory_space<vmem>>, vector<1x1x32xf32>,
    %618 = vector.extract_strided_slice %435 {offsets = [15, 0], sizes = [1, 32], strides = [1, 1]} : vector<16x128xf32> to vector<1x32xf32>
    %619 = vector.shape_cast %618 : vector<1x32xf32> to vector<1x1x32xf32>
    %c6_473 = arith.constant 6 : index
    %c6_474 = arith.constant 6 : index
    %c0_475 = arith.constant 0 : index
    %620 = vector.load %arg25[%c6_473, %c6_474, %c0_475] : memref<9x9x32xf32, #tpu.memory_space<vmem>>, vector<1x1x32xf32>
    tpu.vector_store %arg25[%c6_473, %c6_474, %c0_475], %619 {strides = array<i32>} : memref<9x9x32xf32, #tpu.memory_space<vmem>>, vector<1x1x32xf32>,
    %621 = vector.extract_strided_slice %435 {offsets = [15, 32], sizes = [1, 32], strides = [1, 1]} : vector<16x128xf32> to vector<1x32xf32>
    %622 = vector.shape_cast %621 : vector<1x32xf32> to vector<1x1x32xf32>
    %c6_476 = arith.constant 6 : index
    %c7_477 = arith.constant 7 : index
    %c0_478 = arith.constant 0 : index
    %623 = vector.load %arg25[%c6_476, %c7_477, %c0_478] : memref<9x9x32xf32, #tpu.memory_space<vmem>>, vector<1x1x32xf32>
    tpu.vector_store %arg25[%c6_476, %c7_477, %c0_478], %622 {strides = array<i32>} : memref<9x9x32xf32, #tpu.memory_space<vmem>>, vector<1x1x32xf32>,
    %624 = vector.extract_strided_slice %435 {offsets = [15, 64], sizes = [1, 32], strides = [1, 1]} : vector<16x128xf32> to vector<1x32xf32>
    %625 = vector.shape_cast %624 : vector<1x32xf32> to vector<1x1x32xf32>
    %c7_479 = arith.constant 7 : index
    %c6_480 = arith.constant 6 : index
    %c0_481 = arith.constant 0 : index
    %626 = vector.load %arg25[%c7_479, %c6_480, %c0_481] : memref<9x9x32xf32, #tpu.memory_space<vmem>>, vector<1x1x32xf32>
    tpu.vector_store %arg25[%c7_479, %c6_480, %c0_481], %625 {strides = array<i32>} : memref<9x9x32xf32, #tpu.memory_space<vmem>>, vector<1x1x32xf32>,
    %627 = vector.extract_strided_slice %435 {offsets = [15, 96], sizes = [1, 32], strides = [1, 1]} : vector<16x128xf32> to vector<1x32xf32>
    %628 = vector.shape_cast %627 : vector<1x32xf32> to vector<1x1x32xf32>
    %c7_482 = arith.constant 7 : index
    %c7_483 = arith.constant 7 : index
    %c0_484 = arith.constant 0 : index
    %629 = vector.load %arg25[%c7_482, %c7_483, %c0_484] : memref<9x9x32xf32, #tpu.memory_space<vmem>>, vector<1x1x32xf32>
    tpu.vector_store %arg25[%c7_482, %c7_483, %c0_484], %628 {strides = array<i32>} : memref<9x9x32xf32, #tpu.memory_space<vmem>>, vector<1x1x32xf32>,
    %c0_485 = arith.constant 0 : index
    %c0_486 = arith.constant 0 : index
    %c0_487 = arith.constant 0 : index
    %630 = vector.load %arg25[%c0_485, %c0_486, %c0_487] : memref<9x9x32xf32, #tpu.memory_space<vmem>>, vector<8x8x32xf32>
    %631 = vector.shape_cast %630 : vector<8x8x32xf32> to vector<64x32xf32>
    %c0_488 = arith.constant 0 : index
    %c1_489 = arith.constant 1 : index
    %c0_490 = arith.constant 0 : index
    %632 = vector.load %arg25[%c0_488, %c1_489, %c0_490] : memref<9x9x32xf32, #tpu.memory_space<vmem>>, vector<8x8x32xf32>
    %633 = vector.shape_cast %632 : vector<8x8x32xf32> to vector<64x32xf32>
    %c1_491 = arith.constant 1 : index
    %c0_492 = arith.constant 0 : index
    %c0_493 = arith.constant 0 : index
    %634 = vector.load %arg25[%c1_491, %c0_492, %c0_493] : memref<9x9x32xf32, #tpu.memory_space<vmem>>, vector<8x8x32xf32>
    %635 = vector.shape_cast %634 : vector<8x8x32xf32> to vector<64x32xf32>
    %c1_494 = arith.constant 1 : index
    %c1_495 = arith.constant 1 : index
    %c0_496 = arith.constant 0 : index
    %636 = vector.load %arg25[%c1_494, %c1_495, %c0_496] : memref<9x9x32xf32, #tpu.memory_space<vmem>>, vector<8x8x32xf32>
    %637 = vector.shape_cast %636 : vector<8x8x32xf32> to vector<64x32xf32>
    %638 = tpu.concatenate %631, %633, %635, %637 in 1 : vector<64x32xf32>, vector<64x32xf32>, vector<64x32xf32>, vector<64x32xf32> -> vector<64x128xf32>
    %639 = arith.truncf %638 : vector<64x128xf32> to vector<64x128xbf16>
    %c0_497 = arith.constant 0 : index
    %c0_498 = arith.constant 0 : index
    %640 = vector.load %arg14[%c0_497, %c0_498] : memref<128x128xbf16, #tpu.memory_space<vmem>>, vector<128x128xbf16>
    %cst_499 = arith.constant dense<0.000000e+00> : vector<64x128xf32>
    %641 = tpu.matmul %639, %640, %cst_499 {dimension_numbers = #tpu.dot_dimension_numbers<[1], [0], [0], [1], [0, 0, 1, 1], [], []>} : vector<64x128xbf16>, vector<128x128xbf16>, vector<64x128xf32> -> vector<64x128xf32>
    %c0_500 = arith.constant 0 : index
    %c0_501 = arith.constant 0 : index
    %642 = vector.load %arg15[%c0_500, %c0_501] : memref<1x128xf32, #tpu.memory_space<vmem>>, vector<1x128xf32>
    %643 = vector.broadcast %642 : vector<1x128xf32> to vector<64x128xf32>
    %644 = arith.mulf %641, %643 : vector<64x128xf32>
    %c0_502 = arith.constant 0 : index
    %c0_503 = arith.constant 0 : index
    %645 = vector.load %arg16[%c0_502, %c0_503] : memref<1x128xf32, #tpu.memory_space<vmem>>, vector<1x128xf32>
    %646 = vector.broadcast %645 : vector<1x128xf32> to vector<64x128xf32>
    %647 = arith.addf %644, %646 : vector<64x128xf32>
    %cst_504 = arith.constant 5.000000e-01 : f32
    %648 = vector.broadcast %cst_504 : f32 to vector<64x128xf32>
    %649 = arith.mulf %648, %647 : vector<64x128xf32>
    %cst_505 = arith.constant 0.707106769 : f32
    %650 = vector.broadcast %cst_505 : f32 to vector<64x128xf32>
    %651 = arith.mulf %647, %650 : vector<64x128xf32>
    %652 = math.absf %651 : vector<64x128xf32>
    %cst_506 = arith.constant 0.327591091 : f32
    %653 = vector.broadcast %cst_506 : f32 to vector<64x128xf32>
    %654 = arith.mulf %653, %652 : vector<64x128xf32>
    %cst_507 = arith.constant 1.000000e+00 : f32
    %655 = vector.broadcast %cst_507 : f32 to vector<64x128xf32>
    %656 = arith.addf %655, %654 : vector<64x128xf32>
    %cst_508 = arith.constant 1.000000e+00 : f32
    %657 = vector.broadcast %cst_508 : f32 to vector<64x128xf32>
    %658 = arith.divf %657, %656 : vector<64x128xf32>
    %cst_509 = arith.constant 1.06140542 : f32
    %659 = vector.broadcast %cst_509 : f32 to vector<64x128xf32>
    %660 = arith.mulf %659, %658 : vector<64x128xf32>
    %cst_510 = arith.constant -1.45315206 : f32
    %661 = vector.broadcast %cst_510 : f32 to vector<64x128xf32>
    %662 = arith.addf %660, %661 : vector<64x128xf32>
    %663 = arith.mulf %662, %658 : vector<64x128xf32>
    %cst_511 = arith.constant 1.42141378 : f32
    %664 = vector.broadcast %cst_511 : f32 to vector<64x128xf32>
    %665 = arith.addf %663, %664 : vector<64x128xf32>
    %666 = arith.mulf %665, %658 : vector<64x128xf32>
    %cst_512 = arith.constant -0.284496725 : f32
    %667 = vector.broadcast %cst_512 : f32 to vector<64x128xf32>
    %668 = arith.addf %666, %667 : vector<64x128xf32>
    %669 = arith.mulf %668, %658 : vector<64x128xf32>
    %cst_513 = arith.constant 0.254829586 : f32
    %670 = vector.broadcast %cst_513 : f32 to vector<64x128xf32>
    %671 = arith.addf %669, %670 : vector<64x128xf32>
    %672 = arith.mulf %671, %658 : vector<64x128xf32>
    %cst_514 = arith.constant 0.000000e+00 : f32
    %673 = vector.broadcast %cst_514 : f32 to vector<64x128xf32>
    %674 = arith.subf %673, %652 : vector<64x128xf32>
    %675 = arith.mulf %674, %652 : vector<64x128xf32>
    %676 = math.exp %675 : vector<64x128xf32>
    %677 = arith.mulf %672, %676 : vector<64x128xf32>
    %cst_515 = arith.constant 1.000000e+00 : f32
    %678 = vector.broadcast %cst_515 : f32 to vector<64x128xf32>
    %679 = arith.subf %678, %677 : vector<64x128xf32>
    %cst_516 = arith.constant 0.000000e+00 : f32
    %680 = vector.broadcast %cst_516 : f32 to vector<64x128xf32>
    %681 = arith.cmpf olt, %651, %680 : vector<64x128xf32>
    %cst_517 = arith.constant 0.000000e+00 : f32
    %682 = vector.broadcast %cst_517 : f32 to vector<64x128xf32>
    %683 = arith.subf %682, %679 : vector<64x128xf32>
    %684 = arith.select %681, %683, %679 : vector<64x128xi1>, vector<64x128xf32>
    %cst_518 = arith.constant 1.000000e+00 : f32
    %685 = vector.broadcast %cst_518 : f32 to vector<64x128xf32>
    %686 = arith.addf %685, %684 : vector<64x128xf32>
    %687 = arith.mulf %649, %686 : vector<64x128xf32>
    %688 = arith.truncf %687 : vector<64x128xf32> to vector<64x128xbf16>
    %c0_519 = arith.constant 0 : index
    %c0_520 = arith.constant 0 : index
    %689 = vector.load %arg17[%c0_519, %c0_520] : memref<128x128xbf16, #tpu.memory_space<vmem>>, vector<128x128xbf16>
    %cst_521 = arith.constant dense<0.000000e+00> : vector<64x128xf32>
    %690 = tpu.matmul %688, %689, %cst_521 {dimension_numbers = #tpu.dot_dimension_numbers<[1], [0], [0], [1], [0, 0, 1, 1], [], []>} : vector<64x128xbf16>, vector<128x128xbf16>, vector<64x128xf32> -> vector<64x128xf32>
    %c0_522 = arith.constant 0 : index
    %c0_523 = arith.constant 0 : index
    %691 = vector.load %arg18[%c0_522, %c0_523] : memref<1x128xf32, #tpu.memory_space<vmem>>, vector<1x128xf32>
    %692 = vector.broadcast %691 : vector<1x128xf32> to vector<64x128xf32>
    %693 = arith.addf %690, %692 : vector<64x128xf32>
    %c0_524 = arith.constant 0 : index
    %c0_525 = arith.constant 0 : index
    %c0_526 = arith.constant 0 : index
    %694 = vector.load %arg19[%c0_524, %c0_525, %c0_526] : memref<1x64x128xf32, #tpu.memory_space<vmem>>, vector<1x64x128xf32>
    %695 = vector.shape_cast %694 : vector<1x64x128xf32> to vector<64x128xf32>
    %696 = vector.shape_cast %693 : vector<64x128xf32> to vector<1x64x128xf32>
    tpu.vector_store %arg19[%c0_524, %c0_525, %c0_526], %696 {strides = array<i32>} : memref<1x64x128xf32, #tpu.memory_space<vmem>>, vector<1x64x128xf32>,
    return
  }
  func.func @transform_0(%arg0: i32) -> (i32, i32, i32, i32) {
    %c0_i32 = arith.constant 0 : i32
    %c0_i32_0 = arith.constant 0 : i32
    %c0_i32_1 = arith.constant 0 : i32
    %c0_i32_2 = arith.constant 0 : i32
    return %arg0, %c0_i32, %c0_i32_0, %c0_i32_1 : i32, i32, i32, i32
  }
  func.func @transform_1(%arg0: i32) -> (i32, i32) {
    %c0_i32 = arith.constant 0 : i32
    %c0_i32_0 = arith.constant 0 : i32
    %c0_i32_1 = arith.constant 0 : i32
    return %c0_i32, %c0_i32_0 : i32, i32
  }
  func.func @transform_2(%arg0: i32) -> (i32, i32) {
    %c0_i32 = arith.constant 0 : i32
    %c0_i32_0 = arith.constant 0 : i32
    %c0_i32_1 = arith.constant 0 : i32
    return %c0_i32, %c0_i32_0 : i32, i32
  }
  func.func @transform_3(%arg0: i32) -> (i32, i32) {
    %c0_i32 = arith.constant 0 : i32
    %c0_i32_0 = arith.constant 0 : i32
    %c0_i32_1 = arith.constant 0 : i32
    return %c0_i32, %c0_i32_0 : i32, i32
  }
  func.func @transform_4(%arg0: i32) -> (i32, i32) {
    %c0_i32 = arith.constant 0 : i32
    %c0_i32_0 = arith.constant 0 : i32
    %c0_i32_1 = arith.constant 0 : i32
    return %c0_i32, %c0_i32_0 : i32, i32
  }
  func.func @transform_5(%arg0: i32) -> (i32, i32) {
    %c0_i32 = arith.constant 0 : i32
    %c0_i32_0 = arith.constant 0 : i32
    %c0_i32_1 = arith.constant 0 : i32
    return %c0_i32, %c0_i32_0 : i32, i32
  }
  func.func @transform_6(%arg0: i32) -> (i32, i32) {
    %c0_i32 = arith.constant 0 : i32
    %c0_i32_0 = arith.constant 0 : i32
    %c0_i32_1 = arith.constant 0 : i32
    return %c0_i32, %c0_i32_0 : i32, i32
  }
  func.func @transform_7(%arg0: i32) -> (i32, i32) {
    %c0_i32 = arith.constant 0 : i32
    %c0_i32_0 = arith.constant 0 : i32
    %c0_i32_1 = arith.constant 0 : i32
    return %c0_i32, %c0_i32_0 : i32, i32
  }
  func.func @transform_8(%arg0: i32) -> (i32, i32) {
    %c0_i32 = arith.constant 0 : i32
    %c0_i32_0 = arith.constant 0 : i32
    %c0_i32_1 = arith.constant 0 : i32
    return %c0_i32, %c0_i32_0 : i32, i32
  }
  func.func @transform_9(%arg0: i32) -> (i32, i32) {
    %c0_i32 = arith.constant 0 : i32
    %c0_i32_0 = arith.constant 0 : i32
    %c0_i32_1 = arith.constant 0 : i32
    return %c0_i32, %c0_i32_0 : i32, i32
  }
  func.func @transform_10(%arg0: i32) -> (i32, i32) {
    %c0_i32 = arith.constant 0 : i32
    %c0_i32_0 = arith.constant 0 : i32
    %c0_i32_1 = arith.constant 0 : i32
    return %c0_i32, %c0_i32_0 : i32, i32
  }
  func.func @transform_11(%arg0: i32) -> (i32, i32) {
    %c0_i32 = arith.constant 0 : i32
    %c0_i32_0 = arith.constant 0 : i32
    %c0_i32_1 = arith.constant 0 : i32
    return %c0_i32, %c0_i32_0 : i32, i32
  }
  func.func @transform_12(%arg0: i32) -> (i32, i32) {
    %c0_i32 = arith.constant 0 : i32
    %c0_i32_0 = arith.constant 0 : i32
    %c0_i32_1 = arith.constant 0 : i32
    return %c0_i32, %c0_i32_0 : i32, i32
  }
  func.func @transform_13(%arg0: i32) -> (i32, i32) {
    %c0_i32 = arith.constant 0 : i32
    %c0_i32_0 = arith.constant 0 : i32
    %c0_i32_1 = arith.constant 0 : i32
    return %c0_i32, %c0_i32_0 : i32, i32
  }
  func.func @transform_14(%arg0: i32) -> (i32, i32) {
    %c0_i32 = arith.constant 0 : i32
    %c0_i32_0 = arith.constant 0 : i32
    %c0_i32_1 = arith.constant 0 : i32
    return %c0_i32, %c0_i32_0 : i32, i32
  }
  func.func @transform_15(%arg0: i32) -> (i32, i32) {
    %c0_i32 = arith.constant 0 : i32
    %c0_i32_0 = arith.constant 0 : i32
    %c0_i32_1 = arith.constant 0 : i32
    return %c0_i32, %c0_i32_0 : i32, i32
  }
  func.func @transform_16(%arg0: i32) -> (i32, i32) {
    %c0_i32 = arith.constant 0 : i32
    %c0_i32_0 = arith.constant 0 : i32
    %c0_i32_1 = arith.constant 0 : i32
    return %c0_i32, %c0_i32_0 : i32, i32
  }
  func.func @transform_17(%arg0: i32) -> (i32, i32) {
    %c0_i32 = arith.constant 0 : i32
    %c0_i32_0 = arith.constant 0 : i32
    %c0_i32_1 = arith.constant 0 : i32
    return %c0_i32, %c0_i32_0 : i32, i32
  }
  func.func @transform_18(%arg0: i32) -> (i32, i32, i32) {
    %c0_i32 = arith.constant 0 : i32
    %c0_i32_0 = arith.constant 0 : i32
    %c0_i32_1 = arith.constant 0 : i32
    return %arg0, %c0_i32, %c0_i32_0 : i32, i32, i32
  }
}

</mosaic_0001>

<llo_original>
// kernel: attention_forward.1
$region0: #{attention_forward.1}
  #allocation0 [shape = 'u32[]', space=smem, size = 0x4, offset = 0x4, fixed_abs, tag = 'smem constant byte address 0x4 - core index']
  #allocation1 [shape = 'u32[144,128]{1,0:T(1,128)}', space=vmem, size = 0x12000, scoped, tag = 'internal scratch']
  #allocation2 [shape = 'f32[10,10,32]{2,1,0:T(8,128)}', space=vmem, size = 0x14000, scoped, tag = 'scratch operand']
  #allocation3 [shape = 'f32[6,6,32]{2,1,0:T(8,128)}', space=vmem, size = 0x6000, scoped, tag = 'scratch operand']
  #allocation4 [shape = 'f32[4,32]{1,0:T(4,128)}', space=vmem, size = 0x800, scoped, tag = 'scratch operand']
  #allocation5 [shape = 'f32[3,3,32]{2,1,0:T(4,128)}', space=vmem, size = 0x1800, scoped, tag = 'scratch operand']
  #allocation6 [shape = 'f32[5,5,32]{2,1,0:T(8,128)}', space=vmem, size = 0x5000, scoped, tag = 'scratch operand']
  #allocation7 [shape = 'f32[9,9,32]{2,1,0:T(8,128)}', space=vmem, size = 0x12000, scoped, tag = 'scratch operand']
  %s0 = inlined_call_operand.vmem [shape: f32[2,9,9,128], index: 0, kind: input, shape index: {}]
  %s1 = inlined_call_operand.vmem [shape: bf16[512,32], index: 1, kind: input, shape index: {}]
  %s2 = inlined_call_operand.vmem [shape: f32[1,32], index: 2, kind: input, shape index: {}]
  %s3 = inlined_call_operand.vmem [shape: bf16[288,32], index: 3, kind: input, shape index: {}]
  %s4 = inlined_call_operand.vmem [shape: f32[1,32], index: 4, kind: input, shape index: {}]
  %s5 = inlined_call_operand.vmem [shape: bf16[288,96], index: 5, kind: input, shape index: {}]
  %s6 = inlined_call_operand.vmem [shape: f32[1,96], index: 6, kind: input, shape index: {}]
  %s7 = inlined_call_operand.vmem [shape: bf16[128,128], index: 7, kind: input, shape index: {}]
  %s8 = inlined_call_operand.vmem [shape: f32[1,128], index: 8, kind: input, shape index: {}]
  %s9 = inlined_call_operand.vmem [shape: f32[1,128], index: 9, kind: input, shape index: {}]
  %s10 = inlined_call_operand.vmem [shape: bf16[128,128], index: 10, kind: input, shape index: {}]
  %s11 = inlined_call_operand.vmem [shape: f32[1,128], index: 11, kind: input, shape index: {}]
  %s12 = inlined_call_operand.vmem [shape: f32[1,128], index: 12, kind: input, shape index: {}]
  %s13 = inlined_call_operand.vmem [shape: bf16[128,128], index: 13, kind: input, shape index: {}]
  %s14 = inlined_call_operand.vmem [shape: f32[1,128], index: 14, kind: input, shape index: {}]
  %s15 = inlined_call_operand.vmem [shape: f32[1,128], index: 15, kind: input, shape index: {}]
  %s16 = inlined_call_operand.vmem [shape: bf16[128,128], index: 16, kind: input, shape index: {}]
  %s17 = inlined_call_operand.vmem [shape: f32[1,128], index: 17, kind: input, shape index: {}]
  %s18 = inlined_call_operand.vmem [shape: f32[2,64,128], index: 18, kind: output, shape index: {}]
  %s19 = sld [smem:[#allocation0]]
  $region105: #{attention_forward.1} parent=0
    _
  %s21 = ssub.s32 1, %s19
  %s22 = scalar_select 0, %s21, %s19
  loop: start=0, step=1, limit=4
  $region2: #{attention_forward.1} parent=0 // loop_pre_header
    _
  $region3: #{attention_forward.1} parent=0 // loop_header
    %s24 = sphi 0, %s28
    %p25 = scmp.ge.s32.totalorder %s24, 4
    %s34 = sphi 0, %s36
    %s37 = sphi 0, %s34
    %s38 = sphi 0, %s37
    %s54 = sphi 0, %s38
    %s58 = sphi 0, %s58
    %s60 = sphi 0, %s58
    %s61 = sphi 0, %s60
    %s75 = sphi 0, %s61
    %s79 = sphi 0, %s79
    %s81 = sphi 0, %s79
    %s82 = sphi 0, %s81
    %s96 = sphi 0, %s82
    %s100 = sphi 0, %s100
    %s102 = sphi 0, %s100
    %s103 = sphi 0, %s102
    %s117 = sphi 0, %s103
    %s121 = sphi 0, %s121
    %s123 = sphi 0, %s121
    %s124 = sphi 0, %s123
    %s138 = sphi 0, %s124
    %s142 = sphi 0, %s142
    %s144 = sphi 0, %s142
    %s145 = sphi 0, %s144
    %s159 = sphi 0, %s145
    %s163 = sphi 0, %s163
    %s165 = sphi 0, %s163
    %s166 = sphi 0, %s165
    %s180 = sphi 0, %s166
    %s184 = sphi 0, %s184
    %s186 = sphi 0, %s184
    %s187 = sphi 0, %s186
    %s201 = sphi 0, %s187
    %s205 = sphi 0, %s205
    %s207 = sphi 0, %s205
    %s208 = sphi 0, %s207
    %s222 = sphi 0, %s208
    %s226 = sphi 0, %s226
    %s228 = sphi 0, %s226
    %s229 = sphi 0, %s228
    %s243 = sphi 0, %s229
    %s247 = sphi 0, %s247
    %s249 = sphi 0, %s247
    %s250 = sphi 0, %s249
    %s264 = sphi 0, %s250
    %s268 = sphi 0, %s268
    %s270 = sphi 0, %s268
    %s271 = sphi 0, %s270
    %s285 = sphi 0, %s271
    %s289 = sphi 0, %s289
    %s291 = sphi 0, %s289
    %s292 = sphi 0, %s291
    %s306 = sphi 0, %s292
    %s310 = sphi 0, %s310
    %s312 = sphi 0, %s310
    %s313 = sphi 0, %s312
    %s327 = sphi 0, %s313
    %s331 = sphi 0, %s331
    %s333 = sphi 0, %s331
    %s334 = sphi 0, %s333
    %s348 = sphi 0, %s334
    %s352 = sphi 0, %s352
    %s354 = sphi 0, %s352
    %s355 = sphi 0, %s354
    %s369 = sphi 0, %s355
    %s373 = sphi 0, %s373
    %s375 = sphi 0, %s373
    %s376 = sphi 0, %s375
    %s390 = sphi 0, %s376
    %s394 = sphi 0, %s394
    %s396 = sphi 0, %s394
    %s397 = sphi 0, %s396
    %s411 = sphi 0, %s397
    %s417 = sphi 0, %s419
    %s420 = sphi 0, %s417
    %s421 = sphi 0, %s420
    %s437 = sphi 0, %s421
  $region4: #{attention_forward.1} parent=0 // loop_header_branch
    %27 = sbr.rel (%p25) target = $region8
  $region5: #{attention_forward.1} parent=0 // loop_body
    %s29 = ssub.s32 %s24, 1
    %s30 = ssub.s32 %s24, 2
    %s31 = sadd.s32 %s24, 1
    %s32 = ssub.s32 %s24, %s31
    %p33 = scmp.eq.s32.totalorder %s32, 0
    %s35 = sadd.s32 %s34, 1
    %s36 = scalar_select %p33, %s34, %s35
    %p39 = pneg %p33
    %p40 = scmp.eq.s32.totalorder %s24, 1
    %p41 = por %p39, %p40
    %p42 = scmp.ne.s32.totalorder %s34, %s37
    %p43 = scmp.eq.s32.totalorder %s24, 0
    %p44 = por %p42, %p43
    %p45 = scmp.ne.s32.totalorder %s34, %s37
    %p46 = scmp.eq.s32.totalorder %s29, 1
    %p47 = por %p45, %p46
    %p48 = scmp.ne.s32.totalorder %s37, %s38
    %p49 = scmp.eq.s32.totalorder %s29, 0
    %p50 = por %p48, %p49
    %p51 = scmp.ne.s32.totalorder %s37, %s38
    %p52 = scmp.eq.s32.totalorder %s30, 1
    %p53 = por %p51, %p52
    %p55 = scmp.ne.s32.totalorder %s38, %s54
    %p56 = scmp.eq.s32.totalorder %s30, 0
    %p57 = por %p55, %p56
    %s59 = sadd.s32 %s58, 1
    %p62 = scmp.eq.s32.totalorder %s24, 1
    %p63 = scmp.ne.s32.totalorder %s58, %s60
    %p64 = scmp.eq.s32.totalorder %s24, 0
    %p65 = por %p63, %p64
    %p66 = scmp.ne.s32.totalorder %s58, %s60
    %p67 = scmp.eq.s32.totalorder %s29, 1
    %p68 = por %p66, %p67
    %p69 = scmp.ne.s32.totalorder %s60, %s61
    %p70 = scmp.eq.s32.totalorder %s29, 0
    %p71 = por %p69, %p70
    %p72 = scmp.ne.s32.totalorder %s60, %s61
    %p73 = scmp.eq.s32.totalorder %s30, 1
    %p74 = por %p72, %p73
    %p76 = scmp.ne.s32.totalorder %s61, %s75
    %p77 = scmp.eq.s32.totalorder %s30, 0
    %p78 = por %p76, %p77
    %s80 = sadd.s32 %s79, 1
    %p83 = scmp.eq.s32.totalorder %s24, 1
    %p84 = scmp.ne.s32.totalorder %s79, %s81
    %p85 = scmp.eq.s32.totalorder %s24, 0
    %p86 = por %p84, %p85
    %p87 = scmp.ne.s32.totalorder %s79, %s81
    %p88 = scmp.eq.s32.totalorder %s29, 1
    %p89 = por %p87, %p88
    %p90 = scmp.ne.s32.totalorder %s81, %s82
    %p91 = scmp.eq.s32.totalorder %s29, 0
    %p92 = por %p90, %p91
    %p93 = scmp.ne.s32.totalorder %s81, %s82
    %p94 = scmp.eq.s32.totalorder %s30, 1
    %p95 = por %p93, %p94
    %p97 = scmp.ne.s32.totalorder %s82, %s96
    %p98 = scmp.eq.s32.totalorder %s30, 0
    %p99 = por %p97, %p98
    %s101 = sadd.s32 %s100, 1
    %p104 = scmp.eq.s32.totalorder %s24, 1
    %p105 = scmp.ne.s32.totalorder %s100, %s102
    %p106 = scmp.eq.s32.totalorder %s24, 0
    %p107 = por %p105, %p106
    %p108 = scmp.ne.s32.totalorder %s100, %s102
    %p109 = scmp.eq.s32.totalorder %s29, 1
    %p110 = por %p108, %p109
    %p111 = scmp.ne.s32.totalorder %s102, %s103
    %p112 = scmp.eq.s32.totalorder %s29, 0
    %p113 = por %p111, %p112
    %p114 = scmp.ne.s32.totalorder %s102, %s103
    %p115 = scmp.eq.s32.totalorder %s30, 1
    %p116 = por %p114, %p115
    %p118 = scmp.ne.s32.totalorder %s103, %s117
    %p119 = scmp.eq.s32.totalorder %s30, 0
    %p120 = por %p118, %p119
    %s122 = sadd.s32 %s121, 1
    %p125 = scmp.eq.s32.totalorder %s24, 1
    %p126 = scmp.ne.s32.totalorder %s121, %s123
    %p127 = scmp.eq.s32.totalorder %s24, 0
    %p128 = por %p126, %p127
    %p129 = scmp.ne.s32.totalorder %s121, %s123
    %p130 = scmp.eq.s32.totalorder %s29, 1
    %p131 = por %p129, %p130
    %p132 = scmp.ne.s32.totalorder %s123, %s124
    %p133 = scmp.eq.s32.totalorder %s29, 0
    %p134 = por %p132, %p133
    %p135 = scmp.ne.s32.totalorder %s123, %s124
    %p136 = scmp.eq.s32.totalorder %s30, 1
    %p137 = por %p135, %p136
    %p139 = scmp.ne.s32.totalorder %s124, %s138
    %p140 = scmp.eq.s32.totalorder %s30, 0
    %p141 = por %p139, %p140
    %s143 = sadd.s32 %s142, 1
    %p146 = scmp.eq.s32.totalorder %s24, 1
    %p147 = scmp.ne.s32.totalorder %s142, %s144
    %p148 = scmp.eq.s32.totalorder %s24, 0
    %p149 = por %p147, %p148
    %p150 = scmp.ne.s32.totalorder %s142, %s144
    %p151 = scmp.eq.s32.totalorder %s29, 1
    %p152 = por %p150, %p151
    %p153 = scmp.ne.s32.totalorder %s144, %s145
    %p154 = scmp.eq.s32.totalorder %s29, 0
    %p155 = por %p153, %p154
    %p156 = scmp.ne.s32.totalorder %s144, %s145
    %p157 = scmp.eq.s32.totalorder %s30, 1
    %p158 = por %p156, %p157
    %p160 = scmp.ne.s32.totalorder %s145, %s159
    %p161 = scmp.eq.s32.totalorder %s30, 0
    %p162 = por %p160, %p161
    %s164 = sadd.s32 %s163, 1
    %p167 = scmp.eq.s32.totalorder %s24, 1
    %p168 = scmp.ne.s32.totalorder %s163, %s165
    %p169 = scmp.eq.s32.totalorder %s24, 0
    %p170 = por %p168, %p169
    %p171 = scmp.ne.s32.totalorder %s163, %s165
    %p172 = scmp.eq.s32.totalorder %s29, 1
    %p173 = por %p171, %p172
    %p174 = scmp.ne.s32.totalorder %s165, %s166
    %p175 = scmp.eq.s32.totalorder %s29, 0
    %p176 = por %p174, %p175
    %p177 = scmp.ne.s32.totalorder %s165, %s166
    %p178 = scmp.eq.s32.totalorder %s30, 1
    %p179 = por %p177, %p178
    %p181 = scmp.ne.s32.totalorder %s166, %s180
    %p182 = scmp.eq.s32.totalorder %s30, 0
    %p183 = por %p181, %p182
    %s185 = sadd.s32 %s184, 1
    %p188 = scmp.eq.s32.totalorder %s24, 1
    %p189 = scmp.ne.s32.totalorder %s184, %s186
    %p190 = scmp.eq.s32.totalorder %s24, 0
    %p191 = por %p189, %p190
    %p192 = scmp.ne.s32.totalorder %s184, %s186
    %p193 = scmp.eq.s32.totalorder %s29, 1
    %p194 = por %p192, %p193
    %p195 = scmp.ne.s32.totalorder %s186, %s187
    %p196 = scmp.eq.s32.totalorder %s29, 0
    %p197 = por %p195, %p196
    %p198 = scmp.ne.s32.totalorder %s186, %s187
    %p199 = scmp.eq.s32.totalorder %s30, 1
    %p200 = por %p198, %p199
    %p202 = scmp.ne.s32.totalorder %s187, %s201
    %p203 = scmp.eq.s32.totalorder %s30, 0
    %p204 = por %p202, %p203
    %s206 = sadd.s32 %s205, 1
    %p209 = scmp.eq.s32.totalorder %s24, 1
    %p210 = scmp.ne.s32.totalorder %s205, %s207
    %p211 = scmp.eq.s32.totalorder %s24, 0
    %p212 = por %p210, %p211
    %p213 = scmp.ne.s32.totalorder %s205, %s207
    %p214 = scmp.eq.s32.totalorder %s29, 1
    %p215 = por %p213, %p214
    %p216 = scmp.ne.s32.totalorder %s207, %s208
    %p217 = scmp.eq.s32.totalorder %s29, 0
    %p218 = por %p216, %p217
    %p219 = scmp.ne.s32.totalorder %s207, %s208
    %p220 = scmp.eq.s32.totalorder %s30, 1
    %p221 = por %p219, %p220
    %p223 = scmp.ne.s32.totalorder %s208, %s222
    %p224 = scmp.eq.s32.totalorder %s30, 0
    %p225 = por %p223, %p224
    %s227 = sadd.s32 %s226, 1
    %p230 = scmp.eq.s32.totalorder %s24, 1
    %p231 = scmp.ne.s32.totalorder %s226, %s228
    %p232 = scmp.eq.s32.totalorder %s24, 0
    %p233 = por %p231, %p232
    %p234 = scmp.ne.s32.totalorder %s226, %s228
    %p235 = scmp.eq.s32.totalorder %s29, 1
    %p236 = por %p234, %p235
    %p237 = scmp.ne.s32.totalorder %s228, %s229
    %p238 = scmp.eq.s32.totalorder %s29, 0
    %p239 = por %p237, %p238
    %p240 = scmp.ne.s32.totalorder %s228, %s229
    %p241 = scmp.eq.s32.totalorder %s30, 1
    %p242 = por %p240, %p241
    %p244 = scmp.ne.s32.totalorder %s229, %s243
    %p245 = scmp.eq.s32.totalorder %s30, 0
    %p246 = por %p244, %p245
    %s248 = sadd.s32 %s247, 1
    %p251 = scmp.eq.s32.totalorder %s24, 1
    %p252 = scmp.ne.s32.totalorder %s247, %s249
    %p253 = scmp.eq.s32.totalorder %s24, 0
    %p254 = por %p252, %p253
    %p255 = scmp.ne.s32.totalorder %s247, %s249
    %p256 = scmp.eq.s32.totalorder %s29, 1
    %p257 = por %p255, %p256
    %p258 = scmp.ne.s32.totalorder %s249, %s250
    %p259 = scmp.eq.s32.totalorder %s29, 0
    %p260 = por %p258, %p259
    %p261 = scmp.ne.s32.totalorder %s249, %s250
    %p262 = scmp.eq.s32.totalorder %s30, 1
    %p263 = por %p261, %p262
    %p265 = scmp.ne.s32.totalorder %s250, %s264
    %p266 = scmp.eq.s32.totalorder %s30, 0
    %p267 = por %p265, %p266
    %s269 = sadd.s32 %s268, 1
    %p272 = scmp.eq.s32.totalorder %s24, 1
    %p273 = scmp.ne.s32.totalorder %s268, %s270
    %p274 = scmp.eq.s32.totalorder %s24, 0
    %p275 = por %p273, %p274
    %p276 = scmp.ne.s32.totalorder %s268, %s270
    %p277 = scmp.eq.s32.totalorder %s29, 1
    %p278 = por %p276, %p277
    %p279 = scmp.ne.s32.totalorder %s270, %s271
    %p280 = scmp.eq.s32.totalorder %s29, 0
    %p281 = por %p279, %p280
    %p282 = scmp.ne.s32.totalorder %s270, %s271
    %p283 = scmp.eq.s32.totalorder %s30, 1
    %p284 = por %p282, %p283
    %p286 = scmp.ne.s32.totalorder %s271, %s285
    %p287 = scmp.eq.s32.totalorder %s30, 0
    %p288 = por %p286, %p287
    %s290 = sadd.s32 %s289, 1
    %p293 = scmp.eq.s32.totalorder %s24, 1
    %p294 = scmp.ne.s32.totalorder %s289, %s291
    %p295 = scmp.eq.s32.totalorder %s24, 0
    %p296 = por %p294, %p295
    %p297 = scmp.ne.s32.totalorder %s289, %s291
    %p298 = scmp.eq.s32.totalorder %s29, 1
    %p299 = por %p297, %p298
    %p300 = scmp.ne.s32.totalorder %s291, %s292
    %p301 = scmp.eq.s32.totalorder %s29, 0
    %p302 = por %p300, %p301
    %p303 = scmp.ne.s32.totalorder %s291, %s292
    %p304 = scmp.eq.s32.totalorder %s30, 1
    %p305 = por %p303, %p304
    %p307 = scmp.ne.s32.totalorder %s292, %s306
    %p308 = scmp.eq.s32.totalorder %s30, 0
    %p309 = por %p307, %p308
    %s311 = sadd.s32 %s310, 1
    %p314 = scmp.eq.s32.totalorder %s24, 1
    %p315 = scmp.ne.s32.totalorder %s310, %s312
    %p316 = scmp.eq.s32.totalorder %s24, 0
    %p317 = por %p315, %p316
    %p318 = scmp.ne.s32.totalorder %s310, %s312
    %p319 = scmp.eq.s32.totalorder %s29, 1
    %p320 = por %p318, %p319
    %p321 = scmp.ne.s32.totalorder %s312, %s313
    %p322 = scmp.eq.s32.totalorder %s29, 0
    %p323 = por %p321, %p322
    %p324 = scmp.ne.s32.totalorder %s312, %s313
    %p325 = scmp.eq.s32.totalorder %s30, 1
    %p326 = por %p324, %p325
    %p328 = scmp.ne.s32.totalorder %s313, %s327
    %p329 = scmp.eq.s32.totalorder %s30, 0
    %p330 = por %p328, %p329
    %s332 = sadd.s32 %s331, 1
    %p335 = scmp.eq.s32.totalorder %s24, 1
    %p336 = scmp.ne.s32.totalorder %s331, %s333
    %p337 = scmp.eq.s32.totalorder %s24, 0
    %p338 = por %p336, %p337
    %p339 = scmp.ne.s32.totalorder %s331, %s333
    %p340 = scmp.eq.s32.totalorder %s29, 1
    %p341 = por %p339, %p340
    %p342 = scmp.ne.s32.totalorder %s333, %s334
    %p343 = scmp.eq.s32.totalorder %s29, 0
    %p344 = por %p342, %p343
    %p345 = scmp.ne.s32.totalorder %s333, %s334
    %p346 = scmp.eq.s32.totalorder %s30, 1
    %p347 = por %p345, %p346
    %p349 = scmp.ne.s32.totalorder %s334, %s348
    %p350 = scmp.eq.s32.totalorder %s30, 0
    %p351 = por %p349, %p350
    %s353 = sadd.s32 %s352, 1
    %p356 = scmp.eq.s32.totalorder %s24, 1
    %p357 = scmp.ne.s32.totalorder %s352, %s354
    %p358 = scmp.eq.s32.totalorder %s24, 0
    %p359 = por %p357, %p358
    %p360 = scmp.ne.s32.totalorder %s352, %s354
    %p361 = scmp.eq.s32.totalorder %s29, 1
    %p362 = por %p360, %p361
    %p363 = scmp.ne.s32.totalorder %s354, %s355
    %p364 = scmp.eq.s32.totalorder %s29, 0
    %p365 = por %p363, %p364
    %p366 = scmp.ne.s32.totalorder %s354, %s355
    %p367 = scmp.eq.s32.totalorder %s30, 1
    %p368 = por %p366, %p367
    %p370 = scmp.ne.s32.totalorder %s355, %s369
    %p371 = scmp.eq.s32.totalorder %s30, 0
    %p372 = por %p370, %p371
    %s374 = sadd.s32 %s373, 1
    %p377 = scmp.eq.s32.totalorder %s24, 1
    %p378 = scmp.ne.s32.totalorder %s373, %s375
    %p379 = scmp.eq.s32.totalorder %s24, 0
    %p380 = por %p378, %p379
    %p381 = scmp.ne.s32.totalorder %s373, %s375
    %p382 = scmp.eq.s32.totalorder %s29, 1
    %p383 = por %p381, %p382
    %p384 = scmp.ne.s32.totalorder %s375, %s376
    %p385 = scmp.eq.s32.totalorder %s29, 0
    %p386 = por %p384, %p385
    %p387 = scmp.ne.s32.totalorder %s375, %s376
    %p388 = scmp.eq.s32.totalorder %s30, 1
    %p389 = por %p387, %p388
    %p391 = scmp.ne.s32.totalorder %s376, %s390
    %p392 = scmp.eq.s32.totalorder %s30, 0
    %p393 = por %p391, %p392
    %s395 = sadd.s32 %s394, 1
    %p398 = scmp.eq.s32.totalorder %s24, 1
    %p399 = scmp.ne.s32.totalorder %s394, %s396
    %p400 = scmp.eq.s32.totalorder %s24, 0
    %p401 = por %p399, %p400
    %p402 = scmp.ne.s32.totalorder %s394, %s396
    %p403 = scmp.eq.s32.totalorder %s29, 1
    %p404 = por %p402, %p403
    %p405 = scmp.ne.s32.totalorder %s396, %s397
    %p406 = scmp.eq.s32.totalorder %s29, 0
    %p407 = por %p405, %p406
    %p408 = scmp.ne.s32.totalorder %s396, %s397
    %p409 = scmp.eq.s32.totalorder %s30, 1
    %p410 = por %p408, %p409
    %p412 = scmp.ne.s32.totalorder %s397, %s411
    %p413 = scmp.eq.s32.totalorder %s30, 0
    %p414 = por %p412, %p413
    %s415 = ssub.s32 %s24, %s31
    %p416 = scmp.eq.s32.totalorder %s415, 0
    %s418 = sadd.s32 %s417, 1
    %s419 = scalar_select %p416, %s417, %s418
    %p422 = pneg %p416
    %p423 = scmp.eq.s32.totalorder %s24, 1
    %p424 = por %p422, %p423
    %p425 = scmp.ne.s32.totalorder %s417, %s420
    %p426 = scmp.eq.s32.totalorder %s24, 0
    %p427 = por %p425, %p426
    %p428 = scmp.ne.s32.totalorder %s417, %s420
    %p429 = scmp.eq.s32.totalorder %s29, 1
    %p430 = por %p428, %p429
    %p431 = scmp.ne.s32.totalorder %s420, %s421
    %p432 = scmp.eq.s32.totalorder %s29, 0
    %p433 = por %p431, %p432
    %p434 = scmp.ne.s32.totalorder %s420, %s421
    %p435 = scmp.eq.s32.totalorder %s30, 1
    %p436 = por %p434, %p435
    %p438 = scmp.ne.s32.totalorder %s421, %s437
    %p439 = scmp.eq.s32.totalorder %s30, 0
    %p440 = por %p438, %p439
    %p441 = scmp.le.s32.totalorder 1, %s24
    %p442 = scmp.lt.s32.totalorder %s24, 3
    %p443 = pnand %p441, %p442
    %p444 = pneg %p443
    // Predicated region
    $region9: #{attention_forward.1} parent=5 // pred_check
      _
    $region10: #{attention_forward.1} parent=5 // pred_check_branch
      %446 = sbr.rel (%p443) target = $region12
    $region11: #{attention_forward.1} parent=5 // pred_region
      %s447 = ssub.s32 %s24, 1
      // Predicated region
      $region13: #{attention_forward.1} parent=11 // pred_check
        %p448 = pneg %p71
      $region14: #{attention_forward.1} parent=11 // pred_check_branch
        %450 = sbr.rel (%p448) target = $region16
      $region15: #{attention_forward.1} parent=11 // pred_region
        _
      $region16: #{attention_forward.1} parent=11 // pred_fallthru
        _
      // Predicated region
      $region17: #{attention_forward.1} parent=11 // pred_check
        %p451 = pneg %p92
      $region18: #{attention_forward.1} parent=11 // pred_check_branch
        %453 = sbr.rel (%p451) target = $region20
      $region19: #{attention_forward.1} parent=11 // pred_region
        _
      $region20: #{attention_forward.1} parent=11 // pred_fallthru
        _
      // Predicated region
      $region21: #{attention_forward.1} parent=11 // pred_check
        %p454 = pneg %p113
      $region22: #{attention_forward.1} parent=11 // pred_check_branch
        %456 = sbr.rel (%p454) target = $region24
      $region23: #{attention_forward.1} parent=11 // pred_region
        _
      $region24: #{attention_forward.1} parent=11 // pred_fallthru
        _
      // Predicated region
      $region25: #{attention_forward.1} parent=11 // pred_check
        %p457 = pneg %p134
      $region26: #{attention_forward.1} parent=11 // pred_check_branch
        %459 = sbr.rel (%p457) target = $region28
      $region27: #{attention_forward.1} parent=11 // pred_region
        _
      $region28: #{attention_forward.1} parent=11 // pred_fallthru
        _
      // Predicated region
      $region29: #{attention_forward.1} parent=11 // pred_check
        %p460 = pneg %p155
      $region30: #{attention_forward.1} parent=11 // pred_check_branch
        %462 = sbr.rel (%p460) target = $region32
      $region31: #{attention_forward.1} parent=11 // pred_region
        _
      $region32: #{attention_forward.1} parent=11 // pred_fallthru
        _
      // Predicated region
      $region33: #{attention_forward.1} parent=11 // pred_check
        %p463 = pneg %p176
      $region34: #{attention_forward.1} parent=11 // pred_check_branch
        %465 = sbr.rel (%p463) target = $region36
      $region35: #{attention_forward.1} parent=11 // pred_region
        _
      $region36: #{attention_forward.1} parent=11 // pred_fallthru
        _
      // Predicated region
      $region37: #{attention_forward.1} parent=11 // pred_check
        %p466 = pneg %p197
      $region38: #{attention_forward.1} parent=11 // pred_check_branch
        %468 = sbr.rel (%p466) target = $region40
      $region39: #{attention_forward.1} parent=11 // pred_region
        _
      $region40: #{attention_forward.1} parent=11 // pred_fallthru
        _
      // Predicated region
      $region41: #{attention_forward.1} parent=11 // pred_check
        %p469 = pneg %p218
      $region42: #{attention_forward.1} parent=11 // pred_check_branch
        %471 = sbr.rel (%p469) target = $region44
      $region43: #{attention_forward.1} parent=11 // pred_region
        _
      $region44: #{attention_forward.1} parent=11 // pred_fallthru
        _
      // Predicated region
      $region45: #{attention_forward.1} parent=11 // pred_check
        %p472 = pneg %p239
      $region46: #{attention_forward.1} parent=11 // pred_check_branch
        %474 = sbr.rel (%p472) target = $region48
      $region47: #{attention_forward.1} parent=11 // pred_region
        _
      $region48: #{attention_forward.1} parent=11 // pred_fallthru
        _
      // Predicated region
      $region49: #{attention_forward.1} parent=11 // pred_check
        %p475 = pneg %p260
      $region50: #{attention_forward.1} parent=11 // pred_check_branch
        %477 = sbr.rel (%p475) target = $region52
      $region51: #{attention_forward.1} parent=11 // pred_region
        _
      $region52: #{attention_forward.1} parent=11 // pred_fallthru
        _
      // Predicated region
      $region53: #{attention_forward.1} parent=11 // pred_check
        %p478 = pneg %p281
      $region54: #{attention_forward.1} parent=11 // pred_check_branch
        %480 = sbr.rel (%p478) target = $region56
      $region55: #{attention_forward.1} parent=11 // pred_region
        _
      $region56: #{attention_forward.1} parent=11 // pred_fallthru
        _
      // Predicated region
      $region57: #{attention_forward.1} parent=11 // pred_check
        %p481 = pneg %p302
      $region58: #{attention_forward.1} parent=11 // pred_check_branch
        %483 = sbr.rel (%p481) target = $region60
      $region59: #{attention_forward.1} parent=11 // pred_region
        _
      $region60: #{attention_forward.1} parent=11 // pred_fallthru
        _
      // Predicated region
      $region61: #{attention_forward.1} parent=11 // pred_check
        %p484 = pneg %p323
      $region62: #{attention_forward.1} parent=11 // pred_check_branch
        %486 = sbr.rel (%p484) target = $region64
      $region63: #{attention_forward.1} parent=11 // pred_region
        _
      $region64: #{attention_forward.1} parent=11 // pred_fallthru
        _
      // Predicated region
      $region65: #{attention_forward.1} parent=11 // pred_check
        %p487 = pneg %p344
      $region66: #{attention_forward.1} parent=11 // pred_check_branch
        %489 = sbr.rel (%p487) target = $region68
      $region67: #{attention_forward.1} parent=11 // pred_region
        _
      $region68: #{attention_forward.1} parent=11 // pred_fallthru
        _
      // Predicated region
      $region69: #{attention_forward.1} parent=11 // pred_check
        %p490 = pneg %p365
      $region70: #{attention_forward.1} parent=11 // pred_check_branch
        %492 = sbr.rel (%p490) target = $region72
      $region71: #{attention_forward.1} parent=11 // pred_region
        _
      $region72: #{attention_forward.1} parent=11 // pred_fallthru
        _
      // Predicated region
      $region73: #{attention_forward.1} parent=11 // pred_check
        %p493 = pneg %p386
      $region74: #{attention_forward.1} parent=11 // pred_check_branch
        %495 = sbr.rel (%p493) target = $region76
      $region75: #{attention_forward.1} parent=11 // pred_region
        _
      $region76: #{attention_forward.1} parent=11 // pred_fallthru
        _
      // Predicated region
      $region77: #{attention_forward.1} parent=11 // pred_check
        %p496 = pneg %p407
      $region78: #{attention_forward.1} parent=11 // pred_check_branch
        %498 = sbr.rel (%p496) target = $region80
      $region79: #{attention_forward.1} parent=11 // pred_region
        _
      $region80: #{attention_forward.1} parent=11 // pred_fallthru
        _
    $region12: #{attention_forward.1} parent=5 // pred_fallthru
      _
    %p499 = scmp.lt.s32.totalorder %s24, 2
    // Predicated region
    $region81: #{attention_forward.1} parent=5 // pred_check
      %p500 = pneg %p499
    $region82: #{attention_forward.1} parent=5 // pred_check_branch
      %502 = sbr.rel (%p500) target = $region84
    $region83: #{attention_forward.1} parent=5 // pred_region
      // Predicated region
      $region85: #{attention_forward.1} parent=83 // pred_check
        %p503 = pneg %p44
      $region86: #{attention_forward.1} parent=83 // pred_check_branch
        %505 = sbr.rel (%p503) target = $region88
      $region87: #{attention_forward.1} parent=83 // pred_region
        %p506 = scmp.lt.s32.totalorder %s24, 1
        %s507 = scalar_select %p506, %s24, 1
        %s508 = smul.addr %s507, 18
        %s509 = smul.addr %s508, 8
        %s510 = scalar_lea.vmem %s0, %s509
      $region88: #{attention_forward.1} parent=83 // pred_fallthru
        _
    $region84: #{attention_forward.1} parent=5 // pred_fallthru
      _
    %p511 = scmp.le.s32.totalorder 1, %s24
    %p512 = scmp.lt.s32.totalorder %s24, 3
    %p513 = pnand %p511, %p512
    %p514 = pneg %p513
    // Predicated region
    $region89: #{attention_forward.1} parent=5 // pred_check
      _
    $region90: #{attention_forward.1} parent=5 // pred_check_branch
      %516 = sbr.rel (%p513) target = $region92
    $region91: #{attention_forward.1} parent=5 // pred_region
      %s517 = ssub.s32 %s24, 1
      %p518 = scmp.lt.s32.totalorder %s29, 1
      %s519 = scalar_select %p518, %s29, 1
      %s520 = smul.addr %s519, 18
      %s521 = smul.addr %s520, 8
      %s522 = scalar_lea.vmem %s0, %s521
      %p523 = pneg %p50
      %p524 = pneg %p47
      %p525 = pneg %p71
      %p526 = pneg %p68
      %p527 = pneg %p92
      %p528 = pneg %p89
      %p529 = pneg %p113
      %p530 = pneg %p110
      %p531 = pneg %p134
      %p532 = pneg %p131
      %p533 = pneg %p155
      %p534 = pneg %p152
      %p535 = pneg %p176
      %p536 = pneg %p173
      %p537 = pneg %p197
      %p538 = pneg %p194
      %p539 = pneg %p218
      %p540 = pneg %p215
      %p541 = pneg %p239
      %p542 = pneg %p236
      %p543 = pneg %p260
      %p544 = pneg %p257
      %p545 = pneg %p281
      %p546 = pneg %p278
      %p547 = pneg %p302
      %p548 = pneg %p299
      %p549 = pneg %p323
      %p550 = pneg %p320
      %p551 = pneg %p344
      %p552 = pneg %p341
      %p553 = pneg %p365
      %p554 = pneg %p362
      %p555 = pneg %p386
      %p556 = pneg %p383
      %p557 = pneg %p407
      %p558 = pneg %p404
      %p559 = pneg %p433
      %p560 = pneg %p430
      %p561 = scmp.lt.s32.totalorder %s29, 1
      %s562 = scalar_select %p561, %s29, 1
      %s563 = smul.addr %s562, 8
      %s564 = smul.addr %s563, 8
      %s565 = scalar_lea.vmem %s18, %s564
      %p566 = scmp.lt.s32.totalorder %s29, 1
      %s567 = scalar_select %p566, %s29, 1
      %s568 = smul.addr %s567, 18
      %s569 = smul.addr %s568, 8
      %s570 = scalar_lea.vmem %s0, %s569
      %p571 = scmp.lt.s32.totalorder %s29, 1
      %s572 = scalar_select %p571, %s29, 1
      %s573 = smul.addr %s572, 8
      %s574 = smul.addr %s573, 8
      %s575 = scalar_lea.vmem %s18, %s574
      %v577 = vld [vmem:[%s570] sm:$0xff]
      %v578 = vld [vmem:[%s570 + $0x10] sm:$0xff]
      %v579 = vld [vmem:[%s570 + $0x20] sm:$0xff]
      %v580 = vld [vmem:[%s570 + $0x30] sm:$0xff]
      %v581 = vld [vmem:[%s570 + $0x40] sm:$0xff]
      %v582 = vld [vmem:[%s570 + $0x50] sm:$0xff]
      %v583 = vld [vmem:[%s570 + $0x60] sm:$0xff]
      %v584 = vld [vmem:[%s570 + $0x70] sm:$0xff]
      %v585 = vld [vmem:[%s570 + $0x1] sm:$0xff]
      %v586 = vld [vmem:[%s570 + $0x11] sm:$0xff]
      %v587 = vld [vmem:[%s570 + $0x21] sm:$0xff]
      %v588 = vld [vmem:[%s570 + $0x31] sm:$0xff]
      %v589 = vld [vmem:[%s570 + $0x41] sm:$0xff]
      %v590 = vld [vmem:[%s570 + $0x51] sm:$0xff]
      %v591 = vld [vmem:[%s570 + $0x61] sm:$0xff]
      %v592 = vld [vmem:[%s570 + $0x71] sm:$0xff]
      %s593 = scalar_lea.vmem %s570, 16
      %v594 = vld [vmem:[%s593] sm:$0xff]
      %v595 = vld [vmem:[%s593 + $0x10] sm:$0xff]
      %v596 = vld [vmem:[%s593 + $0x20] sm:$0xff]
      %v597 = vld [vmem:[%s593 + $0x30] sm:$0xff]
      %v598 = vld [vmem:[%s593 + $0x40] sm:$0xff]
      %v599 = vld [vmem:[%s593 + $0x50] sm:$0xff]
      %v600 = vld [vmem:[%s593 + $0x60] sm:$0xff]
      %v601 = vld [vmem:[%s593 + $0x70] sm:$0xff]
      %v602 = vld [vmem:[%s593 + $0x1] sm:$0xff]
      %v603 = vld [vmem:[%s593 + $0x11] sm:$0xff]
      %v604 = vld [vmem:[%s593 + $0x21] sm:$0xff]
      %v605 = vld [vmem:[%s593 + $0x31] sm:$0xff]
      %v606 = vld [vmem:[%s593 + $0x41] sm:$0xff]
      %v607 = vld [vmem:[%s593 + $0x51] sm:$0xff]
      %v608 = vld [vmem:[%s593 + $0x61] sm:$0xff]
      %v609 = vld [vmem:[%s593 + $0x71] sm:$0xff]
      %v610 = vpack.c.bf16 %v578, %v577
      %v611 = vpack.c.bf16 %v586, %v585
      %v612 = vpack.c.bf16 %v595, %v594
      %v613 = vpack.c.bf16 %v603, %v602
      %v614 = vpack.c.bf16 %v580, %v579
      %v615 = vpack.c.bf16 %v588, %v587
      %v616 = vpack.c.bf16 %v597, %v596
      %v617 = vpack.c.bf16 %v605, %v604
      %v618 = vpack.c.bf16 %v582, %v581
      %v619 = vpack.c.bf16 %v590, %v589
      %v620 = vpack.c.bf16 %v599, %v598
      %v621 = vpack.c.bf16 %v607, %v606
      %v622 = vpack.c.bf16 %v584, %v583
      %v623 = vpack.c.bf16 %v592, %v591
      %v624 = vpack.c.bf16 %v601, %v600
      %v625 = vpack.c.bf16 %v609, %v608
      %v626 = vld [vmem:[%s1] sm:$0xf]
      %v627 = vld [vmem:[%s1 + $0x4] sm:$0xf]
      %v628 = vld [vmem:[%s1 + $0x8] sm:$0xf]
      %v629 = vld [vmem:[%s1 + $0xc] sm:$0xf]
      %v630 = vld [vmem:[%s1 + $0x10] sm:$0xf]
      %v631 = vld [vmem:[%s1 + $0x14] sm:$0xf]
      %v632 = vld [vmem:[%s1 + $0x18] sm:$0xf]
      %v633 = vld [vmem:[%s1 + $0x1c] sm:$0xf]
      %v634 = vld [vmem:[%s1 + $0x20] sm:$0xf]
      %v635 = vld [vmem:[%s1 + $0x24] sm:$0xf]
      %v636 = vld [vmem:[%s1 + $0x28] sm:$0xf]
      %v637 = vld [vmem:[%s1 + $0x2c] sm:$0xf]
      %v638 = vld [vmem:[%s1 + $0x30] sm:$0xf]
      %v639 = vld [vmem:[%s1 + $0x34] sm:$0xf]
      %v640 = vld [vmem:[%s1 + $0x38] sm:$0xf]
      %v641 = vld [vmem:[%s1 + $0x3c] sm:$0xf]
      %v642 = vld [vmem:[%s1 + $0x40] sm:$0xf]
      %v643 = vld [vmem:[%s1 + $0x44] sm:$0xf]
      %v644 = vld [vmem:[%s1 + $0x48] sm:$0xf]
      %v645 = vld [vmem:[%s1 + $0x4c] sm:$0xf]
      %v646 = vld [vmem:[%s1 + $0x50] sm:$0xf]
      %v647 = vld [vmem:[%s1 + $0x54] sm:$0xf]
      %v648 = vld [vmem:[%s1 + $0x58] sm:$0xf]
      %v649 = vld [vmem:[%s1 + $0x5c] sm:$0xf]
      %v650 = vld [vmem:[%s1 + $0x60] sm:$0xf]
      %v651 = vld [vmem:[%s1 + $0x64] sm:$0xf]
      %v652 = vld [vmem:[%s1 + $0x68] sm:$0xf]
      %v653 = vld [vmem:[%s1 + $0x6c] sm:$0xf]
      %v654 = vld [vmem:[%s1 + $0x70] sm:$0xf]
      %v655 = vld [vmem:[%s1 + $0x74] sm:$0xf]
      %v656 = vld [vmem:[%s1 + $0x78] sm:$0xf]
      %v657 = vld [vmem:[%s1 + $0x7c] sm:$0xf]
      %v658 = vld [vmem:[%s1 + $0x80] sm:$0xf]
      %v659 = vld [vmem:[%s1 + $0x84] sm:$0xf]
      %v660 = vld [vmem:[%s1 + $0x88] sm:$0xf]
      %v661 = vld [vmem:[%s1 + $0x8c] sm:$0xf]
      %v662 = vld [vmem:[%s1 + $0x90] sm:$0xf]
      %v663 = vld [vmem:[%s1 + $0x94] sm:$0xf]
      %v664 = vld [vmem:[%s1 + $0x98] sm:$0xf]
      %v665 = vld [vmem:[%s1 + $0x9c] sm:$0xf]
      %v666 = vld [vmem:[%s1 + $0xa0] sm:$0xf]
      %v667 = vld [vmem:[%s1 + $0xa4] sm:$0xf]
      %v668 = vld [vmem:[%s1 + $0xa8] sm:$0xf]
      %v669 = vld [vmem:[%s1 + $0xac] sm:$0xf]
      %v670 = vld [vmem:[%s1 + $0xb0] sm:$0xf]
      %v671 = vld [vmem:[%s1 + $0xb4] sm:$0xf]
      %v672 = vld [vmem:[%s1 + $0xb8] sm:$0xf]
      %v673 = vld [vmem:[%s1 + $0xbc] sm:$0xf]
      %v674 = vld [vmem:[%s1 + $0xc0] sm:$0xf]
      %v675 = vld [vmem:[%s1 + $0xc4] sm:$0xf]
      %v676 = vld [vmem:[%s1 + $0xc8] sm:$0xf]
      %v677 = vld [vmem:[%s1 + $0xcc] sm:$0xf]
      %v678 = vld [vmem:[%s1 + $0xd0] sm:$0xf]
      %v679 = vld [vmem:[%s1 + $0xd4] sm:$0xf]
      %v680 = vld [vmem:[%s1 + $0xd8] sm:$0xf]
      %v681 = vld [vmem:[%s1 + $0xdc] sm:$0xf]
      %v682 = vld [vmem:[%s1 + $0xe0] sm:$0xf]
      %v683 = vld [vmem:[%s1 + $0xe4] sm:$0xf]
      %v684 = vld [vmem:[%s1 + $0xe8] sm:$0xf]
      %v685 = vld [vmem:[%s1 + $0xec] sm:$0xf]
      %v686 = vld [vmem:[%s1 + $0xf0] sm:$0xf]
      %v687 = vld [vmem:[%s1 + $0xf4] sm:$0xf]
      %v688 = vld [vmem:[%s1 + $0xf8] sm:$0xf]
      %v689 = vld [vmem:[%s1 + $0xfc] sm:$0xf]
      %v690 = vld [vmem:[%s2] sm:$0x1]
      %v692 = vlaneseq
      %v693 = vshrl.u32 %v692, 7
      %v694 = vsub.s32 0, %v693
      %v695 = vrot.slane %v690, %v694
      %v761 = vunpack.c.l.b16 %v626
      %v762 = vunpack.c.l.b16 %v627
      %v763 = vunpack.c.l.b16 %v628
      %v764 = vunpack.c.l.b16 %v629
      %v765 = vunpack.c.l.b16 %v630
      %v766 = vunpack.c.l.b16 %v631
      %v767 = vunpack.c.l.b16 %v632
      %v768 = vunpack.c.l.b16 %v633
      %v769 = vunpack.c.l.b16 %v634
      %v770 = vunpack.c.l.b16 %v635
      %v771 = vunpack.c.l.b16 %v636
      %v772 = vunpack.c.l.b16 %v637
      %v773 = vunpack.c.l.b16 %v638
      %v774 = vunpack.c.l.b16 %v639
      %v775 = vunpack.c.l.b16 %v640
      %v776 = vunpack.c.l.b16 %v641
      %v777 = vunpack.c.l.b16 %v642
      %v778 = vunpack.c.l.b16 %v643
      %v779 = vunpack.c.l.b16 %v644
      %v780 = vunpack.c.l.b16 %v645
      %v781 = vunpack.c.l.b16 %v646
      %v782 = vunpack.c.l.b16 %v647
      %v783 = vunpack.c.l.b16 %v648
      %v784 = vunpack.c.l.b16 %v649
      %v785 = vunpack.c.l.b16 %v650
      %v786 = vunpack.c.l.b16 %v651
      %v787 = vunpack.c.l.b16 %v652
      %v788 = vunpack.c.l.b16 %v653
      %v789 = vunpack.c.l.b16 %v654
      %v790 = vunpack.c.l.b16 %v655
      %v791 = vunpack.c.l.b16 %v656
      %v792 = vunpack.c.l.b16 %v657
      %v793 = vunpack.c.l.b16 %v658
      %v794 = vunpack.c.l.b16 %v659
      %v795 = vunpack.c.l.b16 %v660
      %v796 = vunpack.c.l.b16 %v661
      %v797 = vunpack.c.l.b16 %v662
      %v798 = vunpack.c.l.b16 %v663
      %v799 = vunpack.c.l.b16 %v664
      %v800 = vunpack.c.l.b16 %v665
      %v801 = vunpack.c.l.b16 %v666
      %v802 = vunpack.c.l.b16 %v667
      %v803 = vunpack.c.l.b16 %v668
      %v804 = vunpack.c.l.b16 %v669
      %v805 = vunpack.c.l.b16 %v670
      %v806 = vunpack.c.l.b16 %v671
      %v807 = vunpack.c.l.b16 %v672
      %v808 = vunpack.c.l.b16 %v673
      %v809 = vunpack.c.l.b16 %v674
      %v810 = vunpack.c.l.b16 %v675
      %v811 = vunpack.c.l.b16 %v676
      %v812 = vunpack.c.l.b16 %v677
      %v813 = vunpack.c.l.b16 %v678
      %v814 = vunpack.c.l.b16 %v679
      %v815 = vunpack.c.l.b16 %v680
      %v816 = vunpack.c.l.b16 %v681
      %v817 = vunpack.c.l.b16 %v682
      %v818 = vunpack.c.l.b16 %v683
      %v819 = vunpack.c.l.b16 %v684
      %v820 = vunpack.c.l.b16 %v685
      %v821 = vunpack.c.l.b16 %v686
      %v822 = vunpack.c.l.b16 %v687
      %v823 = vunpack.c.l.b16 %v688
      %v824 = vunpack.c.l.b16 %v689
      %v825 = vpack.c.b16 %v762, %v761
      %v826 = vpack.c.b16 %v764, %v763
      %v827 = vpack.c.b16 %v766, %v765
      %v828 = vpack.c.b16 %v768, %v767
      %v829 = vpack.c.b16 %v770, %v769
      %v830 = vpack.c.b16 %v772, %v771
      %v831 = vpack.c.b16 %v774, %v773
      %v832 = vpack.c.b16 %v776, %v775
      %v833 = vpack.c.b16 %v778, %v777
      %v834 = vpack.c.b16 %v780, %v779
      %v835 = vpack.c.b16 %v782, %v781
      %v836 = vpack.c.b16 %v784, %v783
      %v837 = vpack.c.b16 %v786, %v785
      %v838 = vpack.c.b16 %v788, %v787
      %v839 = vpack.c.b16 %v790, %v789
      %v840 = vpack.c.b16 %v792, %v791
      %v841 = vpack.c.b16 %v794, %v793
      %v842 = vpack.c.b16 %v796, %v795
      %v843 = vpack.c.b16 %v798, %v797
      %v844 = vpack.c.b16 %v800, %v799
      %v845 = vpack.c.b16 %v802, %v801
      %v846 = vpack.c.b16 %v804, %v803
      %v847 = vpack.c.b16 %v806, %v805
      %v848 = vpack.c.b16 %v808, %v807
      %v849 = vpack.c.b16 %v810, %v809
      %v850 = vpack.c.b16 %v812, %v811
      %v851 = vpack.c.b16 %v814, %v813
      %v852 = vpack.c.b16 %v816, %v815
      %v853 = vpack.c.b16 %v818, %v817
      %v854 = vpack.c.b16 %v820, %v819
      %v855 = vpack.c.b16 %v822, %v821
      %v856 = vpack.c.b16 %v824, %v823
      %889 = vmatprep.subr.bf16.mxu0 0
      %890 = vmatpush1.bf16.msra.mxu0 %v832
      %891 = vmatprep.subr.bf16.mxu0 0
      %892 = vmatpush1.bf16.msra.mxu0 %v831
      %893 = vmatprep.subr.bf16.mxu0 0
      %894 = vmatpush1.bf16.msra.mxu0 %v830
      %895 = vmatprep.subr.bf16.mxu0 0
      %896 = vmatpush1.bf16.msra.mxu0 %v829
      %897 = vmatprep.subr.bf16.mxu0 0
      %898 = vmatpush1.bf16.msra.mxu0 %v828
      %899 = vmatprep.subr.bf16.mxu0 0
      %900 = vmatpush1.bf16.msra.mxu0 %v827
      %901 = vmatprep.subr.bf16.mxu0 0
      %902 = vmatpush1.bf16.msra.mxu0 %v826
      %903 = vmatprep.subr.bf16.mxu0 0
      %904 = vmatpush1.bf16.msra.mxu0 %v825
      %905 = vmatprep.subr.bf16.mxu0 0
      %906 = vmatpush2.bf16.msra.mxu0 %v840
      %907 = vmatprep.subr.bf16.mxu0 0
      %908 = vmatpush2.bf16.msra.mxu0 %v839
      %909 = vmatprep.subr.bf16.mxu0 0
      %910 = vmatpush2.bf16.msra.mxu0 %v838
      %911 = vmatprep.subr.bf16.mxu0 0
      %912 = vmatpush2.bf16.msra.mxu0 %v837
      %913 = vmatprep.subr.bf16.mxu0 0
      %914 = vmatpush2.bf16.msra.mxu0 %v836
      %915 = vmatprep.subr.bf16.mxu0 0
      %916 = vmatpush2.bf16.msra.mxu0 %v835
      %917 = vmatprep.subr.bf16.mxu0 0
      %918 = vmatpush2.bf16.msra.mxu0 %v834
      %919 = vmatprep.subr.bf16.mxu0 0
      %920 = vmatpush2.bf16.msra.mxu0 %v833
      %921 = vmatprep.mubr.bf16.mxu0 %v611
      %922 = vmatmul.mubr.bf16.gmra.mxu0 %v610
      %v923 = vpop.f32.mrf.mxu0
      %v924 = vadd.f32 %v695, %v923
      %v925 = vpop.f32.mrf.mxu0
      %v926 = vpop.f32.mrf.mxu0
      %v927 = vadd.f32 %v695, %v926
      %v928 = vpop.f32.mrf.mxu0
      %929 = vmatprep.mubr.bf16.mxu0 %v615
      %930 = vmatmul.mubr.bf16.gmra.mxu0 %v614
      %v931 = vpop.f32.mrf.mxu0
      %v932 = vadd.f32 %v695, %v931
      %v933 = vpop.f32.mrf.mxu0
      %v934 = vpop.f32.mrf.mxu0
      %v935 = vadd.f32 %v695, %v934
      %v936 = vpop.f32.mrf.mxu0
      %937 = vmatprep.mubr.bf16.mxu0 %v619
      %938 = vmatmul.mubr.bf16.gmra.mxu0 %v618
      %v939 = vpop.f32.mrf.mxu0
      %v940 = vadd.f32 %v695, %v939
      %v941 = vpop.f32.mrf.mxu0
      %v942 = vpop.f32.mrf.mxu0
      %v943 = vadd.f32 %v695, %v942
      %v944 = vpop.f32.mrf.mxu0
      %945 = vmatprep.mubr.bf16.mxu0 %v623
      %946 = vmatmul.mubr.bf16.gmra.mxu0 %v622
      %v947 = vpop.f32.mrf.mxu0
      %v948 = vadd.f32 %v695, %v947
      %v949 = vpop.f32.mrf.mxu0
      %v950 = vpop.f32.mrf.mxu0
      %v951 = vadd.f32 %v695, %v950
      %v952 = vpop.f32.mrf.mxu0
      %953 = vdwg.mxu0
      %954 = vmatprep.subr.bf16.mxu0 0
      %955 = vmatpush1.bf16.msra.mxu0 %v848
      %956 = vmatprep.subr.bf16.mxu0 0
      %957 = vmatpush1.bf16.msra.mxu0 %v847
      %958 = vmatprep.subr.bf16.mxu0 0
      %959 = vmatpush1.bf16.msra.mxu0 %v846
      %960 = vmatprep.subr.bf16.mxu0 0
      %961 = vmatpush1.bf16.msra.mxu0 %v845
      %962 = vmatprep.subr.bf16.mxu0 0
      %963 = vmatpush1.bf16.msra.mxu0 %v844
      %964 = vmatprep.subr.bf16.mxu0 0
      %965 = vmatpush1.bf16.msra.mxu0 %v843
      %966 = vmatprep.subr.bf16.mxu0 0
      %967 = vmatpush1.bf16.msra.mxu0 %v842
      %968 = vmatprep.subr.bf16.mxu0 0
      %969 = vmatpush1.bf16.msra.mxu0 %v841
      %970 = vmatprep.subr.bf16.mxu0 0
      %971 = vmatpush2.bf16.msra.mxu0 %v856
      %972 = vmatprep.subr.bf16.mxu0 0
      %973 = vmatpush2.bf16.msra.mxu0 %v855
      %974 = vmatprep.subr.bf16.mxu0 0
      %975 = vmatpush2.bf16.msra.mxu0 %v854
      %976 = vmatprep.subr.bf16.mxu0 0
      %977 = vmatpush2.bf16.msra.mxu0 %v853
      %978 = vmatprep.subr.bf16.mxu0 0
      %979 = vmatpush2.bf16.msra.mxu0 %v852
      %980 = vmatprep.subr.bf16.mxu0 0
      %981 = vmatpush2.bf16.msra.mxu0 %v851
      %982 = vmatprep.subr.bf16.mxu0 0
      %983 = vmatpush2.bf16.msra.mxu0 %v850
      %984 = vmatprep.subr.bf16.mxu0 0
      %985 = vmatpush2.bf16.msra.mxu0 %v849
      %986 = vmatprep.mubr.bf16.mxu0 %v613
      %987 = vmatmul.mubr.bf16.gmra.mxu0 %v612
      %v988 = vpop.f32.mrf.mxu0
      %v989 = vadd.f32 %v924, %v988
      %v990 = vpop.f32.mrf.mxu0
      %v991 = vpop.f32.mrf.mxu0
      %v992 = vadd.f32 %v927, %v991
      %v993 = vpop.f32.mrf.mxu0
      %994 = vmatprep.mubr.bf16.mxu0 %v617
      %995 = vmatmul.mubr.bf16.gmra.mxu0 %v616
      %v996 = vpop.f32.mrf.mxu0
      %v997 = vadd.f32 %v932, %v996
      %v998 = vpop.f32.mrf.mxu0
      %v999 = vpop.f32.mrf.mxu0
      %v1000 = vadd.f32 %v935, %v999
      %v1001 = vpop.f32.mrf.mxu0
      %1002 = vmatprep.mubr.bf16.mxu0 %v621
      %1003 = vmatmul.mubr.bf16.gmra.mxu0 %v620
      %v1004 = vpop.f32.mrf.mxu0
      %v1005 = vadd.f32 %v940, %v1004
      %v1006 = vpop.f32.mrf.mxu0
      %v1007 = vpop.f32.mrf.mxu0
      %v1008 = vadd.f32 %v943, %v1007
      %v1009 = vpop.f32.mrf.mxu0
      %1010 = vmatprep.mubr.bf16.mxu0 %v625
      %1011 = vmatmul.mubr.bf16.gmra.mxu0 %v624
      %v1012 = vpop.f32.mrf.mxu0
      %v1013 = vadd.f32 %v948, %v1012
      %v1014 = vpop.f32.mrf.mxu0
      %v1015 = vpop.f32.mrf.mxu0
      %v1016 = vadd.f32 %v951, %v1015
      %v1017 = vpop.f32.mrf.mxu0
      %1018 = vdwg.mxu0
      %v1019 = vmul.f32 %v989, 0.5
      %v1020 = vmul.f32 %v992, 0.5
      %v1021 = vmul.f32 %v997, 0.5
      %v1022 = vmul.f32 %v1000, 0.5
      %v1023 = vmul.f32 %v1005, 0.5
      %v1024 = vmul.f32 %v1008, 0.5
      %v1025 = vmul.f32 %v1013, 0.5
      %v1026 = vmul.f32 %v1016, 0.5
      %v1027 = vmul.f32 %v989, 0.70710677
      %v1028 = vmul.f32 %v992, 0.70710677
      %v1029 = vmul.f32 %v997, 0.70710677
      %v1030 = vmul.f32 %v1000, 0.70710677
      %v1031 = vmul.f32 %v1005, 0.70710677
      %v1032 = vmul.f32 %v1008, 0.70710677
      %v1033 = vmul.f32 %v1013, 0.70710677
      %v1034 = vmul.f32 %v1016, 0.70710677
      %v1035 = vand.u32 2147483647, %v1027
      %v1036 = vand.u32 2147483647, %v1028
      %v1037 = vand.u32 2147483647, %v1029
      %v1038 = vand.u32 2147483647, %v1030
      %v1039 = vand.u32 2147483647, %v1031
      %v1040 = vand.u32 2147483647, %v1032
      %v1041 = vand.u32 2147483647, %v1033
      %v1042 = vand.u32 2147483647, %v1034
      %v1043 = vmul.f32 %v1035, 0.3275911
      %v1044 = vmul.f32 %v1036, 0.3275911
      %v1045 = vmul.f32 %v1037, 0.3275911
      %v1046 = vmul.f32 %v1038, 0.3275911
      %v1047 = vmul.f32 %v1039, 0.3275911
      %v1048 = vmul.f32 %v1040, 0.3275911
      %v1049 = vmul.f32 %v1041, 0.3275911
      %v1050 = vmul.f32 %v1042, 0.3275911
      %v1051 = vadd.f32 %v1043, 1.0
      %v1052 = vadd.f32 %v1044, 1.0
      %v1053 = vadd.f32 %v1045, 1.0
      %v1054 = vadd.f32 %v1046, 1.0
      %v1055 = vadd.f32 %v1047, 1.0
      %v1056 = vadd.f32 %v1048, 1.0
      %v1057 = vadd.f32 %v1049, 1.0
      %v1058 = vadd.f32 %v1050, 1.0
      %v1059 = vrcp.pop %v1051
      %v1060 = vmul.f32 1.0, %v1059
      %v1061 = vrcp.pop %v1052
      %v1062 = vmul.f32 1.0, %v1061
      %v1063 = vrcp.pop %v1053
      %v1064 = vmul.f32 1.0, %v1063
      %v1065 = vrcp.pop %v1054
      %v1066 = vmul.f32 1.0, %v1065
      %v1067 = vrcp.pop %v1055
      %v1068 = vmul.f32 1.0, %v1067
      %v1069 = vrcp.pop %v1056
      %v1070 = vmul.f32 1.0, %v1069
      %v1071 = vrcp.pop %v1057
      %v1072 = vmul.f32 1.0, %v1071
      %v1073 = vrcp.pop %v1058
      %v1074 = vmul.f32 1.0, %v1073
      %v1075 = vmul.f32 %v1060, 1.0614054
      %v1076 = vmul.f32 %v1062, 1.0614054
      %v1077 = vmul.f32 %v1064, 1.0614054
      %v1078 = vmul.f32 %v1066, 1.0614054
      %v1079 = vmul.f32 %v1068, 1.0614054
      %v1080 = vmul.f32 %v1070, 1.0614054
      %v1081 = vmul.f32 %v1072, 1.0614054
      %v1082 = vmul.f32 %v1074, 1.0614054
      %v1083 = vadd.f32 %v1075, -1.4531521
      %v1084 = vadd.f32 %v1076, -1.4531521
      %v1085 = vadd.f32 %v1077, -1.4531521
      %v1086 = vadd.f32 %v1078, -1.4531521
      %v1087 = vadd.f32 %v1079, -1.4531521
      %v1088 = vadd.f32 %v1080, -1.4531521
      %v1089 = vadd.f32 %v1081, -1.4531521
      %v1090 = vadd.f32 %v1082, -1.4531521
      %v1091 = vmul.f32 %v1083, %v1060
      %v1092 = vmul.f32 %v1084, %v1062
      %v1093 = vmul.f32 %v1085, %v1064
      %v1094 = vmul.f32 %v1086, %v1066
      %v1095 = vmul.f32 %v1087, %v1068
      %v1096 = vmul.f32 %v1088, %v1070
      %v1097 = vmul.f32 %v1089, %v1072
      %v1098 = vmul.f32 %v1090, %v1074
      %v1099 = vadd.f32 %v1091, 1.4214138
      %v1100 = vadd.f32 %v1092, 1.4214138
      %v1101 = vadd.f32 %v1093, 1.4214138
      %v1102 = vadd.f32 %v1094, 1.4214138
      %v1103 = vadd.f32 %v1095, 1.4214138
      %v1104 = vadd.f32 %v1096, 1.4214138
      %v1105 = vadd.f32 %v1097, 1.4214138
      %v1106 = vadd.f32 %v1098, 1.4214138
      %v1107 = vmul.f32 %v1099, %v1060
      %v1108 = vmul.f32 %v1100, %v1062
      %v1109 = vmul.f32 %v1101, %v1064
      %v1110 = vmul.f32 %v1102, %v1066
      %v1111 = vmul.f32 %v1103, %v1068
      %v1112 = vmul.f32 %v1104, %v1070
      %v1113 = vmul.f32 %v1105, %v1072
      %v1114 = vmul.f32 %v1106, %v1074
      %v1115 = vadd.f32 %v1107, -0.28449672
      %v1116 = vadd.f32 %v1108, -0.28449672
      %v1117 = vadd.f32 %v1109, -0.28449672
      %v1118 = vadd.f32 %v1110, -0.28449672
      %v1119 = vadd.f32 %v1111, -0.28449672
      %v1120 = vadd.f32 %v1112, -0.28449672
      %v1121 = vadd.f32 %v1113, -0.28449672
      %v1122 = vadd.f32 %v1114, -0.28449672
      %v1123 = vmul.f32 %v1115, %v1060
      %v1124 = vmul.f32 %v1116, %v1062
      %v1125 = vmul.f32 %v1117, %v1064
      %v1126 = vmul.f32 %v1118, %v1066
      %v1127 = vmul.f32 %v1119, %v1068
      %v1128 = vmul.f32 %v1120, %v1070
      %v1129 = vmul.f32 %v1121, %v1072
      %v1130 = vmul.f32 %v1122, %v1074
      %v1131 = vadd.f32 %v1123, 0.2548296
      %v1132 = vadd.f32 %v1124, 0.2548296
      %v1133 = vadd.f32 %v1125, 0.2548296
      %v1134 = vadd.f32 %v1126, 0.2548296
      %v1135 = vadd.f32 %v1127, 0.2548296
      %v1136 = vadd.f32 %v1128, 0.2548296
      %v1137 = vadd.f32 %v1129, 0.2548296
      %v1138 = vadd.f32 %v1130, 0.2548296
      %v1139 = vmul.f32 %v1131, %v1060
      %v1140 = vmul.f32 %v1132, %v1062
      %v1141 = vmul.f32 %v1133, %v1064
      %v1142 = vmul.f32 %v1134, %v1066
      %v1143 = vmul.f32 %v1135, %v1068
      %v1144 = vmul.f32 %v1136, %v1070
      %v1145 = vmul.f32 %v1137, %v1072
      %v1146 = vmul.f32 %v1138, %v1074
      %v1147 = vsub.f32 0.0, %v1035
      %v1148 = vsub.f32 0.0, %v1036
      %v1149 = vsub.f32 0.0, %v1037
      %v1150 = vsub.f32 0.0, %v1038
      %v1151 = vsub.f32 0.0, %v1039
      %v1152 = vsub.f32 0.0, %v1040
      %v1153 = vsub.f32 0.0, %v1041
      %v1154 = vsub.f32 0.0, %v1042
      %v1155 = vmul.f32 %v1147, %v1035
      %v1156 = vmul.f32 %v1148, %v1036
      %v1157 = vmul.f32 %v1149, %v1037
      %v1158 = vmul.f32 %v1150, %v1038
      %v1159 = vmul.f32 %v1151, %v1039
      %v1160 = vmul.f32 %v1152, %v1040
      %v1161 = vmul.f32 %v1153, %v1041
      %v1162 = vmul.f32 %v1154, %v1042
      %v1163 = vmul.f32 %v1155, 1.442695
      %v1164 = vpow.pop %v1163
      %v1165 = vmul.f32 %v1156, 1.442695
      %v1166 = vpow.pop %v1165
      %v1167 = vmul.f32 %v1157, 1.442695
      %v1168 = vpow.pop %v1167
      %v1169 = vmul.f32 %v1158, 1.442695
      %v1170 = vpow.pop %v1169
      %v1171 = vmul.f32 %v1159, 1.442695
      %v1172 = vpow.pop %v1171
      %v1173 = vmul.f32 %v1160, 1.442695
      %v1174 = vpow.pop %v1173
      %v1175 = vmul.f32 %v1161, 1.442695
      %v1176 = vpow.pop %v1175
      %v1177 = vmul.f32 %v1162, 1.442695
      %v1178 = vpow.pop %v1177
      %v1179 = vmul.f32 %v1139, %v1164
      %v1180 = vmul.f32 %v1140, %v1166
      %v1181 = vmul.f32 %v1141, %v1168
      %v1182 = vmul.f32 %v1142, %v1170
      %v1183 = vmul.f32 %v1143, %v1172
      %v1184 = vmul.f32 %v1144, %v1174
      %v1185 = vmul.f32 %v1145, %v1176
      %v1186 = vmul.f32 %v1146, %v1178
      %v1187 = vsub.f32 1.0, %v1179
      %v1188 = vsub.f32 1.0, %v1180
      %v1189 = vsub.f32 1.0, %v1181
      %v1190 = vsub.f32 1.0, %v1182
      %v1191 = vsub.f32 1.0, %v1183
      %v1192 = vsub.f32 1.0, %v1184
      %v1193 = vsub.f32 1.0, %v1185
      %v1194 = vsub.f32 1.0, %v1186
      %vm1195 = vcmp.lt.f32.partialorder %v1027, 0.0
      %vm1196 = vcmp.lt.f32.partialorder %v1028, 0.0
      %vm1197 = vcmp.lt.f32.partialorder %v1029, 0.0
      %vm1198 = vcmp.lt.f32.partialorder %v1030, 0.0
      %vm1199 = vcmp.lt.f32.partialorder %v1031, 0.0
      %vm1200 = vcmp.lt.f32.partialorder %v1032, 0.0
      %vm1201 = vcmp.lt.f32.partialorder %v1033, 0.0
      %vm1202 = vcmp.lt.f32.partialorder %v1034, 0.0
      %v1203 = vsub.f32 0.0, %v1187
      %v1204 = vsub.f32 0.0, %v1188
      %v1205 = vsub.f32 0.0, %v1189
      %v1206 = vsub.f32 0.0, %v1190
      %v1207 = vsub.f32 0.0, %v1191
      %v1208 = vsub.f32 0.0, %v1192
      %v1209 = vsub.f32 0.0, %v1193
      %v1210 = vsub.f32 0.0, %v1194
      %v1211 = vsel %vm1195, %v1203, %v1187
      %v1212 = vsel %vm1196, %v1204, %v1188
      %v1213 = vsel %vm1197, %v1205, %v1189
      %v1214 = vsel %vm1198, %v1206, %v1190
      %v1215 = vsel %vm1199, %v1207, %v1191
      %v1216 = vsel %vm1200, %v1208, %v1192
      %v1217 = vsel %vm1201, %v1209, %v1193
      %v1218 = vsel %vm1202, %v1210, %v1194
      %v1219 = vadd.f32 %v1211, 1.0
      %v1220 = vadd.f32 %v1212, 1.0
      %v1221 = vadd.f32 %v1213, 1.0
      %v1222 = vadd.f32 %v1214, 1.0
      %v1223 = vadd.f32 %v1215, 1.0
      %v1224 = vadd.f32 %v1216, 1.0
      %v1225 = vadd.f32 %v1217, 1.0
      %v1226 = vadd.f32 %v1218, 1.0
      %v1227 = vmul.f32 %v1019, %v1219
      %v1228 = vmul.f32 %v1020, %v1220
      %v1229 = vmul.f32 %v1021, %v1221
      %v1230 = vmul.f32 %v1022, %v1222
      %v1231 = vmul.f32 %v1023, %v1223
      %v1232 = vmul.f32 %v1024, %v1224
      %v1233 = vmul.f32 %v1025, %v1225
      %v1234 = vmul.f32 %v1026, %v1226
      %vm1235 = vcmask 261120
      %1236 = vst.msk [vmem:[#allocation2] sm:$0xff] %vm1235, 0.0
      %vm1237 = vcmask 254976
      %1238 = vst.msk [vmem:[#allocation2 + $0x8] sm:$0x3] %vm1237, 0.0
      %1239 = vst.msk [vmem:[#allocation2 + $0x10] sm:$0xff] %vm1235, 0.0
      %1240 = vst.msk [vmem:[#allocation2 + $0x18] sm:$0x3] %vm1237, 0.0
      %1241 = vst.msk [vmem:[#allocation2 + $0x20] sm:$0xff] %vm1235, 0.0
      %1242 = vst.msk [vmem:[#allocation2 + $0x28] sm:$0x3] %vm1237, 0.0
      %1243 = vst.msk [vmem:[#allocation2 + $0x30] sm:$0xff] %vm1235, 0.0
      %1244 = vst.msk [vmem:[#allocation2 + $0x38] sm:$0x3] %vm1237, 0.0
      %1245 = vst.msk [vmem:[#allocation2 + $0x40] sm:$0xff] %vm1235, 0.0
      %1246 = vst.msk [vmem:[#allocation2 + $0x48] sm:$0x3] %vm1237, 0.0
      %1247 = vst.msk [vmem:[#allocation2 + $0x50] sm:$0xff] %vm1235, 0.0
      %1248 = vst.msk [vmem:[#allocation2 + $0x58] sm:$0x3] %vm1237, 0.0
      %1249 = vst.msk [vmem:[#allocation2 + $0x60] sm:$0xff] %vm1235, 0.0
      %1250 = vst.msk [vmem:[#allocation2 + $0x68] sm:$0x3] %vm1237, 0.0
      %1251 = vst.msk [vmem:[#allocation2 + $0x70] sm:$0xff] %vm1235, 0.0
      %1252 = vst.msk [vmem:[#allocation2 + $0x78] sm:$0x3] %vm1237, 0.0
      %1253 = vst.msk [vmem:[#allocation2 + $0x80] sm:$0xff] %vm1235, 0.0
      %1254 = vst.msk [vmem:[#allocation2 + $0x88] sm:$0x3] %vm1237, 0.0
      %1255 = vst.msk [vmem:[#allocation2 + $0x90] sm:$0xff] %vm1235, 0.0
      %1256 = vst.msk [vmem:[#allocation2 + $0x98] sm:$0x3] %vm1237, 0.0
      %s1257 = scalar_lea.vmem [#allocation2], 16
      %1258 = vst.msk [vmem:[%s1257 + $0x1] sm:$0xff] %vm1235, %v1227
      %1259 = vst.msk [vmem:[%s1257 + $0x11] sm:$0xff] %vm1235, %v1228
      %1260 = vst.msk [vmem:[%s1257 + $0x21] sm:$0xff] %vm1235, %v1229
      %1261 = vst.msk [vmem:[%s1257 + $0x31] sm:$0xff] %vm1235, %v1230
      %1262 = vst.msk [vmem:[%s1257 + $0x41] sm:$0xff] %vm1235, %v1231
      %1263 = vst.msk [vmem:[%s1257 + $0x51] sm:$0xff] %vm1235, %v1232
      %1264 = vst.msk [vmem:[%s1257 + $0x61] sm:$0xff] %vm1235, %v1233
      %1265 = vst.msk [vmem:[%s1257 + $0x71] sm:$0xff] %vm1235, %v1234
      %v1266 = vld [vmem:[#allocation2] ss:$2 sm:$0xf]
      %s1267 = scalar_lea.vmem [#allocation2], 32
      %v1268 = vld [vmem:[%s1267] ss:$2 sm:$0xf]
      %s1269 = scalar_lea.vmem [#allocation2], 64
      %v1270 = vld [vmem:[%s1269] ss:$2 sm:$0xf]
      %s1271 = scalar_lea.vmem [#allocation2], 96
      %v1272 = vld [vmem:[%s1271] ss:$2 sm:$0xf]
      %s1273 = scalar_lea.vmem [#allocation2], 1
      %v1274 = vld [vmem:[%s1273] ss:$2 sm:$0xf]
      %s1275 = scalar_lea.vmem [#allocation2], 33
      %v1276 = vld [vmem:[%s1275] ss:$2 sm:$0xf]
      %s1277 = scalar_lea.vmem [#allocation2], 65
      %v1278 = vld [vmem:[%s1277] ss:$2 sm:$0xf]
      %s1279 = scalar_lea.vmem [#allocation2], 97
      %v1280 = vld [vmem:[%s1279] ss:$2 sm:$0xf]
      %s1281 = scalar_lea.vmem [#allocation2], 2
      %v1282 = vld [vmem:[%s1281] ss:$2 sm:$0xf]
      %s1283 = scalar_lea.vmem [#allocation2], 34
      %v1284 = vld [vmem:[%s1283] ss:$2 sm:$0xf]
      %s1285 = scalar_lea.vmem [#allocation2], 66
      %v1286 = vld [vmem:[%s1285] ss:$2 sm:$0xf]
      %s1287 = scalar_lea.vmem [#allocation2], 98
      %v1288 = vld [vmem:[%s1287] ss:$2 sm:$0xf]
      %v1289 = vld [vmem:[%s1257] ss:$2 sm:$0xf]
      %s1290 = scalar_lea.vmem %s1257, 32 [#allocation2]
      %v1291 = vld [vmem:[%s1290] ss:$2 sm:$0xf]
      %s1292 = scalar_lea.vmem %s1257, 64 [#allocation2]
      %v1293 = vld [vmem:[%s1292] ss:$2 sm:$0xf]
      %s1294 = scalar_lea.vmem %s1257, 96 [#allocation2]
      %v1295 = vld [vmem:[%s1294] ss:$2 sm:$0xf]
      %s1296 = scalar_lea.vmem %s1257, 1 [#allocation2]
      %v1297 = vld [vmem:[%s1296] ss:$2 sm:$0xf]
      %s1298 = scalar_lea.vmem %s1257, 33 [#allocation2]
      %v1299 = vld [vmem:[%s1298] ss:$2 sm:$0xf]
      %s1300 = scalar_lea.vmem %s1257, 65 [#allocation2]
      %v1301 = vld [vmem:[%s1300] ss:$2 sm:$0xf]
      %s1302 = scalar_lea.vmem %s1257, 97 [#allocation2]
      %v1303 = vld [vmem:[%s1302] ss:$2 sm:$0xf]
      %s1304 = scalar_lea.vmem %s1257, 2 [#allocation2]
      %v1305 = vld [vmem:[%s1304] ss:$2 sm:$0xf]
      %s1306 = scalar_lea.vmem %s1257, 34 [#allocation2]
      %v1307 = vld [vmem:[%s1306] ss:$2 sm:$0xf]
      %s1308 = scalar_lea.vmem %s1257, 66 [#allocation2]
      %v1309 = vld [vmem:[%s1308] ss:$2 sm:$0xf]
      %s1310 = scalar_lea.vmem %s1257, 98 [#allocation2]
      %v1311 = vld [vmem:[%s1310] ss:$2 sm:$0xf]
      %s1312 = scalar_lea.vmem [#allocation2], 32
      %v1313 = vld [vmem:[%s1312] ss:$2 sm:$0xf]
      %s1314 = scalar_lea.vmem %s1312, 32 [#allocation2]
      %v1315 = vld [vmem:[%s1314] ss:$2 sm:$0xf]
      %s1316 = scalar_lea.vmem %s1312, 64 [#allocation2]
      %v1317 = vld [vmem:[%s1316] ss:$2 sm:$0xf]
      %s1318 = scalar_lea.vmem %s1312, 96 [#allocation2]
      %v1319 = vld [vmem:[%s1318] ss:$2 sm:$0xf]
      %s1320 = scalar_lea.vmem %s1312, 1 [#allocation2]
      %v1321 = vld [vmem:[%s1320] ss:$2 sm:$0xf]
      %s1322 = scalar_lea.vmem %s1312, 33 [#allocation2]
      %v1323 = vld [vmem:[%s1322] ss:$2 sm:$0xf]
      %s1324 = scalar_lea.vmem %s1312, 65 [#allocation2]
      %v1325 = vld [vmem:[%s1324] ss:$2 sm:$0xf]
      %s1326 = scalar_lea.vmem %s1312, 97 [#allocation2]
      %v1327 = vld [vmem:[%s1326] ss:$2 sm:$0xf]
      %s1328 = scalar_lea.vmem %s1312, 2 [#allocation2]
      %v1329 = vld [vmem:[%s1328] ss:$2 sm:$0xf]
      %s1330 = scalar_lea.vmem %s1312, 34 [#allocation2]
      %v1331 = vld [vmem:[%s1330] ss:$2 sm:$0xf]
      %s1332 = scalar_lea.vmem %s1312, 66 [#allocation2]
      %v1333 = vld [vmem:[%s1332] ss:$2 sm:$0xf]
      %s1334 = scalar_lea.vmem %s1312, 98 [#allocation2]
      %v1335 = vld [vmem:[%s1334] ss:$2 sm:$0xf]
      %v1340 = vcombine.low %v1266, %v1268
      %v1341 = vcombine.low %v1270, %v1272
      %v1348 = vcombine.low %v1274, %v1276
      %v1349 = vcombine.low %v1278, %v1280
      %1350 = vrot.lane.b32.xlu0 %v1348, 32
      %v1351 = vpop.permute.xlu0 %1350
      %1352 = vrot.lane.b32.xlu0 %v1349, 32
      %v1353 = vpop.permute.xlu0 %1352
      %v1360 = vcombine.low %v1282, %v1284
      %v1361 = vcombine.low %v1286, %v1288
      %1362 = vrot.lane.b32.xlu0 %v1360, 64
      %v1363 = vpop.permute.xlu0 %1362
      %1364 = vrot.lane.b32.xlu0 %v1361, 64
      %v1365 = vpop.permute.xlu0 %1364
      %v1372 = vcombine.low %v1289, %v1291
      %v1373 = vcombine.low %v1293, %v1295
      %1374 = vrot.lane.b32.xlu0 %v1372, 96
      %v1375 = vpop.permute.xlu0 %1374
      %1376 = vrot.lane.b32.xlu0 %v1373, 96
      %v1377 = vpop.permute.xlu0 %1376
      %v1384 = vcombine.low %v1297, %v1299
      %v1385 = vcombine.low %v1301, %v1303
      %v1392 = vcombine.low %v1305, %v1307
      %v1393 = vcombine.low %v1309, %v1311
      %1394 = vrot.lane.b32.xlu0 %v1392, 32
      %v1395 = vpop.permute.xlu0 %1394
      %1396 = vrot.lane.b32.xlu0 %v1393, 32
      %v1397 = vpop.permute.xlu0 %1396
      %v1404 = vcombine.low %v1313, %v1315
      %v1405 = vcombine.low %v1317, %v1319
      %1406 = vrot.lane.b32.xlu0 %v1404, 64
      %v1407 = vpop.permute.xlu0 %1406
      %1408 = vrot.lane.b32.xlu0 %v1405, 64
      %v1409 = vpop.permute.xlu0 %1408
      %v1416 = vcombine.low %v1321, %v1323
      %v1417 = vcombine.low %v1325, %v1327
      %1418 = vrot.lane.b32.xlu0 %v1416, 96
      %v1419 = vpop.permute.xlu0 %1418
      %1420 = vrot.lane.b32.xlu0 %v1417, 96
      %v1421 = vpop.permute.xlu0 %1420
      %v1428 = vcombine.low %v1329, %v1331
      %v1429 = vcombine.low %v1333, %v1335
      %v1432 = vsel %vm1235, %v1340, %v1351
      %v1433 = vsel %vm1235, %v1341, %v1353
      %vm1434 = vcmask 523264
      %v1435 = vsel %vm1434, %v1432, %v1363
      %v1436 = vsel %vm1434, %v1433, %v1365
      %vm1437 = vcmask 785408
      %v1438 = vsel %vm1437, %v1435, %v1375
      %v1439 = vsel %vm1437, %v1436, %v1377
      %v1440 = vsel %vm1235, %v1384, %v1395
      %v1441 = vsel %vm1235, %v1385, %v1397
      %v1442 = vsel %vm1434, %v1440, %v1407
      %v1443 = vsel %vm1434, %v1441, %v1409
      %v1444 = vsel %vm1437, %v1442, %v1419
      %v1445 = vsel %vm1437, %v1443, %v1421
      %v1446 = vpack.c.bf16 %v1439, %v1438
      %v1447 = vpack.c.bf16 %v1445, %v1444
      %v1448 = vpack.c.bf16 %v1429, %v1428
      %v1449 = vld [vmem:[%s3] sm:$0xf]
      %v1450 = vld [vmem:[%s3 + $0x4] sm:$0xf]
      %v1451 = vld [vmem:[%s3 + $0x8] sm:$0xf]
      %v1452 = vld [vmem:[%s3 + $0xc] sm:$0xf]
      %v1453 = vld [vmem:[%s3 + $0x10] sm:$0xf]
      %v1454 = vld [vmem:[%s3 + $0x14] sm:$0xf]
      %v1455 = vld [vmem:[%s3 + $0x18] sm:$0xf]
      %v1456 = vld [vmem:[%s3 + $0x1c] sm:$0xf]
      %v1457 = vld [vmem:[%s3 + $0x20] sm:$0xf]
      %v1458 = vld [vmem:[%s3 + $0x24] sm:$0xf]
      %v1459 = vld [vmem:[%s3 + $0x28] sm:$0xf]
      %v1460 = vld [vmem:[%s3 + $0x2c] sm:$0xf]
      %v1461 = vld [vmem:[%s3 + $0x30] sm:$0xf]
      %v1462 = vld [vmem:[%s3 + $0x34] sm:$0xf]
      %v1463 = vld [vmem:[%s3 + $0x38] sm:$0xf]
      %v1464 = vld [vmem:[%s3 + $0x3c] sm:$0xf]
      %v1465 = vld [vmem:[%s3 + $0x40] sm:$0xf]
      %v1466 = vld [vmem:[%s3 + $0x44] sm:$0xf]
      %v1467 = vld [vmem:[%s3 + $0x48] sm:$0xf]
      %v1468 = vld [vmem:[%s3 + $0x4c] sm:$0xf]
      %v1469 = vld [vmem:[%s3 + $0x50] sm:$0xf]
      %v1470 = vld [vmem:[%s3 + $0x54] sm:$0xf]
      %v1471 = vld [vmem:[%s3 + $0x58] sm:$0xf]
      %v1472 = vld [vmem:[%s3 + $0x5c] sm:$0xf]
      %v1473 = vld [vmem:[%s3 + $0x60] sm:$0xf]
      %v1474 = vld [vmem:[%s3 + $0x64] sm:$0xf]
      %v1475 = vld [vmem:[%s3 + $0x68] sm:$0xf]
      %v1476 = vld [vmem:[%s3 + $0x6c] sm:$0xf]
      %v1477 = vld [vmem:[%s3 + $0x70] sm:$0xf]
      %v1478 = vld [vmem:[%s3 + $0x74] sm:$0xf]
      %v1479 = vld [vmem:[%s3 + $0x78] sm:$0xf]
      %v1480 = vld [vmem:[%s3 + $0x7c] sm:$0xf]
      %v1481 = vld [vmem:[%s3 + $0x80] sm:$0xf]
      %v1482 = vld [vmem:[%s3 + $0x84] sm:$0xf]
      %v1483 = vld [vmem:[%s3 + $0x88] sm:$0xf]
      %v1484 = vld [vmem:[%s3 + $0x8c] sm:$0xf]
      %v1485 = vld [vmem:[%s4] sm:$0x1]
      %v1487 = vlaneseq
      %v1488 = vshrl.u32 %v1487, 7
      %v1489 = vsub.s32 0, %v1488
      %v1490 = vrot.slane %v1485, %v1489
      %v1528 = vunpack.c.l.b16 %v1449
      %v1529 = vunpack.c.l.b16 %v1450
      %v1530 = vunpack.c.l.b16 %v1451
      %v1531 = vunpack.c.l.b16 %v1452
      %v1532 = vunpack.c.l.b16 %v1453
      %v1533 = vunpack.c.l.b16 %v1454
      %v1534 = vunpack.c.l.b16 %v1455
      %v1535 = vunpack.c.l.b16 %v1456
      %v1536 = vunpack.c.l.b16 %v1457
      %v1537 = vunpack.c.l.b16 %v1458
      %v1538 = vunpack.c.l.b16 %v1459
      %v1539 = vunpack.c.l.b16 %v1460
      %v1540 = vunpack.c.l.b16 %v1461
      %v1541 = vunpack.c.l.b16 %v1462
      %v1542 = vunpack.c.l.b16 %v1463
      %v1543 = vunpack.c.l.b16 %v1464
      %v1544 = vunpack.c.l.b16 %v1465
      %v1545 = vunpack.c.l.b16 %v1466
      %v1546 = vunpack.c.l.b16 %v1467
      %v1547 = vunpack.c.l.b16 %v1468
      %v1548 = vunpack.c.l.b16 %v1469
      %v1549 = vunpack.c.l.b16 %v1470
      %v1550 = vunpack.c.l.b16 %v1471
      %v1551 = vunpack.c.l.b16 %v1472
      %v1552 = vunpack.c.l.b16 %v1473
      %v1553 = vunpack.c.l.b16 %v1474
      %v1554 = vunpack.c.l.b16 %v1475
      %v1555 = vunpack.c.l.b16 %v1476
      %v1556 = vunpack.c.l.b16 %v1477
      %v1557 = vunpack.c.l.b16 %v1478
      %v1558 = vunpack.c.l.b16 %v1479
      %v1559 = vunpack.c.l.b16 %v1480
      %v1560 = vunpack.c.l.b16 %v1481
      %v1561 = vunpack.c.l.b16 %v1482
      %v1562 = vunpack.c.l.b16 %v1483
      %v1563 = vunpack.c.l.b16 %v1484
      %v1564 = vpack.c.b16 %v1529, %v1528
      %v1565 = vpack.c.b16 %v1531, %v1530
      %v1566 = vpack.c.b16 %v1533, %v1532
      %v1567 = vpack.c.b16 %v1535, %v1534
      %v1568 = vpack.c.b16 %v1537, %v1536
      %v1569 = vpack.c.b16 %v1539, %v1538
      %v1570 = vpack.c.b16 %v1541, %v1540
      %v1571 = vpack.c.b16 %v1543, %v1542
      %v1572 = vpack.c.b16 %v1545, %v1544
      %v1573 = vpack.c.b16 %v1547, %v1546
      %v1574 = vpack.c.b16 %v1549, %v1548
      %v1575 = vpack.c.b16 %v1551, %v1550
      %v1576 = vpack.c.b16 %v1553, %v1552
      %v1577 = vpack.c.b16 %v1555, %v1554
      %v1578 = vpack.c.b16 %v1557, %v1556
      %v1579 = vpack.c.b16 %v1559, %v1558
      %v1580 = vpack.c.b16 %v1561, %v1560
      %v1581 = vpack.c.b16 %v1563, %v1562
      %v1601 = vsel %vm1235, %v1448, 0
      %1603 = vmatprep.subr.bf16.mxu0 0
      %1604 = vmatpush1.bf16.msra.mxu0 %v1571
      %1605 = vmatprep.subr.bf16.mxu0 0
      %1606 = vmatpush1.bf16.msra.mxu0 %v1570
      %1607 = vmatprep.subr.bf16.mxu0 0
      %1608 = vmatpush1.bf16.msra.mxu0 %v1569
      %1609 = vmatprep.subr.bf16.mxu0 0
      %1610 = vmatpush1.bf16.msra.mxu0 %v1568
      %1611 = vmatprep.subr.bf16.mxu0 0
      %1612 = vmatpush1.bf16.msra.mxu0 %v1567
      %1613 = vmatprep.subr.bf16.mxu0 0
      %1614 = vmatpush1.bf16.msra.mxu0 %v1566
      %1615 = vmatprep.subr.bf16.mxu0 0
      %1616 = vmatpush1.bf16.msra.mxu0 %v1565
      %1617 = vmatprep.subr.bf16.mxu0 0
      %1618 = vmatpush1.bf16.msra.mxu0 %v1564
      %1619 = vmatprep.subr.bf16.mxu0 0
      %1620 = vmatpush2.bf16.msra.mxu0 %v1579
      %1621 = vmatprep.subr.bf16.mxu0 0
      %1622 = vmatpush2.bf16.msra.mxu0 %v1578
      %1623 = vmatprep.subr.bf16.mxu0 0
      %1624 = vmatpush2.bf16.msra.mxu0 %v1577
      %1625 = vmatprep.subr.bf16.mxu0 0
      %1626 = vmatpush2.bf16.msra.mxu0 %v1576
      %1627 = vmatprep.subr.bf16.mxu0 0
      %1628 = vmatpush2.bf16.msra.mxu0 %v1575
      %1629 = vmatprep.subr.bf16.mxu0 0
      %1630 = vmatpush2.bf16.msra.mxu0 %v1574
      %1631 = vmatprep.subr.bf16.mxu0 0
      %1632 = vmatpush2.bf16.msra.mxu0 %v1573
      %1633 = vmatprep.subr.bf16.mxu0 0
      %1634 = vmatpush2.bf16.msra.mxu0 %v1572
      %1635 = vmatprep.mubr.bf16.mxu0 %v1447
      %1636 = vmatmul.mubr.bf16.gmra.mxu0 %v1446
      %v1637 = vpop.f32.mrf.mxu0
      %v1638 = vadd.f32 %v1490, %v1637
      %v1639 = vpop.f32.mrf.mxu0
      %v1640 = vpop.f32.mrf.mxu0
      %v1641 = vadd.f32 %v1490, %v1640
      %v1642 = vpop.f32.mrf.mxu0
      %1643 = vdwg.mxu0
      %1644 = vmatprep.subr.bf16.mxu0 0
      %1645 = vmatpush1.bf16.msra.mxu0 0
      %1646 = vmatprep.subr.bf16.mxu0 0
      %1647 = vmatpush1.bf16.msra.mxu0 0
      %1648 = vmatprep.subr.bf16.mxu0 0
      %1649 = vmatpush1.bf16.msra.mxu0 0
      %1650 = vmatprep.subr.bf16.mxu0 0
      %1651 = vmatpush1.bf16.msra.mxu0 0
      %1652 = vmatprep.subr.bf16.mxu0 0
      %1653 = vmatpush1.bf16.msra.mxu0 0
      %1654 = vmatprep.subr.bf16.mxu0 0
      %1655 = vmatpush1.bf16.msra.mxu0 0
      %1656 = vmatprep.subr.bf16.mxu0 0
      %1657 = vmatpush1.bf16.msra.mxu0 %v1581
      %1658 = vmatprep.subr.bf16.mxu0 0
      %1659 = vmatpush1.bf16.msra.mxu0 %v1580
      %1660 = vmatprep.subr.bf16.mxu0 0
      %1661 = vmatpush2.bf16.msra.mxu0 0
      %1662 = vmatprep.subr.bf16.mxu0 0
      %1663 = vmatpush2.bf16.msra.mxu0 0
      %1664 = vmatprep.subr.bf16.mxu0 0
      %1665 = vmatpush2.bf16.msra.mxu0 0
      %1666 = vmatprep.subr.bf16.mxu0 0
      %1667 = vmatpush2.bf16.msra.mxu0 0
      %1668 = vmatprep.subr.bf16.mxu0 0
      %1669 = vmatpush2.bf16.msra.mxu0 0
      %1670 = vmatprep.subr.bf16.mxu0 0
      %1671 = vmatpush2.bf16.msra.mxu0 0
      %1672 = vmatprep.subr.bf16.mxu0 0
      %1673 = vmatpush2.bf16.msra.mxu0 0
      %1674 = vmatprep.subr.bf16.mxu0 0
      %1675 = vmatpush2.bf16.msra.mxu0 0
      %1676 = vmatprep.mubr.bf16.mxu0 0
      %1677 = vmatmul.mubr.bf16.gmra.mxu0 %v1601
      %v1678 = vpop.f32.mrf.mxu0
      %v1679 = vadd.f32 %v1638, %v1678
      %v1680 = vpop.f32.mrf.mxu0
      %v1681 = vpop.f32.mrf.mxu0
      %v1682 = vadd.f32 %v1641, %v1681
      %v1683 = vpop.f32.mrf.mxu0
      %1684 = vdwg.mxu0
      %v1685 = vmul.f32 %v1679, 0.5
      %v1686 = vmul.f32 %v1682, 0.5
      %v1687 = vmul.f32 %v1679, 0.70710677
      %v1688 = vmul.f32 %v1682, 0.70710677
      %v1689 = vand.u32 2147483647, %v1687
      %v1690 = vand.u32 2147483647, %v1688
      %v1691 = vmul.f32 %v1689, 0.3275911
      %v1692 = vmul.f32 %v1690, 0.3275911
      %v1693 = vadd.f32 %v1691, 1.0
      %v1694 = vadd.f32 %v1692, 1.0
      %v1695 = vrcp.pop %v1693
      %v1696 = vmul.f32 1.0, %v1695
      %v1697 = vrcp.pop %v1694
      %v1698 = vmul.f32 1.0, %v1697
      %v1699 = vmul.f32 %v1696, 1.0614054
      %v1700 = vmul.f32 %v1698, 1.0614054
      %v1701 = vadd.f32 %v1699, -1.4531521
      %v1702 = vadd.f32 %v1700, -1.4531521
      %v1703 = vmul.f32 %v1701, %v1696
      %v1704 = vmul.f32 %v1702, %v1698
      %v1705 = vadd.f32 %v1703, 1.4214138
      %v1706 = vadd.f32 %v1704, 1.4214138
      %v1707 = vmul.f32 %v1705, %v1696
      %v1708 = vmul.f32 %v1706, %v1698
      %v1709 = vadd.f32 %v1707, -0.28449672
      %v1710 = vadd.f32 %v1708, -0.28449672
      %v1711 = vmul.f32 %v1709, %v1696
      %v1712 = vmul.f32 %v1710, %v1698
      %v1713 = vadd.f32 %v1711, 0.2548296
      %v1714 = vadd.f32 %v1712, 0.2548296
      %v1715 = vmul.f32 %v1713, %v1696
      %v1716 = vmul.f32 %v1714, %v1698
      %v1717 = vsub.f32 0.0, %v1689
      %v1718 = vsub.f32 0.0, %v1690
      %v1719 = vmul.f32 %v1717, %v1689
      %v1720 = vmul.f32 %v1718, %v1690
      %v1721 = vmul.f32 %v1719, 1.442695
      %v1722 = vpow.pop %v1721
      %v1723 = vmul.f32 %v1720, 1.442695
      %v1724 = vpow.pop %v1723
      %v1725 = vmul.f32 %v1715, %v1722
      %v1726 = vmul.f32 %v1716, %v1724
      %v1727 = vsub.f32 1.0, %v1725
      %v1728 = vsub.f32 1.0, %v1726
      %vm1729 = vcmp.lt.f32.partialorder %v1687, 0.0
      %vm1730 = vcmp.lt.f32.partialorder %v1688, 0.0
      %v1731 = vsub.f32 0.0, %v1727
      %v1732 = vsub.f32 0.0, %v1728
      %v1733 = vsel %vm1729, %v1731, %v1727
      %v1734 = vsel %vm1730, %v1732, %v1728
      %v1735 = vadd.f32 %v1733, 1.0
      %v1736 = vadd.f32 %v1734, 1.0
      %v1737 = vmul.f32 %v1685, %v1735
      %v1738 = vmul.f32 %v1686, %v1736
      %vm1739 = vcmask 259072
      %1740 = vst.msk [vmem:[#allocation3] sm:$0x3f] %vm1739, 0.0
      %1741 = vst.msk [vmem:[#allocation3 + $0x8] sm:$0x3f] %vm1739, 0.0
      %1742 = vst.msk [vmem:[#allocation3 + $0x10] sm:$0x3f] %vm1739, 0.0
      %1743 = vst.msk [vmem:[#allocation3 + $0x18] sm:$0x3f] %vm1739, 0.0
      %1744 = vst.msk [vmem:[#allocation3 + $0x20] sm:$0x3f] %vm1739, 0.0
      %1745 = vst.msk [vmem:[#allocation3 + $0x28] sm:$0x3f] %vm1739, 0.0
      %v1748 = vcombine.high %v1737, %v1737
      %v1749 = vcombine.high %v1738, %v1738
      %s1752 = scalar_lea.vmem [#allocation3], 8
      %vm1753 = vcmask 257024
      %1754 = vst.msk [vmem:[%s1752 + $0x1] sm:$0xf] %vm1753, %v1737
      %1755 = vst.msk [vmem:[%s1752 + $0x9] sm:$0xf] %vm1753, %v1748
      %1756 = vst.msk [vmem:[%s1752 + $0x11] sm:$0xf] %vm1753, %v1738
      %1757 = vst.msk [vmem:[%s1752 + $0x19] sm:$0xf] %vm1753, %v1749
      %v1758 = vld [vmem:[#allocation3] ss:$2 sm:$0x3]
      %s1759 = scalar_lea.vmem [#allocation3], 16
      %v1760 = vld [vmem:[%s1759] ss:$2 sm:$0x3]
      %s1761 = scalar_lea.vmem [#allocation3], 1
      %v1762 = vld [vmem:[%s1761] ss:$2 sm:$0x3]
      %s1763 = scalar_lea.vmem [#allocation3], 17
      %v1764 = vld [vmem:[%s1763] ss:$2 sm:$0x3]
      %s1765 = scalar_lea.vmem [#allocation3], 2
      %v1766 = vld [vmem:[%s1765] ss:$2 sm:$0x3]
      %s1767 = scalar_lea.vmem [#allocation3], 18
      %v1768 = vld [vmem:[%s1767] ss:$2 sm:$0x3]
      %v1769 = vld [vmem:[%s1752] ss:$2 sm:$0x3]
      %s1770 = scalar_lea.vmem %s1752, 16 [#allocation3]
      %v1771 = vld [vmem:[%s1770] ss:$2 sm:$0x3]
      %s1772 = scalar_lea.vmem %s1752, 1 [#allocation3]
      %v1773 = vld [vmem:[%s1772] ss:$2 sm:$0x3]
      %s1774 = scalar_lea.vmem %s1752, 17 [#allocation3]
      %v1775 = vld [vmem:[%s1774] ss:$2 sm:$0x3]
      %s1776 = scalar_lea.vmem %s1752, 2 [#allocation3]
      %v1777 = vld [vmem:[%s1776] ss:$2 sm:$0x3]
      %s1778 = scalar_lea.vmem %s1752, 18 [#allocation3]
      %v1779 = vld [vmem:[%s1778] ss:$2 sm:$0x3]
      %s1780 = scalar_lea.vmem [#allocation3], 16
      %v1781 = vld [vmem:[%s1780] ss:$2 sm:$0x3]
      %s1782 = scalar_lea.vmem %s1780, 16 [#allocation3]
      %v1783 = vld [vmem:[%s1782] ss:$2 sm:$0x3]
      %s1784 = scalar_lea.vmem %s1780, 1 [#allocation3]
      %v1785 = vld [vmem:[%s1784] ss:$2 sm:$0x3]
      %s1786 = scalar_lea.vmem %s1780, 17 [#allocation3]
      %v1787 = vld [vmem:[%s1786] ss:$2 sm:$0x3]
      %s1788 = scalar_lea.vmem %s1780, 2 [#allocation3]
      %v1789 = vld [vmem:[%s1788] ss:$2 sm:$0x3]
      %s1790 = scalar_lea.vmem %s1780, 18 [#allocation3]
      %v1791 = vld [vmem:[%s1790] ss:$2 sm:$0x3]
      %v1794 = vcombine.low %v1758, %v1760
      %v1796 = vunpack.c.l.s4 1983009808
      %v1797 = vunpack.c.0.s8 %v1796
      %v1798 = vlaneseq
      %v1799 = vshrl.u32 %v1798, 7
      %v1800 = vsub.s32 %v1797, %v1799
      %v1801 = vrot.slane %v1794, %v1800
      %v1805 = vcombine.low %v1762, %v1764
      %v1807 = vunpack.c.l.s4 1983009808
      %v1808 = vunpack.c.0.s8 %v1807
      %v1809 = vlaneseq
      %v1810 = vshrl.u32 %v1809, 7
      %v1811 = vsub.s32 %v1808, %v1810
      %v1812 = vrot.slane %v1805, %v1811
      %1813 = vrot.lane.b32.xlu0 %v1812, 32
      %v1814 = vpop.permute.xlu0 %1813
      %v1818 = vcombine.low %v1766, %v1768
      %v1820 = vunpack.c.l.s4 1983009808
      %v1821 = vunpack.c.0.s8 %v1820
      %v1822 = vlaneseq
      %v1823 = vshrl.u32 %v1822, 7
      %v1824 = vsub.s32 %v1821, %v1823
      %v1825 = vrot.slane %v1818, %v1824
      %1826 = vrot.lane.b32.xlu0 %v1825, 64
      %v1827 = vpop.permute.xlu0 %1826
      %v1831 = vcombine.low %v1769, %v1771
      %v1833 = vunpack.c.l.s4 1983009808
      %v1834 = vunpack.c.0.s8 %v1833
      %v1835 = vlaneseq
      %v1836 = vshrl.u32 %v1835, 7
      %v1837 = vsub.s32 %v1834, %v1836
      %v1838 = vrot.slane %v1831, %v1837
      %1839 = vrot.lane.b32.xlu0 %v1838, 96
      %v1840 = vpop.permute.xlu0 %1839
      %v1844 = vcombine.low %v1773, %v1775
      %v1846 = vunpack.c.l.s4 1983009808
      %v1847 = vunpack.c.0.s8 %v1846
      %v1848 = vlaneseq
      %v1849 = vshrl.u32 %v1848, 7
      %v1850 = vsub.s32 %v1847, %v1849
      %v1851 = vrot.slane %v1844, %v1850
      %v1855 = vcombine.low %v1777, %v1779
      %v1857 = vunpack.c.l.s4 1983009808
      %v1858 = vunpack.c.0.s8 %v1857
      %v1859 = vlaneseq
      %v1860 = vshrl.u32 %v1859, 7
      %v1861 = vsub.s32 %v1858, %v1860
      %v1862 = vrot.slane %v1855, %v1861
      %1863 = vrot.lane.b32.xlu0 %v1862, 32
      %v1864 = vpop.permute.xlu0 %1863
      %v1868 = vcombine.low %v1781, %v1783
      %v1870 = vunpack.c.l.s4 1983009808
      %v1871 = vunpack.c.0.s8 %v1870
      %v1872 = vlaneseq
      %v1873 = vshrl.u32 %v1872, 7
      %v1874 = vsub.s32 %v1871, %v1873
      %v1875 = vrot.slane %v1868, %v1874
      %1876 = vrot.lane.b32.xlu0 %v1875, 64
      %v1877 = vpop.permute.xlu0 %1876
      %v1881 = vcombine.low %v1785, %v1787
      %v1883 = vunpack.c.l.s4 1983009808
      %v1884 = vunpack.c.0.s8 %v1883
      %v1885 = vlaneseq
      %v1886 = vshrl.u32 %v1885, 7
      %v1887 = vsub.s32 %v1884, %v1886
      %v1888 = vrot.slane %v1881, %v1887
      %1889 = vrot.lane.b32.xlu0 %v1888, 96
      %v1890 = vpop.permute.xlu0 %1889
      %v1894 = vcombine.low %v1789, %v1791
      %v1896 = vunpack.c.l.s4 1983009808
      %v1897 = vunpack.c.0.s8 %v1896
      %v1898 = vlaneseq
      %v1899 = vshrl.u32 %v1898, 7
      %v1900 = vsub.s32 %v1897, %v1899
      %v1901 = vrot.slane %v1894, %v1900
      %v1903 = vsel %vm1235, %v1801, %v1814
      %v1904 = vsel %vm1434, %v1903, %v1827
      %v1905 = vsel %vm1437, %v1904, %v1840
      %v1906 = vsel %vm1235, %v1851, %v1864
      %v1907 = vsel %vm1434, %v1906, %v1877
      %v1908 = vsel %vm1437, %v1907, %v1890
      %v1909 = vpack.c.bf16 %v1905, %v1905
      %v1910 = vpack.c.bf16 %v1908, %v1908
      %v1911 = vpack.c.bf16 %v1901, %v1901
      %v1912 = vld [vmem:[%s5] sm:$0xf]
      %v1913 = vld [vmem:[%s5 + $0x4] sm:$0xf]
      %v1914 = vld [vmem:[%s5 + $0x8] sm:$0xf]
      %v1915 = vld [vmem:[%s5 + $0xc] sm:$0xf]
      %v1916 = vld [vmem:[%s5 + $0x10] sm:$0xf]
      %v1917 = vld [vmem:[%s5 + $0x14] sm:$0xf]
      %v1918 = vld [vmem:[%s5 + $0x18] sm:$0xf]
      %v1919 = vld [vmem:[%s5 + $0x1c] sm:$0xf]
      %v1920 = vld [vmem:[%s5 + $0x20] sm:$0xf]
      %v1921 = vld [vmem:[%s5 + $0x24] sm:$0xf]
      %v1922 = vld [vmem:[%s5 + $0x28] sm:$0xf]
      %v1923 = vld [vmem:[%s5 + $0x2c] sm:$0xf]
      %v1924 = vld [vmem:[%s5 + $0x30] sm:$0xf]
      %v1925 = vld [vmem:[%s5 + $0x34] sm:$0xf]
      %v1926 = vld [vmem:[%s5 + $0x38] sm:$0xf]
      %v1927 = vld [vmem:[%s5 + $0x3c] sm:$0xf]
      %v1928 = vld [vmem:[%s5 + $0x40] sm:$0xf]
      %v1929 = vld [vmem:[%s5 + $0x44] sm:$0xf]
      %v1930 = vld [vmem:[%s5 + $0x48] sm:$0xf]
      %v1931 = vld [vmem:[%s5 + $0x4c] sm:$0xf]
      %v1932 = vld [vmem:[%s5 + $0x50] sm:$0xf]
      %v1933 = vld [vmem:[%s5 + $0x54] sm:$0xf]
      %v1934 = vld [vmem:[%s5 + $0x58] sm:$0xf]
      %v1935 = vld [vmem:[%s5 + $0x5c] sm:$0xf]
      %v1936 = vld [vmem:[%s5 + $0x60] sm:$0xf]
      %v1937 = vld [vmem:[%s5 + $0x64] sm:$0xf]
      %v1938 = vld [vmem:[%s5 + $0x68] sm:$0xf]
      %v1939 = vld [vmem:[%s5 + $0x6c] sm:$0xf]
      %v1940 = vld [vmem:[%s5 + $0x70] sm:$0xf]
      %v1941 = vld [vmem:[%s5 + $0x74] sm:$0xf]
      %v1942 = vld [vmem:[%s5 + $0x78] sm:$0xf]
      %v1943 = vld [vmem:[%s5 + $0x7c] sm:$0xf]
      %v1944 = vld [vmem:[%s5 + $0x80] sm:$0xf]
      %v1945 = vld [vmem:[%s5 + $0x84] sm:$0xf]
      %v1946 = vld [vmem:[%s5 + $0x88] sm:$0xf]
      %v1947 = vld [vmem:[%s5 + $0x8c] sm:$0xf]
      %v1948 = vld [vmem:[%s6] sm:$0x1]
      %v1950 = vlaneseq
      %v1951 = vshrl.u32 %v1950, 7
      %v1952 = vsub.s32 0, %v1951
      %v1953 = vrot.slane %v1948, %v1952
      %v1991 = vunpack.c.l.b16 %v1912
      %v1992 = vunpack.c.l.b16 %v1913
      %v1993 = vunpack.c.l.b16 %v1914
      %v1994 = vunpack.c.l.b16 %v1915
      %v1995 = vunpack.c.l.b16 %v1916
      %v1996 = vunpack.c.l.b16 %v1917
      %v1997 = vunpack.c.l.b16 %v1918
      %v1998 = vunpack.c.l.b16 %v1919
      %v1999 = vunpack.c.l.b16 %v1920
      %v2000 = vunpack.c.l.b16 %v1921
      %v2001 = vunpack.c.l.b16 %v1922
      %v2002 = vunpack.c.l.b16 %v1923
      %v2003 = vunpack.c.l.b16 %v1924
      %v2004 = vunpack.c.l.b16 %v1925
      %v2005 = vunpack.c.l.b16 %v1926
      %v2006 = vunpack.c.l.b16 %v1927
      %v2007 = vunpack.c.l.b16 %v1928
      %v2008 = vunpack.c.l.b16 %v1929
      %v2009 = vunpack.c.l.b16 %v1930
      %v2010 = vunpack.c.l.b16 %v1931
      %v2011 = vunpack.c.l.b16 %v1932
      %v2012 = vunpack.c.l.b16 %v1933
      %v2013 = vunpack.c.l.b16 %v1934
      %v2014 = vunpack.c.l.b16 %v1935
      %v2015 = vunpack.c.l.b16 %v1936
      %v2016 = vunpack.c.l.b16 %v1937
      %v2017 = vunpack.c.l.b16 %v1938
      %v2018 = vunpack.c.l.b16 %v1939
      %v2019 = vunpack.c.l.b16 %v1940
      %v2020 = vunpack.c.l.b16 %v1941
      %v2021 = vunpack.c.l.b16 %v1942
      %v2022 = vunpack.c.l.b16 %v1943
      %v2023 = vunpack.c.l.b16 %v1944
      %v2024 = vunpack.c.l.b16 %v1945
      %v2025 = vunpack.c.l.b16 %v1946
      %v2026 = vunpack.c.l.b16 %v1947
      %v2027 = vpack.c.b16 %v1992, %v1991
      %v2028 = vpack.c.b16 %v1994, %v1993
      %v2029 = vpack.c.b16 %v1996, %v1995
      %v2030 = vpack.c.b16 %v1998, %v1997
      %v2031 = vpack.c.b16 %v2000, %v1999
      %v2032 = vpack.c.b16 %v2002, %v2001
      %v2033 = vpack.c.b16 %v2004, %v2003
      %v2034 = vpack.c.b16 %v2006, %v2005
      %v2035 = vpack.c.b16 %v2008, %v2007
      %v2036 = vpack.c.b16 %v2010, %v2009
      %v2037 = vpack.c.b16 %v2012, %v2011
      %v2038 = vpack.c.b16 %v2014, %v2013
      %v2039 = vpack.c.b16 %v2016, %v2015
      %v2040 = vpack.c.b16 %v2018, %v2017
      %v2041 = vpack.c.b16 %v2020, %v2019
      %v2042 = vpack.c.b16 %v2022, %v2021
      %v2043 = vpack.c.b16 %v2024, %v2023
      %v2044 = vpack.c.b16 %v2026, %v2025
      %v2064 = vsel %vm1235, %v1911, 0
      %2066 = vmatprep.subr.bf16.mxu0 0
      %2067 = vmatpush1.bf16.msra.mxu0 %v2034
      %2068 = vmatprep.subr.bf16.mxu0 0
      %2069 = vmatpush1.bf16.msra.mxu0 %v2033
      %2070 = vmatprep.subr.bf16.mxu0 0
      %2071 = vmatpush1.bf16.msra.mxu0 %v2032
      %2072 = vmatprep.subr.bf16.mxu0 0
      %2073 = vmatpush1.bf16.msra.mxu0 %v2031
      %2074 = vmatprep.subr.bf16.mxu0 0
      %2075 = vmatpush1.bf16.msra.mxu0 %v2030
      %2076 = vmatprep.subr.bf16.mxu0 0
      %2077 = vmatpush1.bf16.msra.mxu0 %v2029
      %2078 = vmatprep.subr.bf16.mxu0 0
      %2079 = vmatpush1.bf16.msra.mxu0 %v2028
      %2080 = vmatprep.subr.bf16.mxu0 0
      %2081 = vmatpush1.bf16.msra.mxu0 %v2027
      %2082 = vmatprep.subr.bf16.mxu0 0
      %2083 = vmatpush2.bf16.msra.mxu0 %v2042
      %2084 = vmatprep.subr.bf16.mxu0 0
      %2085 = vmatpush2.bf16.msra.mxu0 %v2041
      %2086 = vmatprep.subr.bf16.mxu0 0
      %2087 = vmatpush2.bf16.msra.mxu0 %v2040
      %2088 = vmatprep.subr.bf16.mxu0 0
      %2089 = vmatpush2.bf16.msra.mxu0 %v2039
      %2090 = vmatprep.subr.bf16.mxu0 0
      %2091 = vmatpush2.bf16.msra.mxu0 %v2038
      %2092 = vmatprep.subr.bf16.mxu0 0
      %2093 = vmatpush2.bf16.msra.mxu0 %v2037
      %2094 = vmatprep.subr.bf16.mxu0 0
      %2095 = vmatpush2.bf16.msra.mxu0 %v2036
      %2096 = vmatprep.subr.bf16.mxu0 0
      %2097 = vmatpush2.bf16.msra.mxu0 %v2035
      %2098 = vmatprep.mubr.bf16.mxu0 %v1910
      %2099 = vmatmul.mubr.bf16.gmra.mxu0 %v1909
      %v2100 = vpop.f32.mrf.mxu0
      %v2101 = vadd.f32 %v1953, %v2100
      %v2102 = vpop.f32.mrf.mxu0
      %v2103 = vpop.f32.mrf.mxu0
      %v2104 = vpop.f32.mrf.mxu0
      %2105 = vdwg.mxu0
      %2106 = vmatprep.subr.bf16.mxu0 0
      %2107 = vmatpush1.bf16.msra.mxu0 0
      %2108 = vmatprep.subr.bf16.mxu0 0
      %2109 = vmatpush1.bf16.msra.mxu0 0
      %2110 = vmatprep.subr.bf16.mxu0 0
      %2111 = vmatpush1.bf16.msra.mxu0 0
      %2112 = vmatprep.subr.bf16.mxu0 0
      %2113 = vmatpush1.bf16.msra.mxu0 0
      %2114 = vmatprep.subr.bf16.mxu0 0
      %2115 = vmatpush1.bf16.msra.mxu0 0
      %2116 = vmatprep.subr.bf16.mxu0 0
      %2117 = vmatpush1.bf16.msra.mxu0 0
      %2118 = vmatprep.subr.bf16.mxu0 0
      %2119 = vmatpush1.bf16.msra.mxu0 %v2044
      %2120 = vmatprep.subr.bf16.mxu0 0
      %2121 = vmatpush1.bf16.msra.mxu0 %v2043
      %2122 = vmatprep.subr.bf16.mxu0 0
      %2123 = vmatpush2.bf16.msra.mxu0 0
      %2124 = vmatprep.subr.bf16.mxu0 0
      %2125 = vmatpush2.bf16.msra.mxu0 0
      %2126 = vmatprep.subr.bf16.mxu0 0
      %2127 = vmatpush2.bf16.msra.mxu0 0
      %2128 = vmatprep.subr.bf16.mxu0 0
      %2129 = vmatpush2.bf16.msra.mxu0 0
      %2130 = vmatprep.subr.bf16.mxu0 0
      %2131 = vmatpush2.bf16.msra.mxu0 0
      %2132 = vmatprep.subr.bf16.mxu0 0
      %2133 = vmatpush2.bf16.msra.mxu0 0
      %2134 = vmatprep.subr.bf16.mxu0 0
      %2135 = vmatpush2.bf16.msra.mxu0 0
      %2136 = vmatprep.subr.bf16.mxu0 0
      %2137 = vmatpush2.bf16.msra.mxu0 0
      %2138 = vmatprep.mubr.bf16.mxu0 0
      %2139 = vmatmul.mubr.bf16.gmra.mxu0 %v2064
      %v2140 = vpop.f32.mrf.mxu0
      %v2141 = vadd.f32 %v2101, %v2140
      %v2142 = vpop.f32.mrf.mxu0
      %v2143 = vpop.f32.mrf.mxu0
      %v2144 = vpop.f32.mrf.mxu0
      %2145 = vdwg.mxu0
      %v2146 = vmul.f32 %v2141, 0.5
      %v2147 = vmul.f32 %v2141, 0.70710677
      %v2148 = vand.u32 2147483647, %v2147
      %v2149 = vmul.f32 %v2148, 0.3275911
      %v2150 = vadd.f32 %v2149, 1.0
      %v2151 = vrcp.pop %v2150
      %v2152 = vmul.f32 1.0, %v2151
      %v2153 = vmul.f32 %v2152, 1.0614054
      %v2154 = vadd.f32 %v2153, -1.4531521
      %v2155 = vmul.f32 %v2154, %v2152
      %v2156 = vadd.f32 %v2155, 1.4214138
      %v2157 = vmul.f32 %v2156, %v2152
      %v2158 = vadd.f32 %v2157, -0.28449672
      %v2159 = vmul.f32 %v2158, %v2152
      %v2160 = vadd.f32 %v2159, 0.2548296
      %v2161 = vmul.f32 %v2160, %v2152
      %v2162 = vsub.f32 0.0, %v2148
      %v2163 = vmul.f32 %v2162, %v2148
      %v2164 = vmul.f32 %v2163, 1.442695
      %v2165 = vpow.pop %v2164
      %v2166 = vmul.f32 %v2161, %v2165
      %v2167 = vsub.f32 1.0, %v2166
      %vm2168 = vcmp.lt.f32.partialorder %v2147, 0.0
      %v2169 = vsub.f32 0.0, %v2167
      %v2170 = vsel %vm2168, %v2169, %v2167
      %v2171 = vadd.f32 %v2170, 1.0
      %v2172 = vmul.f32 %v2146, %v2171
      %2174 = vrot.lane.b32.xlu0 %v2172, 96
      %v2175 = vpop.permute.xlu0 %2174
      %vm2176 = vcmask 64512
      %v2177 = vsel %vm2176, %v2172, 0
      %v2179 = vsel %vm2176, %v2175, 0
      %2181 = vmatprep.subr.mxu0 0.0
      %2182 = vmatpush1.xpose.msra.mxu0 0.0
      %2183 = vmatprep.subr.mxu0 0.0
      %2184 = vmatpush1.xpose.msra.mxu0 0.0
      %2185 = vmatprep.subr.mxu0 0.0
      %2186 = vmatpush1.xpose.msra.mxu0 0.0
      %2187 = vmatprep.subr.mxu0 0.0
      %2188 = vmatpush1.xpose.msra.mxu0 0.0
      %2189 = vmatprep.subr.mxu0 0.0
      %2190 = vmatpush1.xpose.msra.mxu0 0.0
      %2191 = vmatprep.subr.mxu0 0.0
      %2192 = vmatpush1.xpose.msra.mxu0 0.0
      %2193 = vmatprep.subr.mxu0 0.0
      %2194 = vmatpush1.xpose.msra.mxu0 0.0
      %2195 = vmatprep.subr.mxu0 0.0
      %2196 = vmatpush1.xpose.msra.mxu0 0.0
      %2197 = vmatprep.subr.mxu0 0.0
      %2198 = vmatpush1.xpose.msra.mxu0 0.0
      %2199 = vmatprep.subr.mxu0 0.0
      %2200 = vmatpush1.xpose.msra.mxu0 0.0
      %2201 = vmatprep.subr.mxu0 0.0
      %2202 = vmatpush1.xpose.msra.mxu0 0.0
      %2203 = vmatprep.subr.mxu0 0.0
      %2204 = vmatpush1.xpose.msra.mxu0 0.0
      %2205 = vmatprep.subr.mxu0 0.0
      %2206 = vmatpush1.xpose.msra.mxu0 0.0
      %2207 = vmatprep.subr.mxu0 0.0
      %2208 = vmatpush1.xpose.msra.mxu0 0.0
      %2209 = vmatprep.subr.mxu0 0.0
      %2210 = vmatpush1.xpose.msra.mxu0 0.0
      %2211 = vmatprep.subr.mxu0 0.0
      %2212 = vmatpush1.xpose.msra.mxu0 %v2179
      %2213 = vmatprep.subr.mxu0 0.0
      %2214 = vmatpush2.xpose.msra.mxu0 0.0
      %2215 = vmatprep.subr.mxu0 0.0
      %2216 = vmatpush2.xpose.msra.mxu0 0.0
      %2217 = vmatprep.subr.mxu0 0.0
      %2218 = vmatpush2.xpose.msra.mxu0 0.0
      %2219 = vmatprep.subr.mxu0 0.0
      %2220 = vmatpush2.xpose.msra.mxu0 0.0
      %2221 = vmatprep.subr.mxu0 0.0
      %2222 = vmatpush2.xpose.msra.mxu0 0.0
      %2223 = vmatprep.subr.mxu0 0.0
      %2224 = vmatpush2.xpose.msra.mxu0 0.0
      %2225 = vmatprep.subr.mxu0 0.0
      %2226 = vmatpush2.xpose.msra.mxu0 0.0
      %2227 = vmatprep.subr.mxu0 0.0
      %2228 = vmatpush2.xpose.msra.mxu0 0.0
      %2229 = vmatprep.subr.mxu0 0.0
      %2230 = vmatpush2.xpose.msra.mxu0 0.0
      %2231 = vmatprep.subr.mxu0 0.0
      %2232 = vmatpush2.xpose.msra.mxu0 0.0
      %2233 = vmatprep.subr.mxu0 0.0
      %2234 = vmatpush2.xpose.msra.mxu0 0.0
      %2235 = vmatprep.subr.mxu0 0.0
      %2236 = vmatpush2.xpose.msra.mxu0 0.0
      %2237 = vmatprep.subr.mxu0 0.0
      %2238 = vmatpush2.xpose.msra.mxu0 0.0
      %2239 = vmatprep.subr.mxu0 0.0
      %2240 = vmatpush2.xpose.msra.mxu0 0.0
      %2241 = vmatprep.subr.mxu0 0.0
      %2242 = vmatpush2.xpose.msra.mxu0 0.0
      %2243 = vmatprep.subr.mxu0 0.0
      %2244 = vmatpush2.xpose.msra.mxu0 0.0
      %2245 = vmatprep.mubr.f32.mxu0 0.0
      %2246 = vmatmul.mubr.f32.gmra.mxu0 %v2177
      %v2247 = vpop.f32.mrf.mxu0
      %v2248 = vadd.f32 0.0, %v2247
      %v2249 = vpop.f32.mrf.mxu0
      %2250 = vdwg.mxu0
      %v2251 = vmul.f32 %v2248, 0.35355338
      %vm2252 = vcmask 27648
      %v2253 = vsel %vm2252, %v2251, -inf
      %2254 = vmax.xlane.f32.xlu0 %v2253
      %v2255 = vpop.xlane.xlu0 %2254
      %v2256 = vsub.f32 %v2251, %v2255
      %v2257 = vmul.f32 %v2256, 1.442695
      %v2258 = vpow.pop %v2257
      %v2259 = vsel %vm2252, %v2258, 0.0
      %2260 = vadd.xlane.f32.xlu0 %v2259
      %v2261 = vpop.xlane.xlu0 %2260
      %v2262 = vrcp.pop %v2261
      %v2263 = vmul.f32 %v2258, %v2262
      %2264 = vrot.lane.b32.xlu0 %v2172, 64
      %v2265 = vpop.permute.xlu0 %2264
      %vm2266 = vcmask 31744
      %v2268 = vsel %vm2266, %v2263, 0
      %vm2270 = vcmask 1043456
      %v2271 = vsel %vm2270, %v2265, 0
      %2273 = vmatprep.subr.mxu0 0.0
      %2274 = vmatpush1.msra.mxu0 0.0
      %2275 = vmatprep.subr.mxu0 0.0
      %2276 = vmatpush1.msra.mxu0 0.0
      %2277 = vmatprep.subr.mxu0 0.0
      %2278 = vmatpush1.msra.mxu0 0.0
      %2279 = vmatprep.subr.mxu0 0.0
      %2280 = vmatpush1.msra.mxu0 0.0
      %2281 = vmatprep.subr.mxu0 0.0
      %2282 = vmatpush1.msra.mxu0 0.0
      %2283 = vmatprep.subr.mxu0 0.0
      %2284 = vmatpush1.msra.mxu0 0.0
      %2285 = vmatprep.subr.mxu0 0.0
      %2286 = vmatpush1.msra.mxu0 0.0
      %2287 = vmatprep.subr.mxu0 0.0
      %2288 = vmatpush1.msra.mxu0 0.0
      %2289 = vmatprep.subr.mxu0 0.0
      %2290 = vmatpush1.msra.mxu0 0.0
      %2291 = vmatprep.subr.mxu0 0.0
      %2292 = vmatpush1.msra.mxu0 0.0
      %2293 = vmatprep.subr.mxu0 0.0
      %2294 = vmatpush1.msra.mxu0 0.0
      %2295 = vmatprep.subr.mxu0 0.0
      %2296 = vmatpush1.msra.mxu0 0.0
      %2297 = vmatprep.subr.mxu0 0.0
      %2298 = vmatpush1.msra.mxu0 0.0
      %2299 = vmatprep.subr.mxu0 0.0
      %2300 = vmatpush1.msra.mxu0 0.0
      %2301 = vmatprep.subr.mxu0 0.0
      %2302 = vmatpush1.msra.mxu0 0.0
      %2303 = vmatprep.subr.mxu0 0.0
      %2304 = vmatpush1.msra.mxu0 %v2271
      %2305 = vmatprep.subr.mxu0 0.0
      %2306 = vmatpush2.msra.mxu0 0.0
      %2307 = vmatprep.subr.mxu0 0.0
      %2308 = vmatpush2.msra.mxu0 0.0
      %2309 = vmatprep.subr.mxu0 0.0
      %2310 = vmatpush2.msra.mxu0 0.0
      %2311 = vmatprep.subr.mxu0 0.0
      %2312 = vmatpush2.msra.mxu0 0.0
      %2313 = vmatprep.subr.mxu0 0.0
      %2314 = vmatpush2.msra.mxu0 0.0
      %2315 = vmatprep.subr.mxu0 0.0
      %2316 = vmatpush2.msra.mxu0 0.0
      %2317 = vmatprep.subr.mxu0 0.0
      %2318 = vmatpush2.msra.mxu0 0.0
      %2319 = vmatprep.subr.mxu0 0.0
      %2320 = vmatpush2.msra.mxu0 0.0
      %2321 = vmatprep.subr.mxu0 0.0
      %2322 = vmatpush2.msra.mxu0 0.0
      %2323 = vmatprep.subr.mxu0 0.0
      %2324 = vmatpush2.msra.mxu0 0.0
      %2325 = vmatprep.subr.mxu0 0.0
      %2326 = vmatpush2.msra.mxu0 0.0
      %2327 = vmatprep.subr.mxu0 0.0
      %2328 = vmatpush2.msra.mxu0 0.0
      %2329 = vmatprep.subr.mxu0 0.0
      %2330 = vmatpush2.msra.mxu0 0.0
      %2331 = vmatprep.subr.mxu0 0.0
      %2332 = vmatpush2.msra.mxu0 0.0
      %2333 = vmatprep.subr.mxu0 0.0
      %2334 = vmatpush2.msra.mxu0 0.0
      %2335 = vmatprep.subr.mxu0 0.0
      %2336 = vmatpush2.msra.mxu0 0.0
      %2337 = vmatprep.mubr.f32.mxu0 0.0
      %2338 = vmatmul.mubr.f32.gmra.mxu0 %v2268
      %v2339 = vpop.f32.mrf.mxu0
      %v2340 = vadd.f32 0.0, %v2339
      %v2341 = vpop.f32.mrf.mxu0
      %2342 = vdwg.mxu0
      %vm2343 = vcmask 60416
      %2344 = vst.msk [vmem:[#allocation4] sm:$0xf] %vm2343, %v2340
      %2345 = vrot.lane.b32.xlu0 %v2172, 120
      %v2346 = vpop.permute.xlu0 %2345
      %2347 = vrot.lane.b32.xlu0 %v2172, 88
      %v2348 = vpop.permute.xlu0 %2347
      %v2349 = vsel %vm2176, %v2346, 0
      %v2351 = vsel %vm2176, %v2348, 0
      %2353 = vmatprep.subr.mxu0 0.0
      %2354 = vmatpush1.xpose.msra.mxu0 0.0
      %2355 = vmatprep.subr.mxu0 0.0
      %2356 = vmatpush1.xpose.msra.mxu0 0.0
      %2357 = vmatprep.subr.mxu0 0.0
      %2358 = vmatpush1.xpose.msra.mxu0 0.0
      %2359 = vmatprep.subr.mxu0 0.0
      %2360 = vmatpush1.xpose.msra.mxu0 0.0
      %2361 = vmatprep.subr.mxu0 0.0
      %2362 = vmatpush1.xpose.msra.mxu0 0.0
      %2363 = vmatprep.subr.mxu0 0.0
      %2364 = vmatpush1.xpose.msra.mxu0 0.0
      %2365 = vmatprep.subr.mxu0 0.0
      %2366 = vmatpush1.xpose.msra.mxu0 0.0
      %2367 = vmatprep.subr.mxu0 0.0
      %2368 = vmatpush1.xpose.msra.mxu0 0.0
      %2369 = vmatprep.subr.mxu0 0.0
      %2370 = vmatpush1.xpose.msra.mxu0 0.0
      %2371 = vmatprep.subr.mxu0 0.0
      %2372 = vmatpush1.xpose.msra.mxu0 0.0
      %2373 = vmatprep.subr.mxu0 0.0
      %2374 = vmatpush1.xpose.msra.mxu0 0.0
      %2375 = vmatprep.subr.mxu0 0.0
      %2376 = vmatpush1.xpose.msra.mxu0 0.0
      %2377 = vmatprep.subr.mxu0 0.0
      %2378 = vmatpush1.xpose.msra.mxu0 0.0
      %2379 = vmatprep.subr.mxu0 0.0
      %2380 = vmatpush1.xpose.msra.mxu0 0.0
      %2381 = vmatprep.subr.mxu0 0.0
      %2382 = vmatpush1.xpose.msra.mxu0 0.0
      %2383 = vmatprep.subr.mxu0 0.0
      %2384 = vmatpush1.xpose.msra.mxu0 %v2351
      %2385 = vmatprep.subr.mxu0 0.0
      %2386 = vmatpush2.xpose.msra.mxu0 0.0
      %2387 = vmatprep.subr.mxu0 0.0
      %2388 = vmatpush2.xpose.msra.mxu0 0.0
      %2389 = vmatprep.subr.mxu0 0.0
      %2390 = vmatpush2.xpose.msra.mxu0 0.0
      %2391 = vmatprep.subr.mxu0 0.0
      %2392 = vmatpush2.xpose.msra.mxu0 0.0
      %2393 = vmatprep.subr.mxu0 0.0
      %2394 = vmatpush2.xpose.msra.mxu0 0.0
      %2395 = vmatprep.subr.mxu0 0.0
      %2396 = vmatpush2.xpose.msra.mxu0 0.0
      %2397 = vmatprep.subr.mxu0 0.0
      %2398 = vmatpush2.xpose.msra.mxu0 0.0
      %2399 = vmatprep.subr.mxu0 0.0
      %2400 = vmatpush2.xpose.msra.mxu0 0.0
      %2401 = vmatprep.subr.mxu0 0.0
      %2402 = vmatpush2.xpose.msra.mxu0 0.0
      %2403 = vmatprep.subr.mxu0 0.0
      %2404 = vmatpush2.xpose.msra.mxu0 0.0
      %2405 = vmatprep.subr.mxu0 0.0
      %2406 = vmatpush2.xpose.msra.mxu0 0.0
      %2407 = vmatprep.subr.mxu0 0.0
      %2408 = vmatpush2.xpose.msra.mxu0 0.0
      %2409 = vmatprep.subr.mxu0 0.0
      %2410 = vmatpush2.xpose.msra.mxu0 0.0
      %2411 = vmatprep.subr.mxu0 0.0
      %2412 = vmatpush2.xpose.msra.mxu0 0.0
      %2413 = vmatprep.subr.mxu0 0.0
      %2414 = vmatpush2.xpose.msra.mxu0 0.0
      %2415 = vmatprep.subr.mxu0 0.0
      %2416 = vmatpush2.xpose.msra.mxu0 0.0
      %2417 = vmatprep.mubr.f32.mxu0 0.0
      %2418 = vmatmul.mubr.f32.gmra.mxu0 %v2349
      %v2419 = vpop.f32.mrf.mxu0
      %v2420 = vadd.f32 0.0, %v2419
      %v2421 = vpop.f32.mrf.mxu0
      %2422 = vdwg.mxu0
      %v2423 = vmul.f32 %v2420, 0.35355338
      %v2424 = vsel %vm2252, %v2423, -inf
      %2425 = vmax.xlane.f32.xlu0 %v2424
      %v2426 = vpop.xlane.xlu0 %2425
      %v2427 = vsub.f32 %v2423, %v2426
      %v2428 = vmul.f32 %v2427, 1.442695
      %v2429 = vpow.pop %v2428
      %v2430 = vsel %vm2252, %v2429, 0.0
      %2431 = vadd.xlane.f32.xlu0 %v2430
      %v2432 = vpop.xlane.xlu0 %2431
      %v2433 = vrcp.pop %v2432
      %v2434 = vmul.f32 %v2429, %v2433
      %2435 = vrot.lane.b32.xlu0 %v2172, 56
      %v2436 = vpop.permute.xlu0 %2435
      %v2438 = vsel %vm2266, %v2434, 0
      %v2440 = vsel %vm2270, %v2436, 0
      %2442 = vmatprep.subr.mxu0 0.0
      %2443 = vmatpush1.msra.mxu0 0.0
      %2444 = vmatprep.subr.mxu0 0.0
      %2445 = vmatpush1.msra.mxu0 0.0
      %2446 = vmatprep.subr.mxu0 0.0
      %2447 = vmatpush1.msra.mxu0 0.0
      %2448 = vmatprep.subr.mxu0 0.0
      %2449 = vmatpush1.msra.mxu0 0.0
      %2450 = vmatprep.subr.mxu0 0.0
      %2451 = vmatpush1.msra.mxu0 0.0
      %2452 = vmatprep.subr.mxu0 0.0
      %2453 = vmatpush1.msra.mxu0 0.0
      %2454 = vmatprep.subr.mxu0 0.0
      %2455 = vmatpush1.msra.mxu0 0.0
      %2456 = vmatprep.subr.mxu0 0.0
      %2457 = vmatpush1.msra.mxu0 0.0
      %2458 = vmatprep.subr.mxu0 0.0
      %2459 = vmatpush1.msra.mxu0 0.0
      %2460 = vmatprep.subr.mxu0 0.0
      %2461 = vmatpush1.msra.mxu0 0.0
      %2462 = vmatprep.subr.mxu0 0.0
      %2463 = vmatpush1.msra.mxu0 0.0
      %2464 = vmatprep.subr.mxu0 0.0
      %2465 = vmatpush1.msra.mxu0 0.0
      %2466 = vmatprep.subr.mxu0 0.0
      %2467 = vmatpush1.msra.mxu0 0.0
      %2468 = vmatprep.subr.mxu0 0.0
      %2469 = vmatpush1.msra.mxu0 0.0
      %2470 = vmatprep.subr.mxu0 0.0
      %2471 = vmatpush1.msra.mxu0 0.0
      %2472 = vmatprep.subr.mxu0 0.0
      %2473 = vmatpush1.msra.mxu0 %v2440
      %2474 = vmatprep.subr.mxu0 0.0
      %2475 = vmatpush2.msra.mxu0 0.0
      %2476 = vmatprep.subr.mxu0 0.0
      %2477 = vmatpush2.msra.mxu0 0.0
      %2478 = vmatprep.subr.mxu0 0.0
      %2479 = vmatpush2.msra.mxu0 0.0
      %2480 = vmatprep.subr.mxu0 0.0
      %2481 = vmatpush2.msra.mxu0 0.0
      %2482 = vmatprep.subr.mxu0 0.0
      %2483 = vmatpush2.msra.mxu0 0.0
      %2484 = vmatprep.subr.mxu0 0.0
      %2485 = vmatpush2.msra.mxu0 0.0
      %2486 = vmatprep.subr.mxu0 0.0
      %2487 = vmatpush2.msra.mxu0 0.0
      %2488 = vmatprep.subr.mxu0 0.0
      %2489 = vmatpush2.msra.mxu0 0.0
      %2490 = vmatprep.subr.mxu0 0.0
      %2491 = vmatpush2.msra.mxu0 0.0
      %2492 = vmatprep.subr.mxu0 0.0
      %2493 = vmatpush2.msra.mxu0 0.0
      %2494 = vmatprep.subr.mxu0 0.0
      %2495 = vmatpush2.msra.mxu0 0.0
      %2496 = vmatprep.subr.mxu0 0.0
      %2497 = vmatpush2.msra.mxu0 0.0
      %2498 = vmatprep.subr.mxu0 0.0
      %2499 = vmatpush2.msra.mxu0 0.0
      %2500 = vmatprep.subr.mxu0 0.0
      %2501 = vmatpush2.msra.mxu0 0.0
      %2502 = vmatprep.subr.mxu0 0.0
      %2503 = vmatpush2.msra.mxu0 0.0
      %2504 = vmatprep.subr.mxu0 0.0
      %2505 = vmatpush2.msra.mxu0 0.0
      %2506 = vmatprep.mubr.f32.mxu0 0.0
      %2507 = vmatmul.mubr.f32.gmra.mxu0 %v2438
      %v2508 = vpop.f32.mrf.mxu0
      %v2509 = vadd.f32 0.0, %v2508
      %v2510 = vpop.f32.mrf.mxu0
      %2511 = vdwg.mxu0
      %2513 = vrot.lane.b32.xlu0 %v2509, 8
      %v2514 = vpop.permute.xlu0 %2513
      %vm2516 = vcmask 126016
      %2517 = vst.msk [vmem:[#allocation4] sm:$0xf] %vm2516, %v2514
      %2518 = vrot.lane.b32.xlu0 %v2172, 112
      %v2519 = vpop.permute.xlu0 %2518
      %2520 = vrot.lane.b32.xlu0 %v2172, 80
      %v2521 = vpop.permute.xlu0 %2520
      %v2522 = vsel %vm2176, %v2519, 0
      %v2524 = vsel %vm2176, %v2521, 0
      %2526 = vmatprep.subr.mxu0 0.0
      %2527 = vmatpush1.xpose.msra.mxu0 0.0
      %2528 = vmatprep.subr.mxu0 0.0
      %2529 = vmatpush1.xpose.msra.mxu0 0.0
      %2530 = vmatprep.subr.mxu0 0.0
      %2531 = vmatpush1.xpose.msra.mxu0 0.0
      %2532 = vmatprep.subr.mxu0 0.0
      %2533 = vmatpush1.xpose.msra.mxu0 0.0
      %2534 = vmatprep.subr.mxu0 0.0
      %2535 = vmatpush1.xpose.msra.mxu0 0.0
      %2536 = vmatprep.subr.mxu0 0.0
      %2537 = vmatpush1.xpose.msra.mxu0 0.0
      %2538 = vmatprep.subr.mxu0 0.0
      %2539 = vmatpush1.xpose.msra.mxu0 0.0
      %2540 = vmatprep.subr.mxu0 0.0
      %2541 = vmatpush1.xpose.msra.mxu0 0.0
      %2542 = vmatprep.subr.mxu0 0.0
      %2543 = vmatpush1.xpose.msra.mxu0 0.0
      %2544 = vmatprep.subr.mxu0 0.0
      %2545 = vmatpush1.xpose.msra.mxu0 0.0
      %2546 = vmatprep.subr.mxu0 0.0
      %2547 = vmatpush1.xpose.msra.mxu0 0.0
      %2548 = vmatprep.subr.mxu0 0.0
      %2549 = vmatpush1.xpose.msra.mxu0 0.0
      %2550 = vmatprep.subr.mxu0 0.0
      %2551 = vmatpush1.xpose.msra.mxu0 0.0
      %2552 = vmatprep.subr.mxu0 0.0
      %2553 = vmatpush1.xpose.msra.mxu0 0.0
      %2554 = vmatprep.subr.mxu0 0.0
      %2555 = vmatpush1.xpose.msra.mxu0 0.0
      %2556 = vmatprep.subr.mxu0 0.0
      %2557 = vmatpush1.xpose.msra.mxu0 %v2524
      %2558 = vmatprep.subr.mxu0 0.0
      %2559 = vmatpush2.xpose.msra.mxu0 0.0
      %2560 = vmatprep.subr.mxu0 0.0
      %2561 = vmatpush2.xpose.msra.mxu0 0.0
      %2562 = vmatprep.subr.mxu0 0.0
      %2563 = vmatpush2.xpose.msra.mxu0 0.0
      %2564 = vmatprep.subr.mxu0 0.0
      %2565 = vmatpush2.xpose.msra.mxu0 0.0
      %2566 = vmatprep.subr.mxu0 0.0
      %2567 = vmatpush2.xpose.msra.mxu0 0.0
      %2568 = vmatprep.subr.mxu0 0.0
      %2569 = vmatpush2.xpose.msra.mxu0 0.0
      %2570 = vmatprep.subr.mxu0 0.0
      %2571 = vmatpush2.xpose.msra.mxu0 0.0
      %2572 = vmatprep.subr.mxu0 0.0
      %2573 = vmatpush2.xpose.msra.mxu0 0.0
      %2574 = vmatprep.subr.mxu0 0.0
      %2575 = vmatpush2.xpose.msra.mxu0 0.0
      %2576 = vmatprep.subr.mxu0 0.0
      %2577 = vmatpush2.xpose.msra.mxu0 0.0
      %2578 = vmatprep.subr.mxu0 0.0
      %2579 = vmatpush2.xpose.msra.mxu0 0.0
      %2580 = vmatprep.subr.mxu0 0.0
      %2581 = vmatpush2.xpose.msra.mxu0 0.0
      %2582 = vmatprep.subr.mxu0 0.0
      %2583 = vmatpush2.xpose.msra.mxu0 0.0
      %2584 = vmatprep.subr.mxu0 0.0
      %2585 = vmatpush2.xpose.msra.mxu0 0.0
      %2586 = vmatprep.subr.mxu0 0.0
      %2587 = vmatpush2.xpose.msra.mxu0 0.0
      %2588 = vmatprep.subr.mxu0 0.0
      %2589 = vmatpush2.xpose.msra.mxu0 0.0
      %2590 = vmatprep.mubr.f32.mxu0 0.0
      %2591 = vmatmul.mubr.f32.gmra.mxu0 %v2522
      %v2592 = vpop.f32.mrf.mxu0
      %v2593 = vadd.f32 0.0, %v2592
      %v2594 = vpop.f32.mrf.mxu0
      %2595 = vdwg.mxu0
      %v2596 = vmul.f32 %v2593, 0.35355338
      %v2597 = vsel %vm2252, %v2596, -inf
      %2598 = vmax.xlane.f32.xlu0 %v2597
      %v2599 = vpop.xlane.xlu0 %2598
      %v2600 = vsub.f32 %v2596, %v2599
      %v2601 = vmul.f32 %v2600, 1.442695
      %v2602 = vpow.pop %v2601
      %v2603 = vsel %vm2252, %v2602, 0.0
      %2604 = vadd.xlane.f32.xlu0 %v2603
      %v2605 = vpop.xlane.xlu0 %2604
      %v2606 = vrcp.pop %v2605
      %v2607 = vmul.f32 %v2602, %v2606
      %2608 = vrot.lane.b32.xlu0 %v2172, 48
      %v2609 = vpop.permute.xlu0 %2608
      %v2611 = vsel %vm2266, %v2607, 0
      %v2613 = vsel %vm2270, %v2609, 0
      %2615 = vmatprep.subr.mxu0 0.0
      %2616 = vmatpush1.msra.mxu0 0.0
      %2617 = vmatprep.subr.mxu0 0.0
      %2618 = vmatpush1.msra.mxu0 0.0
      %2619 = vmatprep.subr.mxu0 0.0
      %2620 = vmatpush1.msra.mxu0 0.0
      %2621 = vmatprep.subr.mxu0 0.0
      %2622 = vmatpush1.msra.mxu0 0.0
      %2623 = vmatprep.subr.mxu0 0.0
      %2624 = vmatpush1.msra.mxu0 0.0
      %2625 = vmatprep.subr.mxu0 0.0
      %2626 = vmatpush1.msra.mxu0 0.0
      %2627 = vmatprep.subr.mxu0 0.0
      %2628 = vmatpush1.msra.mxu0 0.0
      %2629 = vmatprep.subr.mxu0 0.0
      %2630 = vmatpush1.msra.mxu0 0.0
      %2631 = vmatprep.subr.mxu0 0.0
      %2632 = vmatpush1.msra.mxu0 0.0
      %2633 = vmatprep.subr.mxu0 0.0
      %2634 = vmatpush1.msra.mxu0 0.0
      %2635 = vmatprep.subr.mxu0 0.0
      %2636 = vmatpush1.msra.mxu0 0.0
      %2637 = vmatprep.subr.mxu0 0.0
      %2638 = vmatpush1.msra.mxu0 0.0
      %2639 = vmatprep.subr.mxu0 0.0
      %2640 = vmatpush1.msra.mxu0 0.0
      %2641 = vmatprep.subr.mxu0 0.0
      %2642 = vmatpush1.msra.mxu0 0.0
      %2643 = vmatprep.subr.mxu0 0.0
      %2644 = vmatpush1.msra.mxu0 0.0
      %2645 = vmatprep.subr.mxu0 0.0
      %2646 = vmatpush1.msra.mxu0 %v2613
      %2647 = vmatprep.subr.mxu0 0.0
      %2648 = vmatpush2.msra.mxu0 0.0
      %2649 = vmatprep.subr.mxu0 0.0
      %2650 = vmatpush2.msra.mxu0 0.0
      %2651 = vmatprep.subr.mxu0 0.0
      %2652 = vmatpush2.msra.mxu0 0.0
      %2653 = vmatprep.subr.mxu0 0.0
      %2654 = vmatpush2.msra.mxu0 0.0
      %2655 = vmatprep.subr.mxu0 0.0
      %2656 = vmatpush2.msra.mxu0 0.0
      %2657 = vmatprep.subr.mxu0 0.0
      %2658 = vmatpush2.msra.mxu0 0.0
      %2659 = vmatprep.subr.mxu0 0.0
      %2660 = vmatpush2.msra.mxu0 0.0
      %2661 = vmatprep.subr.mxu0 0.0
      %2662 = vmatpush2.msra.mxu0 0.0
      %2663 = vmatprep.subr.mxu0 0.0
      %2664 = vmatpush2.msra.mxu0 0.0
      %2665 = vmatprep.subr.mxu0 0.0
      %2666 = vmatpush2.msra.mxu0 0.0
      %2667 = vmatprep.subr.mxu0 0.0
      %2668 = vmatpush2.msra.mxu0 0.0
      %2669 = vmatprep.subr.mxu0 0.0
      %2670 = vmatpush2.msra.mxu0 0.0
      %2671 = vmatprep.subr.mxu0 0.0
      %2672 = vmatpush2.msra.mxu0 0.0
      %2673 = vmatprep.subr.mxu0 0.0
      %2674 = vmatpush2.msra.mxu0 0.0
      %2675 = vmatprep.subr.mxu0 0.0
      %2676 = vmatpush2.msra.mxu0 0.0
      %2677 = vmatprep.subr.mxu0 0.0
      %2678 = vmatpush2.msra.mxu0 0.0
      %2679 = vmatprep.mubr.f32.mxu0 0.0
      %2680 = vmatmul.mubr.f32.gmra.mxu0 %v2611
      %v2681 = vpop.f32.mrf.mxu0
      %v2682 = vadd.f32 0.0, %v2681
      %v2683 = vpop.f32.mrf.mxu0
      %2684 = vdwg.mxu0
      %2686 = vrot.lane.b32.xlu0 %v2682, 16
      %v2687 = vpop.permute.xlu0 %2686
      %vm2689 = vcmask 191616
      %2690 = vst.msk [vmem:[#allocation4] sm:$0xf] %vm2689, %v2687
      %2691 = vrot.lane.b32.xlu0 %v2172, 104
      %v2692 = vpop.permute.xlu0 %2691
      %2693 = vrot.lane.b32.xlu0 %v2172, 72
      %v2694 = vpop.permute.xlu0 %2693
      %v2695 = vsel %vm2176, %v2692, 0
      %v2697 = vsel %vm2176, %v2694, 0
      %2699 = vmatprep.subr.mxu0 0.0
      %2700 = vmatpush1.xpose.msra.mxu0 0.0
      %2701 = vmatprep.subr.mxu0 0.0
      %2702 = vmatpush1.xpose.msra.mxu0 0.0
      %2703 = vmatprep.subr.mxu0 0.0
      %2704 = vmatpush1.xpose.msra.mxu0 0.0
      %2705 = vmatprep.subr.mxu0 0.0
      %2706 = vmatpush1.xpose.msra.mxu0 0.0
      %2707 = vmatprep.subr.mxu0 0.0
      %2708 = vmatpush1.xpose.msra.mxu0 0.0
      %2709 = vmatprep.subr.mxu0 0.0
      %2710 = vmatpush1.xpose.msra.mxu0 0.0
      %2711 = vmatprep.subr.mxu0 0.0
      %2712 = vmatpush1.xpose.msra.mxu0 0.0
      %2713 = vmatprep.subr.mxu0 0.0
      %2714 = vmatpush1.xpose.msra.mxu0 0.0
      %2715 = vmatprep.subr.mxu0 0.0
      %2716 = vmatpush1.xpose.msra.mxu0 0.0
      %2717 = vmatprep.subr.mxu0 0.0
      %2718 = vmatpush1.xpose.msra.mxu0 0.0
      %2719 = vmatprep.subr.mxu0 0.0
      %2720 = vmatpush1.xpose.msra.mxu0 0.0
      %2721 = vmatprep.subr.mxu0 0.0
      %2722 = vmatpush1.xpose.msra.mxu0 0.0
      %2723 = vmatprep.subr.mxu0 0.0
      %2724 = vmatpush1.xpose.msra.mxu0 0.0
      %2725 = vmatprep.subr.mxu0 0.0
      %2726 = vmatpush1.xpose.msra.mxu0 0.0
      %2727 = vmatprep.subr.mxu0 0.0
      %2728 = vmatpush1.xpose.msra.mxu0 0.0
      %2729 = vmatprep.subr.mxu0 0.0
      %2730 = vmatpush1.xpose.msra.mxu0 %v2697
      %2731 = vmatprep.subr.mxu0 0.0
      %2732 = vmatpush2.xpose.msra.mxu0 0.0
      %2733 = vmatprep.subr.mxu0 0.0
      %2734 = vmatpush2.xpose.msra.mxu0 0.0
      %2735 = vmatprep.subr.mxu0 0.0
      %2736 = vmatpush2.xpose.msra.mxu0 0.0
      %2737 = vmatprep.subr.mxu0 0.0
      %2738 = vmatpush2.xpose.msra.mxu0 0.0
      %2739 = vmatprep.subr.mxu0 0.0
      %2740 = vmatpush2.xpose.msra.mxu0 0.0
      %2741 = vmatprep.subr.mxu0 0.0
      %2742 = vmatpush2.xpose.msra.mxu0 0.0
      %2743 = vmatprep.subr.mxu0 0.0
      %2744 = vmatpush2.xpose.msra.mxu0 0.0
      %2745 = vmatprep.subr.mxu0 0.0
      %2746 = vmatpush2.xpose.msra.mxu0 0.0
      %2747 = vmatprep.subr.mxu0 0.0
      %2748 = vmatpush2.xpose.msra.mxu0 0.0
      %2749 = vmatprep.subr.mxu0 0.0
      %2750 = vmatpush2.xpose.msra.mxu0 0.0
      %2751 = vmatprep.subr.mxu0 0.0
      %2752 = vmatpush2.xpose.msra.mxu0 0.0
      %2753 = vmatprep.subr.mxu0 0.0
      %2754 = vmatpush2.xpose.msra.mxu0 0.0
      %2755 = vmatprep.subr.mxu0 0.0
      %2756 = vmatpush2.xpose.msra.mxu0 0.0
      %2757 = vmatprep.subr.mxu0 0.0
      %2758 = vmatpush2.xpose.msra.mxu0 0.0
      %2759 = vmatprep.subr.mxu0 0.0
      %2760 = vmatpush2.xpose.msra.mxu0 0.0
      %2761 = vmatprep.subr.mxu0 0.0
      %2762 = vmatpush2.xpose.msra.mxu0 0.0
      %2763 = vmatprep.mubr.f32.mxu0 0.0
      %2764 = vmatmul.mubr.f32.gmra.mxu0 %v2695
      %v2765 = vpop.f32.mrf.mxu0
      %v2766 = vadd.f32 0.0, %v2765
      %v2767 = vpop.f32.mrf.mxu0
      %2768 = vdwg.mxu0
      %v2769 = vmul.f32 %v2766, 0.35355338
      %v2770 = vsel %vm2252, %v2769, -inf
      %2771 = vmax.xlane.f32.xlu0 %v2770
      %v2772 = vpop.xlane.xlu0 %2771
      %v2773 = vsub.f32 %v2769, %v2772
      %v2774 = vmul.f32 %v2773, 1.442695
      %v2775 = vpow.pop %v2774
      %v2776 = vsel %vm2252, %v2775, 0.0
      %2777 = vadd.xlane.f32.xlu0 %v2776
      %v2778 = vpop.xlane.xlu0 %2777
      %v2779 = vrcp.pop %v2778
      %v2780 = vmul.f32 %v2775, %v2779
      %2781 = vrot.lane.b32.xlu0 %v2172, 40
      %v2782 = vpop.permute.xlu0 %2781
      %v2784 = vsel %vm2266, %v2780, 0
      %v2786 = vsel %vm2270, %v2782, 0
      %2788 = vmatprep.subr.mxu0 0.0
      %2789 = vmatpush1.msra.mxu0 0.0
      %2790 = vmatprep.subr.mxu0 0.0
      %2791 = vmatpush1.msra.mxu0 0.0
      %2792 = vmatprep.subr.mxu0 0.0
      %2793 = vmatpush1.msra.mxu0 0.0
      %2794 = vmatprep.subr.mxu0 0.0
      %2795 = vmatpush1.msra.mxu0 0.0
      %2796 = vmatprep.subr.mxu0 0.0
      %2797 = vmatpush1.msra.mxu0 0.0
      %2798 = vmatprep.subr.mxu0 0.0
      %2799 = vmatpush1.msra.mxu0 0.0
      %2800 = vmatprep.subr.mxu0 0.0
      %2801 = vmatpush1.msra.mxu0 0.0
      %2802 = vmatprep.subr.mxu0 0.0
      %2803 = vmatpush1.msra.mxu0 0.0
      %2804 = vmatprep.subr.mxu0 0.0
      %2805 = vmatpush1.msra.mxu0 0.0
      %2806 = vmatprep.subr.mxu0 0.0
      %2807 = vmatpush1.msra.mxu0 0.0
      %2808 = vmatprep.subr.mxu0 0.0
      %2809 = vmatpush1.msra.mxu0 0.0
      %2810 = vmatprep.subr.mxu0 0.0
      %2811 = vmatpush1.msra.mxu0 0.0
      %2812 = vmatprep.subr.mxu0 0.0
      %2813 = vmatpush1.msra.mxu0 0.0
      %2814 = vmatprep.subr.mxu0 0.0
      %2815 = vmatpush1.msra.mxu0 0.0
      %2816 = vmatprep.subr.mxu0 0.0
      %2817 = vmatpush1.msra.mxu0 0.0
      %2818 = vmatprep.subr.mxu0 0.0
      %2819 = vmatpush1.msra.mxu0 %v2786
      %2820 = vmatprep.subr.mxu0 0.0
      %2821 = vmatpush2.msra.mxu0 0.0
      %2822 = vmatprep.subr.mxu0 0.0
      %2823 = vmatpush2.msra.mxu0 0.0
      %2824 = vmatprep.subr.mxu0 0.0
      %2825 = vmatpush2.msra.mxu0 0.0
      %2826 = vmatprep.subr.mxu0 0.0
      %2827 = vmatpush2.msra.mxu0 0.0
      %2828 = vmatprep.subr.mxu0 0.0
      %2829 = vmatpush2.msra.mxu0 0.0
      %2830 = vmatprep.subr.mxu0 0.0
      %2831 = vmatpush2.msra.mxu0 0.0
      %2832 = vmatprep.subr.mxu0 0.0
      %2833 = vmatpush2.msra.mxu0 0.0
      %2834 = vmatprep.subr.mxu0 0.0
      %2835 = vmatpush2.msra.mxu0 0.0
      %2836 = vmatprep.subr.mxu0 0.0
      %2837 = vmatpush2.msra.mxu0 0.0
      %2838 = vmatprep.subr.mxu0 0.0
      %2839 = vmatpush2.msra.mxu0 0.0
      %2840 = vmatprep.subr.mxu0 0.0
      %2841 = vmatpush2.msra.mxu0 0.0
      %2842 = vmatprep.subr.mxu0 0.0
      %2843 = vmatpush2.msra.mxu0 0.0
      %2844 = vmatprep.subr.mxu0 0.0
      %2845 = vmatpush2.msra.mxu0 0.0
      %2846 = vmatprep.subr.mxu0 0.0
      %2847 = vmatpush2.msra.mxu0 0.0
      %2848 = vmatprep.subr.mxu0 0.0
      %2849 = vmatpush2.msra.mxu0 0.0
      %2850 = vmatprep.subr.mxu0 0.0
      %2851 = vmatpush2.msra.mxu0 0.0
      %2852 = vmatprep.mubr.f32.mxu0 0.0
      %2853 = vmatmul.mubr.f32.gmra.mxu0 %v2784
      %v2854 = vpop.f32.mrf.mxu0
      %v2855 = vadd.f32 0.0, %v2854
      %v2856 = vpop.f32.mrf.mxu0
      %2857 = vdwg.mxu0
      %2859 = vrot.lane.b32.xlu0 %v2855, 24
      %v2860 = vpop.permute.xlu0 %2859
      %vm2862 = vcmask 257216
      %2863 = vst.msk [vmem:[#allocation4] sm:$0xf] %vm2862, %v2860
      %vm2864 = vcmask 256000
      %2865 = vst.msk [vmem:[#allocation5] sm:$0x7] %vm2864, 0.0
      %2866 = vst.msk [vmem:[#allocation5 + $0x4] sm:$0x7] %vm2864, 0.0
      %2867 = vst.msk [vmem:[#allocation5 + $0x8] sm:$0x7] %vm2864, 0.0
      %v2868 = vld [vmem:[#allocation4] sm:$0xf]
      %v2871 = vunpack.c.l.s4 1983009808
      %v2872 = vunpack.c.0.s8 %v2871
      %v2873 = vlaneseq
      %v2874 = vshrl.u32 %v2873, 7
      %v2875 = vsub.s32 %v2872, %v2874
      %v2876 = vrot.slane %v2868, %v2875
      %v2877 = vcombine.high %v2876, %v2876
      %2880 = vst.msk [vmem:[#allocation5] sm:$0x3] %vm1237, %v2876
      %2881 = vst.msk [vmem:[#allocation5 + $0x4] sm:$0x3] %vm1237, %v2877
      %v2882 = vld [vmem:[#allocation5] sm:$0x3]
      %v2883 = vld [vmem:[#allocation5 + $0x4] sm:$0x3]
      %v2884 = vld [vmem:[#allocation5 + $0x1] sm:$0x3]
      %v2885 = vld [vmem:[#allocation5 + $0x5] sm:$0x3]
      %s2886 = scalar_lea.vmem [#allocation5], 4
      %v2887 = vld [vmem:[%s2886] sm:$0x3]
      %v2888 = vld [vmem:[%s2886 + $0x4] sm:$0x3]
      %v2889 = vld [vmem:[%s2886 + $0x1] sm:$0x3]
      %v2890 = vld [vmem:[%s2886 + $0x5] sm:$0x3]
      %v2893 = vcombine.low %v2882, %v2883
      %v2895 = vunpack.c.l.s4 1983009808
      %v2896 = vunpack.c.0.s8 %v2895
      %v2897 = vlaneseq
      %v2898 = vshrl.u32 %v2897, 7
      %v2899 = vsub.s32 %v2896, %v2898
      %v2900 = vrot.slane %v2893, %v2899
      %v2904 = vcombine.low %v2884, %v2885
      %v2906 = vunpack.c.l.s4 1983009808
      %v2907 = vunpack.c.0.s8 %v2906
      %v2908 = vlaneseq
      %v2909 = vshrl.u32 %v2908, 7
      %v2910 = vsub.s32 %v2907, %v2909
      %v2911 = vrot.slane %v2904, %v2910
      %2912 = vrot.lane.b32.xlu0 %v2911, 32
      %v2913 = vpop.permute.xlu0 %2912
      %v2917 = vcombine.low %v2887, %v2888
      %v2919 = vunpack.c.l.s4 1983009808
      %v2920 = vunpack.c.0.s8 %v2919
      %v2921 = vlaneseq
      %v2922 = vshrl.u32 %v2921, 7
      %v2923 = vsub.s32 %v2920, %v2922
      %v2924 = vrot.slane %v2917, %v2923
      %2925 = vrot.lane.b32.xlu0 %v2924, 64
      %v2926 = vpop.permute.xlu0 %2925
      %v2930 = vcombine.low %v2889, %v2890
      %v2932 = vunpack.c.l.s4 1983009808
      %v2933 = vunpack.c.0.s8 %v2932
      %v2934 = vlaneseq
      %v2935 = vshrl.u32 %v2934, 7
      %v2936 = vsub.s32 %v2933, %v2935
      %v2937 = vrot.slane %v2930, %v2936
      %2938 = vrot.lane.b32.xlu0 %v2937, 96
      %v2939 = vpop.permute.xlu0 %2938
      %v2941 = vsel %vm1235, %v2900, %v2913
      %v2942 = vsel %vm1434, %v2941, %v2926
      %v2943 = vsel %vm1437, %v2942, %v2939
      %v2944 = vpack.c.bf16 %v2943, %v2943
      %v2945 = vld [vmem:[%s7] sm:$0xf]
      %v2946 = vld [vmem:[%s7 + $0x4] sm:$0xf]
      %v2947 = vld [vmem:[%s7 + $0x8] sm:$0xf]
      %v2948 = vld [vmem:[%s7 + $0xc] sm:$0xf]
      %v2949 = vld [vmem:[%s7 + $0x10] sm:$0xf]
      %v2950 = vld [vmem:[%s7 + $0x14] sm:$0xf]
      %v2951 = vld [vmem:[%s7 + $0x18] sm:$0xf]
      %v2952 = vld [vmem:[%s7 + $0x1c] sm:$0xf]
      %v2953 = vld [vmem:[%s7 + $0x20] sm:$0xf]
      %v2954 = vld [vmem:[%s7 + $0x24] sm:$0xf]
      %v2955 = vld [vmem:[%s7 + $0x28] sm:$0xf]
      %v2956 = vld [vmem:[%s7 + $0x2c] sm:$0xf]
      %v2957 = vld [vmem:[%s7 + $0x30] sm:$0xf]
      %v2958 = vld [vmem:[%s7 + $0x34] sm:$0xf]
      %v2959 = vld [vmem:[%s7 + $0x38] sm:$0xf]
      %v2960 = vld [vmem:[%s7 + $0x3c] sm:$0xf]
      %v2977 = vunpack.c.l.b16 %v2945
      %v2978 = vunpack.c.l.b16 %v2946
      %v2979 = vunpack.c.l.b16 %v2947
      %v2980 = vunpack.c.l.b16 %v2948
      %v2981 = vunpack.c.l.b16 %v2949
      %v2982 = vunpack.c.l.b16 %v2950
      %v2983 = vunpack.c.l.b16 %v2951
      %v2984 = vunpack.c.l.b16 %v2952
      %v2985 = vunpack.c.l.b16 %v2953
      %v2986 = vunpack.c.l.b16 %v2954
      %v2987 = vunpack.c.l.b16 %v2955
      %v2988 = vunpack.c.l.b16 %v2956
      %v2989 = vunpack.c.l.b16 %v2957
      %v2990 = vunpack.c.l.b16 %v2958
      %v2991 = vunpack.c.l.b16 %v2959
      %v2992 = vunpack.c.l.b16 %v2960
      %v2993 = vpack.c.b16 %v2978, %v2977
      %v2994 = vpack.c.b16 %v2980, %v2979
      %v2995 = vpack.c.b16 %v2982, %v2981
      %v2996 = vpack.c.b16 %v2984, %v2983
      %v2997 = vpack.c.b16 %v2986, %v2985
      %v2998 = vpack.c.b16 %v2988, %v2987
      %v2999 = vpack.c.b16 %v2990, %v2989
      %v3000 = vpack.c.b16 %v2992, %v2991
      %3009 = vmatprep.subr.bf16.mxu0 0
      %3010 = vmatpush1.bf16.msra.mxu0 %v3000
      %3011 = vmatprep.subr.bf16.mxu0 0
      %3012 = vmatpush1.bf16.msra.mxu0 %v2999
      %3013 = vmatprep.subr.bf16.mxu0 0
      %3014 = vmatpush1.bf16.msra.mxu0 %v2998
      %3015 = vmatprep.subr.bf16.mxu0 0
      %3016 = vmatpush1.bf16.msra.mxu0 %v2997
      %3017 = vmatprep.subr.bf16.mxu0 0
      %3018 = vmatpush1.bf16.msra.mxu0 %v2996
      %3019 = vmatprep.subr.bf16.mxu0 0
      %3020 = vmatpush1.bf16.msra.mxu0 %v2995
      %3021 = vmatprep.subr.bf16.mxu0 0
      %3022 = vmatpush1.bf16.msra.mxu0 %v2994
      %3023 = vmatprep.subr.bf16.mxu0 0
      %3024 = vmatpush1.bf16.msra.mxu0 %v2993
      %3025 = vmatprep.subr.bf16.mxu0 0
      %3026 = vmatpush2.bf16.msra.mxu0 0
      %3027 = vmatprep.subr.bf16.mxu0 0
      %3028 = vmatpush2.bf16.msra.mxu0 0
      %3029 = vmatprep.subr.bf16.mxu0 0
      %3030 = vmatpush2.bf16.msra.mxu0 0
      %3031 = vmatprep.subr.bf16.mxu0 0
      %3032 = vmatpush2.bf16.msra.mxu0 0
      %3033 = vmatprep.subr.bf16.mxu0 0
      %3034 = vmatpush2.bf16.msra.mxu0 0
      %3035 = vmatprep.subr.bf16.mxu0 0
      %3036 = vmatpush2.bf16.msra.mxu0 0
      %3037 = vmatprep.subr.bf16.mxu0 0
      %3038 = vmatpush2.bf16.msra.mxu0 0
      %3039 = vmatprep.subr.bf16.mxu0 0
      %3040 = vmatpush2.bf16.msra.mxu0 0
      %3041 = vmatprep.mubr.bf16.mxu0 0
      %3042 = vmatmul.mubr.bf16.gmra.mxu0 %v2944
      %v3043 = vpop.f32.mrf.mxu0
      %v3044 = vadd.f32 0.0, %v3043
      %v3045 = vpop.f32.mrf.mxu0
      %v3046 = vpop.f32.mrf.mxu0
      %v3047 = vpop.f32.mrf.mxu0
      %3048 = vdwg.mxu0
      %v3049 = vld [vmem:[%s8] sm:$0x1]
      %v3051 = vlaneseq
      %v3052 = vshrl.u32 %v3051, 7
      %v3053 = vsub.s32 0, %v3052
      %v3054 = vrot.slane %v3049, %v3053
      %v3056 = vmul.f32 %v3044, %v3054
      %v3057 = vld [vmem:[%s9] sm:$0x1]
      %v3059 = vlaneseq
      %v3060 = vshrl.u32 %v3059, 7
      %v3061 = vsub.s32 0, %v3060
      %v3062 = vrot.slane %v3057, %v3061
      %v3064 = vadd.f32 %v3056, %v3062
      %v3065 = vmul.f32 %v3064, 0.5
      %v3066 = vmul.f32 %v3064, 0.70710677
      %v3067 = vand.u32 2147483647, %v3066
      %v3068 = vmul.f32 %v3067, 0.3275911
      %v3069 = vadd.f32 %v3068, 1.0
      %v3070 = vrcp.pop %v3069
      %v3071 = vmul.f32 1.0, %v3070
      %v3072 = vmul.f32 %v3071, 1.0614054
      %v3073 = vadd.f32 %v3072, -1.4531521
      %v3074 = vmul.f32 %v3073, %v3071
      %v3075 = vadd.f32 %v3074, 1.4214138
      %v3076 = vmul.f32 %v3075, %v3071
      %v3077 = vadd.f32 %v3076, -0.28449672
      %v3078 = vmul.f32 %v3077, %v3071
      %v3079 = vadd.f32 %v3078, 0.2548296
      %v3080 = vmul.f32 %v3079, %v3071
      %v3081 = vsub.f32 0.0, %v3067
      %v3082 = vmul.f32 %v3081, %v3067
      %v3083 = vmul.f32 %v3082, 1.442695
      %v3084 = vpow.pop %v3083
      %v3085 = vmul.f32 %v3080, %v3084
      %v3086 = vsub.f32 1.0, %v3085
      %vm3087 = vcmp.lt.f32.partialorder %v3066, 0.0
      %v3088 = vsub.f32 0.0, %v3086
      %v3089 = vsel %vm3087, %v3088, %v3086
      %v3090 = vadd.f32 %v3089, 1.0
      %v3091 = vmul.f32 %v3065, %v3090
      %vm3092 = vcmask 258048
      %3093 = vst.msk [vmem:[#allocation6] sm:$0x1f] %vm3092, 0.0
      %3094 = vst.msk [vmem:[#allocation6 + $0x8] sm:$0x1f] %vm3092, 0.0
      %3095 = vst.msk [vmem:[#allocation6 + $0x10] sm:$0x1f] %vm3092, 0.0
      %3096 = vst.msk [vmem:[#allocation6 + $0x18] sm:$0x1f] %vm3092, 0.0
      %3097 = vst.msk [vmem:[#allocation6 + $0x20] sm:$0x1f] %vm3092, 0.0
      %vm3098 = vcmask 253952
      %3099 = vst.msk [vmem:[#allocation6] sm:$0x1] %vm3098, %v3091
      %3101 = vrot.lane.b32.xlu0 %v3091, 96
      %v3102 = vpop.permute.xlu0 %3101
      %3104 = vst.msk [vmem:[#allocation6 + $0x1] sm:$0x1] %vm3098, %v3102
      %3105 = vrot.lane.b32.xlu0 %v3091, 64
      %v3106 = vpop.permute.xlu0 %3105
      %s3108 = scalar_lea.vmem [#allocation6], 8
      %3109 = vst.msk [vmem:[%s3108] sm:$0x1] %vm3098, %v3106
      %3110 = vrot.lane.b32.xlu0 %v3091, 32
      %v3111 = vpop.permute.xlu0 %3110
      %3113 = vst.msk [vmem:[%s3108 + $0x1] sm:$0x1] %vm3098, %v3111
      %vm3114 = vcmask 254977
      %3115 = vst.msk [vmem:[#allocation6 + $0x1] sm:$0x2] %vm3114, %v3091
      %3116 = vst.msk [vmem:[#allocation6 + $0x2] sm:$0x2] %vm3114, %v3102
      %3117 = vst.msk [vmem:[%s3108 + $0x1] sm:$0x2] %vm3114, %v3106
      %3118 = vst.msk [vmem:[%s3108 + $0x2] sm:$0x2] %vm3114, %v3111
      %s3119 = scalar_lea.vmem [#allocation6], 16
      %vm3120 = vcmask 256002
      %3121 = vst.msk [vmem:[%s3119 - $0x2] sm:$0x4] %vm3120, %v3091
      %3122 = vst.msk [vmem:[%s3119 - $0x1] sm:$0x4] %vm3120, %v3102
      %s3123 = scalar_lea.vmem [#allocation6], 24
      %3124 = vst.msk [vmem:[%s3123 - $0x2] sm:$0x4] %vm3120, %v3106
      %3125 = vst.msk [vmem:[%s3123 - $0x1] sm:$0x4] %vm3120, %v3111
      %vm3126 = vcmask 257027
      %3127 = vst.msk [vmem:[%s3119 - $0x1] sm:$0x8] %vm3126, %v3091
      %3128 = vst.msk [vmem:[%s3119] sm:$0x8] %vm3126, %v3102
      %3129 = vst.msk [vmem:[%s3123 - $0x1] sm:$0x8] %vm3126, %v3106
      %3130 = vst.msk [vmem:[%s3123] sm:$0x8] %vm3126, %v3111
      %v3131 = vld [vmem:[#allocation6] sm:$0xf]
      %v3132 = vld [vmem:[#allocation6 + $0x8] sm:$0xf]
      %v3133 = vld [vmem:[#allocation6 + $0x10] sm:$0xf]
      %v3134 = vld [vmem:[#allocation6 + $0x18] sm:$0xf]
      %v3135 = vld [vmem:[#allocation6 + $0x1] sm:$0xf]
      %v3136 = vld [vmem:[#allocation6 + $0x9] sm:$0xf]
      %v3137 = vld [vmem:[#allocation6 + $0x11] sm:$0xf]
      %v3138 = vld [vmem:[#allocation6 + $0x19] sm:$0xf]
      %v3139 = vld [vmem:[%s3108] sm:$0xf]
      %v3140 = vld [vmem:[%s3108 + $0x8] sm:$0xf]
      %v3141 = vld [vmem:[%s3108 + $0x10] sm:$0xf]
      %v3142 = vld [vmem:[%s3108 + $0x18] sm:$0xf]
      %v3143 = vld [vmem:[%s3108 + $0x1] sm:$0xf]
      %v3144 = vld [vmem:[%s3108 + $0x9] sm:$0xf]
      %v3145 = vld [vmem:[%s3108 + $0x11] sm:$0xf]
      %v3146 = vld [vmem:[%s3108 + $0x19] sm:$0xf]
      %v3151 = vcombine.low %v3131, %v3132
      %v3152 = vcombine.low %v3133, %v3134
      %v3159 = vcombine.low %v3135, %v3136
      %v3160 = vcombine.low %v3137, %v3138
      %3161 = vrot.lane.b32.xlu0 %v3159, 32
      %v3162 = vpop.permute.xlu0 %3161
      %3163 = vrot.lane.b32.xlu0 %v3160, 32
      %v3164 = vpop.permute.xlu0 %3163
      %v3171 = vcombine.low %v3139, %v3140
      %v3172 = vcombine.low %v3141, %v3142
      %3173 = vrot.lane.b32.xlu0 %v3171, 64
      %v3174 = vpop.permute.xlu0 %3173
      %3175 = vrot.lane.b32.xlu0 %v3172, 64
      %v3176 = vpop.permute.xlu0 %3175
      %v3183 = vcombine.low %v3143, %v3144
      %v3184 = vcombine.low %v3145, %v3146
      %3185 = vrot.lane.b32.xlu0 %v3183, 96
      %v3186 = vpop.permute.xlu0 %3185
      %3187 = vrot.lane.b32.xlu0 %v3184, 96
      %v3188 = vpop.permute.xlu0 %3187
      %v3191 = vsel %vm1235, %v3151, %v3162
      %v3192 = vsel %vm1235, %v3152, %v3164
      %v3193 = vsel %vm1434, %v3191, %v3174
      %v3194 = vsel %vm1434, %v3192, %v3176
      %v3195 = vsel %vm1437, %v3193, %v3186
      %v3196 = vsel %vm1437, %v3194, %v3188
      %v3197 = vpack.c.bf16 %v3196, %v3195
      %v3198 = vld [vmem:[%s10] sm:$0xf]
      %v3199 = vld [vmem:[%s10 + $0x4] sm:$0xf]
      %v3200 = vld [vmem:[%s10 + $0x8] sm:$0xf]
      %v3201 = vld [vmem:[%s10 + $0xc] sm:$0xf]
      %v3202 = vld [vmem:[%s10 + $0x10] sm:$0xf]
      %v3203 = vld [vmem:[%s10 + $0x14] sm:$0xf]
      %v3204 = vld [vmem:[%s10 + $0x18] sm:$0xf]
      %v3205 = vld [vmem:[%s10 + $0x1c] sm:$0xf]
      %v3206 = vld [vmem:[%s10 + $0x20] sm:$0xf]
      %v3207 = vld [vmem:[%s10 + $0x24] sm:$0xf]
      %v3208 = vld [vmem:[%s10 + $0x28] sm:$0xf]
      %v3209 = vld [vmem:[%s10 + $0x2c] sm:$0xf]
      %v3210 = vld [vmem:[%s10 + $0x30] sm:$0xf]
      %v3211 = vld [vmem:[%s10 + $0x34] sm:$0xf]
      %v3212 = vld [vmem:[%s10 + $0x38] sm:$0xf]
      %v3213 = vld [vmem:[%s10 + $0x3c] sm:$0xf]
      %v3230 = vunpack.c.l.b16 %v3198
      %v3231 = vunpack.c.l.b16 %v3199
      %v3232 = vunpack.c.l.b16 %v3200
      %v3233 = vunpack.c.l.b16 %v3201
      %v3234 = vunpack.c.l.b16 %v3202
      %v3235 = vunpack.c.l.b16 %v3203
      %v3236 = vunpack.c.l.b16 %v3204
      %v3237 = vunpack.c.l.b16 %v3205
      %v3238 = vunpack.c.l.b16 %v3206
      %v3239 = vunpack.c.l.b16 %v3207
      %v3240 = vunpack.c.l.b16 %v3208
      %v3241 = vunpack.c.l.b16 %v3209
      %v3242 = vunpack.c.l.b16 %v3210
      %v3243 = vunpack.c.l.b16 %v3211
      %v3244 = vunpack.c.l.b16 %v3212
      %v3245 = vunpack.c.l.b16 %v3213
      %v3246 = vpack.c.b16 %v3231, %v3230
      %v3247 = vpack.c.b16 %v3233, %v3232
      %v3248 = vpack.c.b16 %v3235, %v3234
      %v3249 = vpack.c.b16 %v3237, %v3236
      %v3250 = vpack.c.b16 %v3239, %v3238
      %v3251 = vpack.c.b16 %v3241, %v3240
      %v3252 = vpack.c.b16 %v3243, %v3242
      %v3253 = vpack.c.b16 %v3245, %v3244
      %3262 = vmatprep.subr.bf16.mxu0 0
      %3263 = vmatpush1.bf16.msra.mxu0 %v3253
      %3264 = vmatprep.subr.bf16.mxu0 0
      %3265 = vmatpush1.bf16.msra.mxu0 %v3252
      %3266 = vmatprep.subr.bf16.mxu0 0
      %3267 = vmatpush1.bf16.msra.mxu0 %v3251
      %3268 = vmatprep.subr.bf16.mxu0 0
      %3269 = vmatpush1.bf16.msra.mxu0 %v3250
      %3270 = vmatprep.subr.bf16.mxu0 0
      %3271 = vmatpush1.bf16.msra.mxu0 %v3249
      %3272 = vmatprep.subr.bf16.mxu0 0
      %3273 = vmatpush1.bf16.msra.mxu0 %v3248
      %3274 = vmatprep.subr.bf16.mxu0 0
      %3275 = vmatpush1.bf16.msra.mxu0 %v3247
      %3276 = vmatprep.subr.bf16.mxu0 0
      %3277 = vmatpush1.bf16.msra.mxu0 %v3246
      %3278 = vmatprep.subr.bf16.mxu0 0
      %3279 = vmatpush2.bf16.msra.mxu0 0
      %3280 = vmatprep.subr.bf16.mxu0 0
      %3281 = vmatpush2.bf16.msra.mxu0 0
      %3282 = vmatprep.subr.bf16.mxu0 0
      %3283 = vmatpush2.bf16.msra.mxu0 0
      %3284 = vmatprep.subr.bf16.mxu0 0
      %3285 = vmatpush2.bf16.msra.mxu0 0
      %3286 = vmatprep.subr.bf16.mxu0 0
      %3287 = vmatpush2.bf16.msra.mxu0 0
      %3288 = vmatprep.subr.bf16.mxu0 0
      %3289 = vmatpush2.bf16.msra.mxu0 0
      %3290 = vmatprep.subr.bf16.mxu0 0
      %3291 = vmatpush2.bf16.msra.mxu0 0
      %3292 = vmatprep.subr.bf16.mxu0 0
      %3293 = vmatpush2.bf16.msra.mxu0 0
      %3294 = vmatprep.mubr.bf16.mxu0 0
      %3295 = vmatmul.mubr.bf16.gmra.mxu0 %v3197
      %v3296 = vpop.f32.mrf.mxu0
      %v3297 = vadd.f32 0.0, %v3296
      %v3298 = vpop.f32.mrf.mxu0
      %v3299 = vpop.f32.mrf.mxu0
      %v3300 = vadd.f32 0.0, %v3299
      %v3301 = vpop.f32.mrf.mxu0
      %3302 = vdwg.mxu0
      %v3303 = vld [vmem:[%s11] sm:$0x1]
      %v3305 = vlaneseq
      %v3306 = vshrl.u32 %v3305, 7
      %v3307 = vsub.s32 0, %v3306
      %v3308 = vrot.slane %v3303, %v3307
      %v3310 = vmul.f32 %v3297, %v3308
      %v3311 = vmul.f32 %v3300, %v3308
      %v3312 = vld [vmem:[%s12] sm:$0x1]
      %v3314 = vlaneseq
      %v3315 = vshrl.u32 %v3314, 7
      %v3316 = vsub.s32 0, %v3315
      %v3317 = vrot.slane %v3312, %v3316
      %v3319 = vadd.f32 %v3310, %v3317
      %v3320 = vadd.f32 %v3311, %v3317
      %v3321 = vmul.f32 %v3319, 0.5
      %v3322 = vmul.f32 %v3320, 0.5
      %v3323 = vmul.f32 %v3319, 0.70710677
      %v3324 = vmul.f32 %v3320, 0.70710677
      %v3325 = vand.u32 2147483647, %v3323
      %v3326 = vand.u32 2147483647, %v3324
      %v3327 = vmul.f32 %v3325, 0.3275911
      %v3328 = vmul.f32 %v3326, 0.3275911
      %v3329 = vadd.f32 %v3327, 1.0
      %v3330 = vadd.f32 %v3328, 1.0
      %v3331 = vrcp.pop %v3329
      %v3332 = vmul.f32 1.0, %v3331
      %v3333 = vrcp.pop %v3330
      %v3334 = vmul.f32 1.0, %v3333
      %v3335 = vmul.f32 %v3332, 1.0614054
      %v3336 = vmul.f32 %v3334, 1.0614054
      %v3337 = vadd.f32 %v3335, -1.4531521
      %v3338 = vadd.f32 %v3336, -1.4531521
      %v3339 = vmul.f32 %v3337, %v3332
      %v3340 = vmul.f32 %v3338, %v3334
      %v3341 = vadd.f32 %v3339, 1.4214138
      %v3342 = vadd.f32 %v3340, 1.4214138
      %v3343 = vmul.f32 %v3341, %v3332
      %v3344 = vmul.f32 %v3342, %v3334
      %v3345 = vadd.f32 %v3343, -0.28449672
      %v3346 = vadd.f32 %v3344, -0.28449672
      %v3347 = vmul.f32 %v3345, %v3332
      %v3348 = vmul.f32 %v3346, %v3334
      %v3349 = vadd.f32 %v3347, 0.2548296
      %v3350 = vadd.f32 %v3348, 0.2548296
      %v3351 = vmul.f32 %v3349, %v3332
      %v3352 = vmul.f32 %v3350, %v3334
      %v3353 = vsub.f32 0.0, %v3325
      %v3354 = vsub.f32 0.0, %v3326
      %v3355 = vmul.f32 %v3353, %v3325
      %v3356 = vmul.f32 %v3354, %v3326
      %v3357 = vmul.f32 %v3355, 1.442695
      %v3358 = vpow.pop %v3357
      %v3359 = vmul.f32 %v3356, 1.442695
      %v3360 = vpow.pop %v3359
      %v3361 = vmul.f32 %v3351, %v3358
      %v3362 = vmul.f32 %v3352, %v3360
      %v3363 = vsub.f32 1.0, %v3361
      %v3364 = vsub.f32 1.0, %v3362
      %vm3365 = vcmp.lt.f32.partialorder %v3323, 0.0
      %vm3366 = vcmp.lt.f32.partialorder %v3324, 0.0
      %v3367 = vsub.f32 0.0, %v3363
      %v3368 = vsub.f32 0.0, %v3364
      %v3369 = vsel %vm3365, %v3367, %v3363
      %v3370 = vsel %vm3366, %v3368, %v3364
      %v3371 = vadd.f32 %v3369, 1.0
      %v3372 = vadd.f32 %v3370, 1.0
      %v3373 = vmul.f32 %v3321, %v3371
      %v3374 = vmul.f32 %v3322, %v3372
      %3375 = vst.msk [vmem:[#allocation7] sm:$0xff] %vm1235, 0.0
      %3376 = vst.msk [vmem:[#allocation7 + $0x8] sm:$0x1] %vm3098, 0.0
      %3377 = vst.msk [vmem:[#allocation7 + $0x10] sm:$0xff] %vm1235, 0.0
      %3378 = vst.msk [vmem:[#allocation7 + $0x18] sm:$0x1] %vm3098, 0.0
      %3379 = vst.msk [vmem:[#allocation7 + $0x20] sm:$0xff] %vm1235, 0.0
      %3380 = vst.msk [vmem:[#allocation7 + $0x28] sm:$0x1] %vm3098, 0.0
      %3381 = vst.msk [vmem:[#allocation7 + $0x30] sm:$0xff] %vm1235, 0.0
      %3382 = vst.msk [vmem:[#allocation7 + $0x38] sm:$0x1] %vm3098, 0.0
      %3383 = vst.msk [vmem:[#allocation7 + $0x40] sm:$0xff] %vm1235, 0.0
      %3384 = vst.msk [vmem:[#allocation7 + $0x48] sm:$0x1] %vm3098, 0.0
      %3385 = vst.msk [vmem:[#allocation7 + $0x50] sm:$0xff] %vm1235, 0.0
      %3386 = vst.msk [vmem:[#allocation7 + $0x58] sm:$0x1] %vm3098, 0.0
      %3387 = vst.msk [vmem:[#allocation7 + $0x60] sm:$0xff] %vm1235, 0.0
      %3388 = vst.msk [vmem:[#allocation7 + $0x68] sm:$0x1] %vm3098, 0.0
      %3389 = vst.msk [vmem:[#allocation7 + $0x70] sm:$0xff] %vm1235, 0.0
      %3390 = vst.msk [vmem:[#allocation7 + $0x78] sm:$0x1] %vm3098, 0.0
      %3391 = vst.msk [vmem:[#allocation7 + $0x80] sm:$0xff] %vm1235, 0.0
      %3392 = vst.msk [vmem:[#allocation7 + $0x88] sm:$0x1] %vm3098, 0.0
      %3393 = vst.msk [vmem:[#allocation7] sm:$0x1] %vm3098, %v3373
      %3395 = vrot.lane.b32.xlu0 %v3373, 96
      %v3396 = vpop.permute.xlu0 %3395
      %3398 = vst.msk [vmem:[#allocation7 + $0x1] sm:$0x1] %vm3098, %v3396
      %3399 = vrot.lane.b32.xlu0 %v3373, 64
      %v3400 = vpop.permute.xlu0 %3399
      %s3402 = scalar_lea.vmem [#allocation7], 16
      %3403 = vst.msk [vmem:[%s3402] sm:$0x1] %vm3098, %v3400
      %3404 = vrot.lane.b32.xlu0 %v3373, 32
      %v3405 = vpop.permute.xlu0 %3404
      %3407 = vst.msk [vmem:[%s3402 + $0x1] sm:$0x1] %vm3098, %v3405
      %3408 = vst.msk [vmem:[#allocation7 + $0x1] sm:$0x2] %vm3114, %v3373
      %3409 = vst.msk [vmem:[#allocation7 + $0x2] sm:$0x2] %vm3114, %v3396
      %3410 = vst.msk [vmem:[%s3402 + $0x1] sm:$0x2] %vm3114, %v3400
      %3411 = vst.msk [vmem:[%s3402 + $0x2] sm:$0x2] %vm3114, %v3405
      %3412 = vst.msk [vmem:[#allocation7 + $0x2] sm:$0x4] %vm3120, %v3373
      %3413 = vst.msk [vmem:[#allocation7 + $0x3] sm:$0x4] %vm3120, %v3396
      %3414 = vst.msk [vmem:[%s3402 + $0x2] sm:$0x4] %vm3120, %v3400
      %3415 = vst.msk [vmem:[%s3402 + $0x3] sm:$0x4] %vm3120, %v3405
      %3416 = vst.msk [vmem:[#allocation7 + $0x3] sm:$0x8] %vm3126, %v3373
      %3417 = vst.msk [vmem:[#allocation7 + $0x4] sm:$0x8] %vm3126, %v3396
      %3418 = vst.msk [vmem:[%s3402 + $0x3] sm:$0x8] %vm3126, %v3400
      %3419 = vst.msk [vmem:[%s3402 + $0x4] sm:$0x8] %vm3126, %v3405
      %s3420 = scalar_lea.vmem [#allocation7], 32
      %vm3421 = vcmask 258052
      %3422 = vst.msk [vmem:[%s3420 - $0x4] sm:$0x10] %vm3421, %v3373
      %3423 = vst.msk [vmem:[%s3420 - $0x3] sm:$0x10] %vm3421, %v3396
      %s3424 = scalar_lea.vmem [#allocation7], 48
      %3425 = vst.msk [vmem:[%s3424 - $0x4] sm:$0x10] %vm3421, %v3400
      %3426 = vst.msk [vmem:[%s3424 - $0x3] sm:$0x10] %vm3421, %v3405
      %vm3427 = vcmask 259077
      %3428 = vst.msk [vmem:[%s3420 - $0x3] sm:$0x20] %vm3427, %v3373
      %3429 = vst.msk [vmem:[%s3420 - $0x2] sm:$0x20] %vm3427, %v3396
      %3430 = vst.msk [vmem:[%s3424 - $0x3] sm:$0x20] %vm3427, %v3400
      %3431 = vst.msk [vmem:[%s3424 - $0x2] sm:$0x20] %vm3427, %v3405
      %vm3432 = vcmask 260102
      %3433 = vst.msk [vmem:[%s3420 - $0x2] sm:$0x40] %vm3432, %v3373
      %3434 = vst.msk [vmem:[%s3420 - $0x1] sm:$0x40] %vm3432, %v3396
      %3435 = vst.msk [vmem:[%s3424 - $0x2] sm:$0x40] %vm3432, %v3400
      %3436 = vst.msk [vmem:[%s3424 - $0x1] sm:$0x40] %vm3432, %v3405
      %vm3437 = vcmask 261127
      %3438 = vst.msk [vmem:[%s3420 - $0x1] sm:$0x80] %vm3437, %v3373
      %3439 = vst.msk [vmem:[%s3420] sm:$0x80] %vm3437, %v3396
      %3440 = vst.msk [vmem:[%s3424 - $0x1] sm:$0x80] %vm3437, %v3400
      %3441 = vst.msk [vmem:[%s3424] sm:$0x80] %vm3437, %v3405
      %s3442 = scalar_lea.vmem [#allocation7], 64
      %3443 = vst.msk [vmem:[%s3442] sm:$0x1] %vm3098, %v3374
      %3445 = vrot.lane.b32.xlu0 %v3374, 96
      %v3446 = vpop.permute.xlu0 %3445
      %3448 = vst.msk [vmem:[%s3442 + $0x1] sm:$0x1] %vm3098, %v3446
      %3449 = vrot.lane.b32.xlu0 %v3374, 64
      %v3450 = vpop.permute.xlu0 %3449
      %s3452 = scalar_lea.vmem [#allocation7], 80
      %3453 = vst.msk [vmem:[%s3452] sm:$0x1] %vm3098, %v3450
      %3454 = vrot.lane.b32.xlu0 %v3374, 32
      %v3455 = vpop.permute.xlu0 %3454
      %3457 = vst.msk [vmem:[%s3452 + $0x1] sm:$0x1] %vm3098, %v3455
      %3458 = vst.msk [vmem:[%s3442 + $0x1] sm:$0x2] %vm3114, %v3374
      %3459 = vst.msk [vmem:[%s3442 + $0x2] sm:$0x2] %vm3114, %v3446
      %3460 = vst.msk [vmem:[%s3452 + $0x1] sm:$0x2] %vm3114, %v3450
      %3461 = vst.msk [vmem:[%s3452 + $0x2] sm:$0x2] %vm3114, %v3455
      %3462 = vst.msk [vmem:[%s3442 + $0x2] sm:$0x4] %vm3120, %v3374
      %3463 = vst.msk [vmem:[%s3442 + $0x3] sm:$0x4] %vm3120, %v3446
      %3464 = vst.msk [vmem:[%s3452 + $0x2] sm:$0x4] %vm3120, %v3450
      %3465 = vst.msk [vmem:[%s3452 + $0x3] sm:$0x4] %vm3120, %v3455
      %3466 = vst.msk [vmem:[%s3442 + $0x3] sm:$0x8] %vm3126, %v3374
      %3467 = vst.msk [vmem:[%s3442 + $0x4] sm:$0x8] %vm3126, %v3446
      %3468 = vst.msk [vmem:[%s3452 + $0x3] sm:$0x8] %vm3126, %v3450
      %3469 = vst.msk [vmem:[%s3452 + $0x4] sm:$0x8] %vm3126, %v3455
      %s3470 = scalar_lea.vmem [#allocation7], 96
      %3471 = vst.msk [vmem:[%s3470 - $0x4] sm:$0x10] %vm3421, %v3374
      %3472 = vst.msk [vmem:[%s3470 - $0x3] sm:$0x10] %vm3421, %v3446
      %s3473 = scalar_lea.vmem [#allocation7], 112
      %3474 = vst.msk [vmem:[%s3473 - $0x4] sm:$0x10] %vm3421, %v3450
      %3475 = vst.msk [vmem:[%s3473 - $0x3] sm:$0x10] %vm3421, %v3455
      %3476 = vst.msk [vmem:[%s3470 - $0x3] sm:$0x20] %vm3427, %v3374
      %3477 = vst.msk [vmem:[%s3470 - $0x2] sm:$0x20] %vm3427, %v3446
      %3478 = vst.msk [vmem:[%s3473 - $0x3] sm:$0x20] %vm3427, %v3450
      %3479 = vst.msk [vmem:[%s3473 - $0x2] sm:$0x20] %vm3427, %v3455
      %3480 = vst.msk [vmem:[%s3470 - $0x2] sm:$0x40] %vm3432, %v3374
      %3481 = vst.msk [vmem:[%s3470 - $0x1] sm:$0x40] %vm3432, %v3446
      %3482 = vst.msk [vmem:[%s3473 - $0x2] sm:$0x40] %vm3432, %v3450
      %3483 = vst.msk [vmem:[%s3473 - $0x1] sm:$0x40] %vm3432, %v3455
      %3484 = vst.msk [vmem:[%s3470 - $0x1] sm:$0x80] %vm3437, %v3374
      %3485 = vst.msk [vmem:[%s3470] sm:$0x80] %vm3437, %v3446
      %3486 = vst.msk [vmem:[%s3473 - $0x1] sm:$0x80] %vm3437, %v3450
      %3487 = vst.msk [vmem:[%s3473] sm:$0x80] %vm3437, %v3455
      %v3488 = vld [vmem:[#allocation7] sm:$0xff]
      %v3489 = vld [vmem:[#allocation7 + $0x10] sm:$0xff]
      %v3490 = vld [vmem:[#allocation7 + $0x20] sm:$0xff]
      %v3491 = vld [vmem:[#allocation7 + $0x30] sm:$0xff]
      %v3492 = vld [vmem:[#allocation7 + $0x40] sm:$0xff]
      %v3493 = vld [vmem:[#allocation7 + $0x50] sm:$0xff]
      %v3494 = vld [vmem:[#allocation7 + $0x60] sm:$0xff]
      %v3495 = vld [vmem:[#allocation7 + $0x70] sm:$0xff]
      %v3496 = vld [vmem:[#allocation7 + $0x1] sm:$0xff]
      %v3497 = vld [vmem:[#allocation7 + $0x11] sm:$0xff]
      %v3498 = vld [vmem:[#allocation7 + $0x21] sm:$0xff]
      %v3499 = vld [vmem:[#allocation7 + $0x31] sm:$0xff]
      %v3500 = vld [vmem:[#allocation7 + $0x41] sm:$0xff]
      %v3501 = vld [vmem:[#allocation7 + $0x51] sm:$0xff]
      %v3502 = vld [vmem:[#allocation7 + $0x61] sm:$0xff]
      %v3503 = vld [vmem:[#allocation7 + $0x71] sm:$0xff]
      %v3504 = vld [vmem:[%s3402] sm:$0xff]
      %v3505 = vld [vmem:[%s3402 + $0x10] sm:$0xff]
      %v3506 = vld [vmem:[%s3402 + $0x20] sm:$0xff]
      %v3507 = vld [vmem:[%s3402 + $0x30] sm:$0xff]
      %v3508 = vld [vmem:[%s3402 + $0x40] sm:$0xff]
      %v3509 = vld [vmem:[%s3402 + $0x50] sm:$0xff]
      %v3510 = vld [vmem:[%s3402 + $0x60] sm:$0xff]
      %v3511 = vld [vmem:[%s3402 + $0x70] sm:$0xff]
      %v3512 = vld [vmem:[%s3402 + $0x1] sm:$0xff]
      %v3513 = vld [vmem:[%s3402 + $0x11] sm:$0xff]
      %v3514 = vld [vmem:[%s3402 + $0x21] sm:$0xff]
      %v3515 = vld [vmem:[%s3402 + $0x31] sm:$0xff]
      %v3516 = vld [vmem:[%s3402 + $0x41] sm:$0xff]
      %v3517 = vld [vmem:[%s3402 + $0x51] sm:$0xff]
      %v3518 = vld [vmem:[%s3402 + $0x61] sm:$0xff]
      %v3519 = vld [vmem:[%s3402 + $0x71] sm:$0xff]
      %3528 = vrot.lane.b32.xlu0 %v3496, 32
      %v3529 = vpop.permute.xlu0 %3528
      %3530 = vrot.lane.b32.xlu0 %v3497, 32
      %v3531 = vpop.permute.xlu0 %3530
      %3532 = vrot.lane.b32.xlu0 %v3498, 32
      %v3533 = vpop.permute.xlu0 %3532
      %3534 = vrot.lane.b32.xlu0 %v3499, 32
      %v3535 = vpop.permute.xlu0 %3534
      %3536 = vrot.lane.b32.xlu0 %v3500, 32
      %v3537 = vpop.permute.xlu0 %3536
      %3538 = vrot.lane.b32.xlu0 %v3501, 32
      %v3539 = vpop.permute.xlu0 %3538
      %3540 = vrot.lane.b32.xlu0 %v3502, 32
      %v3541 = vpop.permute.xlu0 %3540
      %3542 = vrot.lane.b32.xlu0 %v3503, 32
      %v3543 = vpop.permute.xlu0 %3542
      %3560 = vrot.lane.b32.xlu0 %v3504, 64
      %v3561 = vpop.permute.xlu0 %3560
      %3562 = vrot.lane.b32.xlu0 %v3505, 64
      %v3563 = vpop.permute.xlu0 %3562
      %3564 = vrot.lane.b32.xlu0 %v3506, 64
      %v3565 = vpop.permute.xlu0 %3564
      %3566 = vrot.lane.b32.xlu0 %v3507, 64
      %v3567 = vpop.permute.xlu0 %3566
      %3568 = vrot.lane.b32.xlu0 %v3508, 64
      %v3569 = vpop.permute.xlu0 %3568
      %3570 = vrot.lane.b32.xlu0 %v3509, 64
      %v3571 = vpop.permute.xlu0 %3570
      %3572 = vrot.lane.b32.xlu0 %v3510, 64
      %v3573 = vpop.permute.xlu0 %3572
      %3574 = vrot.lane.b32.xlu0 %v3511, 64
      %v3575 = vpop.permute.xlu0 %3574
      %3592 = vrot.lane.b32.xlu0 %v3512, 96
      %v3593 = vpop.permute.xlu0 %3592
      %3594 = vrot.lane.b32.xlu0 %v3513, 96
      %v3595 = vpop.permute.xlu0 %3594
      %3596 = vrot.lane.b32.xlu0 %v3514, 96
      %v3597 = vpop.permute.xlu0 %3596
      %3598 = vrot.lane.b32.xlu0 %v3515, 96
      %v3599 = vpop.permute.xlu0 %3598
      %3600 = vrot.lane.b32.xlu0 %v3516, 96
      %v3601 = vpop.permute.xlu0 %3600
      %3602 = vrot.lane.b32.xlu0 %v3517, 96
      %v3603 = vpop.permute.xlu0 %3602
      %3604 = vrot.lane.b32.xlu0 %v3518, 96
      %v3605 = vpop.permute.xlu0 %3604
      %3606 = vrot.lane.b32.xlu0 %v3519, 96
      %v3607 = vpop.permute.xlu0 %3606
      %v3616 = vsel %vm1235, %v3488, %v3529
      %v3617 = vsel %vm1235, %v3489, %v3531
      %v3618 = vsel %vm1235, %v3490, %v3533
      %v3619 = vsel %vm1235, %v3491, %v3535
      %v3620 = vsel %vm1235, %v3492, %v3537
      %v3621 = vsel %vm1235, %v3493, %v3539
      %v3622 = vsel %vm1235, %v3494, %v3541
      %v3623 = vsel %vm1235, %v3495, %v3543
      %v3624 = vsel %vm1434, %v3616, %v3561
      %v3625 = vsel %vm1434, %v3617, %v3563
      %v3626 = vsel %vm1434, %v3618, %v3565
      %v3627 = vsel %vm1434, %v3619, %v3567
      %v3628 = vsel %vm1434, %v3620, %v3569
      %v3629 = vsel %vm1434, %v3621, %v3571
      %v3630 = vsel %vm1434, %v3622, %v3573
      %v3631 = vsel %vm1434, %v3623, %v3575
      %v3632 = vsel %vm1437, %v3624, %v3593
      %v3633 = vsel %vm1437, %v3625, %v3595
      %v3634 = vsel %vm1437, %v3626, %v3597
      %v3635 = vsel %vm1437, %v3627, %v3599
      %v3636 = vsel %vm1437, %v3628, %v3601
      %v3637 = vsel %vm1437, %v3629, %v3603
      %v3638 = vsel %vm1437, %v3630, %v3605
      %v3639 = vsel %vm1437, %v3631, %v3607
      %v3640 = vpack.c.bf16 %v3633, %v3632
      %v3641 = vpack.c.bf16 %v3635, %v3634
      %v3642 = vpack.c.bf16 %v3637, %v3636
      %v3643 = vpack.c.bf16 %v3639, %v3638
      %v3644 = vld [vmem:[%s13] sm:$0xf]
      %v3645 = vld [vmem:[%s13 + $0x4] sm:$0xf]
      %v3646 = vld [vmem:[%s13 + $0x8] sm:$0xf]
      %v3647 = vld [vmem:[%s13 + $0xc] sm:$0xf]
      %v3648 = vld [vmem:[%s13 + $0x10] sm:$0xf]
      %v3649 = vld [vmem:[%s13 + $0x14] sm:$0xf]
      %v3650 = vld [vmem:[%s13 + $0x18] sm:$0xf]
      %v3651 = vld [vmem:[%s13 + $0x1c] sm:$0xf]
      %v3652 = vld [vmem:[%s13 + $0x20] sm:$0xf]
      %v3653 = vld [vmem:[%s13 + $0x24] sm:$0xf]
      %v3654 = vld [vmem:[%s13 + $0x28] sm:$0xf]
      %v3655 = vld [vmem:[%s13 + $0x2c] sm:$0xf]
      %v3656 = vld [vmem:[%s13 + $0x30] sm:$0xf]
      %v3657 = vld [vmem:[%s13 + $0x34] sm:$0xf]
      %v3658 = vld [vmem:[%s13 + $0x38] sm:$0xf]
      %v3659 = vld [vmem:[%s13 + $0x3c] sm:$0xf]
      %v3676 = vunpack.c.l.b16 %v3644
      %v3677 = vunpack.c.l.b16 %v3645
      %v3678 = vunpack.c.l.b16 %v3646
      %v3679 = vunpack.c.l.b16 %v3647
      %v3680 = vunpack.c.l.b16 %v3648
      %v3681 = vunpack.c.l.b16 %v3649
      %v3682 = vunpack.c.l.b16 %v3650
      %v3683 = vunpack.c.l.b16 %v3651
      %v3684 = vunpack.c.l.b16 %v3652
      %v3685 = vunpack.c.l.b16 %v3653
      %v3686 = vunpack.c.l.b16 %v3654
      %v3687 = vunpack.c.l.b16 %v3655
      %v3688 = vunpack.c.l.b16 %v3656
      %v3689 = vunpack.c.l.b16 %v3657
      %v3690 = vunpack.c.l.b16 %v3658
      %v3691 = vunpack.c.l.b16 %v3659
      %v3692 = vpack.c.b16 %v3677, %v3676
      %v3693 = vpack.c.b16 %v3679, %v3678
      %v3694 = vpack.c.b16 %v3681, %v3680
      %v3695 = vpack.c.b16 %v3683, %v3682
      %v3696 = vpack.c.b16 %v3685, %v3684
      %v3697 = vpack.c.b16 %v3687, %v3686
      %v3698 = vpack.c.b16 %v3689, %v3688
      %v3699 = vpack.c.b16 %v3691, %v3690
      %3708 = vmatprep.subr.bf16.mxu0 0
      %3709 = vmatpush1.bf16.msra.mxu0 %v3699
      %3710 = vmatprep.subr.bf16.mxu0 0
      %3711 = vmatpush1.bf16.msra.mxu0 %v3698
      %3712 = vmatprep.subr.bf16.mxu0 0
      %3713 = vmatpush1.bf16.msra.mxu0 %v3697
      %3714 = vmatprep.subr.bf16.mxu0 0
      %3715 = vmatpush1.bf16.msra.mxu0 %v3696
      %3716 = vmatprep.subr.bf16.mxu0 0
      %3717 = vmatpush1.bf16.msra.mxu0 %v3695
      %3718 = vmatprep.subr.bf16.mxu0 0
      %3719 = vmatpush1.bf16.msra.mxu0 %v3694
      %3720 = vmatprep.subr.bf16.mxu0 0
      %3721 = vmatpush1.bf16.msra.mxu0 %v3693
      %3722 = vmatprep.subr.bf16.mxu0 0
      %3723 = vmatpush1.bf16.msra.mxu0 %v3692
      %3724 = vmatprep.subr.bf16.mxu0 0
      %3725 = vmatpush2.bf16.msra.mxu0 0
      %3726 = vmatprep.subr.bf16.mxu0 0
      %3727 = vmatpush2.bf16.msra.mxu0 0
      %3728 = vmatprep.subr.bf16.mxu0 0
      %3729 = vmatpush2.bf16.msra.mxu0 0
      %3730 = vmatprep.subr.bf16.mxu0 0
      %3731 = vmatpush2.bf16.msra.mxu0 0
      %3732 = vmatprep.subr.bf16.mxu0 0
      %3733 = vmatpush2.bf16.msra.mxu0 0
      %3734 = vmatprep.subr.bf16.mxu0 0
      %3735 = vmatpush2.bf16.msra.mxu0 0
      %3736 = vmatprep.subr.bf16.mxu0 0
      %3737 = vmatpush2.bf16.msra.mxu0 0
      %3738 = vmatprep.subr.bf16.mxu0 0
      %3739 = vmatpush2.bf16.msra.mxu0 0
      %3740 = vmatprep.mubr.bf16.mxu0 0
      %3741 = vmatmul.mubr.bf16.gmra.mxu0 %v3640
      %v3742 = vpop.f32.mrf.mxu0
      %v3743 = vadd.f32 0.0, %v3742
      %v3744 = vpop.f32.mrf.mxu0
      %v3745 = vpop.f32.mrf.mxu0
      %v3746 = vadd.f32 0.0, %v3745
      %v3747 = vpop.f32.mrf.mxu0
      %3748 = vmatprep.mubr.bf16.mxu0 0
      %3749 = vmatmul.mubr.bf16.gmra.mxu0 %v3641
      %v3750 = vpop.f32.mrf.mxu0
      %v3751 = vadd.f32 0.0, %v3750
      %v3752 = vpop.f32.mrf.mxu0
      %v3753 = vpop.f32.mrf.mxu0
      %v3754 = vadd.f32 0.0, %v3753
      %v3755 = vpop.f32.mrf.mxu0
      %3756 = vmatprep.mubr.bf16.mxu0 0
      %3757 = vmatmul.mubr.bf16.gmra.mxu0 %v3642
      %v3758 = vpop.f32.mrf.mxu0
      %v3759 = vadd.f32 0.0, %v3758
      %v3760 = vpop.f32.mrf.mxu0
      %v3761 = vpop.f32.mrf.mxu0
      %v3762 = vadd.f32 0.0, %v3761
      %v3763 = vpop.f32.mrf.mxu0
      %3764 = vmatprep.mubr.bf16.mxu0 0
      %3765 = vmatmul.mubr.bf16.gmra.mxu0 %v3643
      %v3766 = vpop.f32.mrf.mxu0
      %v3767 = vadd.f32 0.0, %v3766
      %v3768 = vpop.f32.mrf.mxu0
      %v3769 = vpop.f32.mrf.mxu0
      %v3770 = vadd.f32 0.0, %v3769
      %v3771 = vpop.f32.mrf.mxu0
      %3772 = vdwg.mxu0
      %v3773 = vld [vmem:[%s14] sm:$0x1]
      %v3775 = vlaneseq
      %v3776 = vshrl.u32 %v3775, 7
      %v3777 = vsub.s32 0, %v3776
      %v3778 = vrot.slane %v3773, %v3777
      %v3780 = vmul.f32 %v3743, %v3778
      %v3781 = vmul.f32 %v3746, %v3778
      %v3782 = vmul.f32 %v3751, %v3778
      %v3783 = vmul.f32 %v3754, %v3778
      %v3784 = vmul.f32 %v3759, %v3778
      %v3785 = vmul.f32 %v3762, %v3778
      %v3786 = vmul.f32 %v3767, %v3778
      %v3787 = vmul.f32 %v3770, %v3778
      %v3788 = vld [vmem:[%s15] sm:$0x1]
      %v3790 = vlaneseq
      %v3791 = vshrl.u32 %v3790, 7
      %v3792 = vsub.s32 0, %v3791
      %v3793 = vrot.slane %v3788, %v3792
      %v3795 = vadd.f32 %v3780, %v3793
      %v3796 = vadd.f32 %v3781, %v3793
      %v3797 = vadd.f32 %v3782, %v3793
      %v3798 = vadd.f32 %v3783, %v3793
      %v3799 = vadd.f32 %v3784, %v3793
      %v3800 = vadd.f32 %v3785, %v3793
      %v3801 = vadd.f32 %v3786, %v3793
      %v3802 = vadd.f32 %v3787, %v3793
      %v3803 = vmul.f32 %v3795, 0.5
      %v3804 = vmul.f32 %v3796, 0.5
      %v3805 = vmul.f32 %v3797, 0.5
      %v3806 = vmul.f32 %v3798, 0.5
      %v3807 = vmul.f32 %v3799, 0.5
      %v3808 = vmul.f32 %v3800, 0.5
      %v3809 = vmul.f32 %v3801, 0.5
      %v3810 = vmul.f32 %v3802, 0.5
      %v3811 = vmul.f32 %v3795, 0.70710677
      %v3812 = vmul.f32 %v3796, 0.70710677
      %v3813 = vmul.f32 %v3797, 0.70710677
      %v3814 = vmul.f32 %v3798, 0.70710677
      %v3815 = vmul.f32 %v3799, 0.70710677
      %v3816 = vmul.f32 %v3800, 0.70710677
      %v3817 = vmul.f32 %v3801, 0.70710677
      %v3818 = vmul.f32 %v3802, 0.70710677
      %v3819 = vand.u32 2147483647, %v3811
      %v3820 = vand.u32 2147483647, %v3812
      %v3821 = vand.u32 2147483647, %v3813
      %v3822 = vand.u32 2147483647, %v3814
      %v3823 = vand.u32 2147483647, %v3815
      %v3824 = vand.u32 2147483647, %v3816
      %v3825 = vand.u32 2147483647, %v3817
      %v3826 = vand.u32 2147483647, %v3818
      %v3827 = vmul.f32 %v3819, 0.3275911
      %v3828 = vmul.f32 %v3820, 0.3275911
      %v3829 = vmul.f32 %v3821, 0.3275911
      %v3830 = vmul.f32 %v3822, 0.3275911
      %v3831 = vmul.f32 %v3823, 0.3275911
      %v3832 = vmul.f32 %v3824, 0.3275911
      %v3833 = vmul.f32 %v3825, 0.3275911
      %v3834 = vmul.f32 %v3826, 0.3275911
      %v3835 = vadd.f32 %v3827, 1.0
      %v3836 = vadd.f32 %v3828, 1.0
      %v3837 = vadd.f32 %v3829, 1.0
      %v3838 = vadd.f32 %v3830, 1.0
      %v3839 = vadd.f32 %v3831, 1.0
      %v3840 = vadd.f32 %v3832, 1.0
      %v3841 = vadd.f32 %v3833, 1.0
      %v3842 = vadd.f32 %v3834, 1.0
      %v3843 = vrcp.pop %v3835
      %v3844 = vmul.f32 1.0, %v3843
      %v3845 = vrcp.pop %v3836
      %v3846 = vmul.f32 1.0, %v3845
      %v3847 = vrcp.pop %v3837
      %v3848 = vmul.f32 1.0, %v3847
      %v3849 = vrcp.pop %v3838
      %v3850 = vmul.f32 1.0, %v3849
      %v3851 = vrcp.pop %v3839
      %v3852 = vmul.f32 1.0, %v3851
      %v3853 = vrcp.pop %v3840
      %v3854 = vmul.f32 1.0, %v3853
      %v3855 = vrcp.pop %v3841
      %v3856 = vmul.f32 1.0, %v3855
      %v3857 = vrcp.pop %v3842
      %v3858 = vmul.f32 1.0, %v3857
      %v3859 = vmul.f32 %v3844, 1.0614054
      %v3860 = vmul.f32 %v3846, 1.0614054
      %v3861 = vmul.f32 %v3848, 1.0614054
      %v3862 = vmul.f32 %v3850, 1.0614054
      %v3863 = vmul.f32 %v3852, 1.0614054
      %v3864 = vmul.f32 %v3854, 1.0614054
      %v3865 = vmul.f32 %v3856, 1.0614054
      %v3866 = vmul.f32 %v3858, 1.0614054
      %v3867 = vadd.f32 %v3859, -1.4531521
      %v3868 = vadd.f32 %v3860, -1.4531521
      %v3869 = vadd.f32 %v3861, -1.4531521
      %v3870 = vadd.f32 %v3862, -1.4531521
      %v3871 = vadd.f32 %v3863, -1.4531521
      %v3872 = vadd.f32 %v3864, -1.4531521
      %v3873 = vadd.f32 %v3865, -1.4531521
      %v3874 = vadd.f32 %v3866, -1.4531521
      %v3875 = vmul.f32 %v3867, %v3844
      %v3876 = vmul.f32 %v3868, %v3846
      %v3877 = vmul.f32 %v3869, %v3848
      %v3878 = vmul.f32 %v3870, %v3850
      %v3879 = vmul.f32 %v3871, %v3852
      %v3880 = vmul.f32 %v3872, %v3854
      %v3881 = vmul.f32 %v3873, %v3856
      %v3882 = vmul.f32 %v3874, %v3858
      %v3883 = vadd.f32 %v3875, 1.4214138
      %v3884 = vadd.f32 %v3876, 1.4214138
      %v3885 = vadd.f32 %v3877, 1.4214138
      %v3886 = vadd.f32 %v3878, 1.4214138
      %v3887 = vadd.f32 %v3879, 1.4214138
      %v3888 = vadd.f32 %v3880, 1.4214138
      %v3889 = vadd.f32 %v3881, 1.4214138
      %v3890 = vadd.f32 %v3882, 1.4214138
      %v3891 = vmul.f32 %v3883, %v3844
      %v3892 = vmul.f32 %v3884, %v3846
      %v3893 = vmul.f32 %v3885, %v3848
      %v3894 = vmul.f32 %v3886, %v3850
      %v3895 = vmul.f32 %v3887, %v3852
      %v3896 = vmul.f32 %v3888, %v3854
      %v3897 = vmul.f32 %v3889, %v3856
      %v3898 = vmul.f32 %v3890, %v3858
      %v3899 = vadd.f32 %v3891, -0.28449672
      %v3900 = vadd.f32 %v3892, -0.28449672
      %v3901 = vadd.f32 %v3893, -0.28449672
      %v3902 = vadd.f32 %v3894, -0.28449672
      %v3903 = vadd.f32 %v3895, -0.28449672
      %v3904 = vadd.f32 %v3896, -0.28449672
      %v3905 = vadd.f32 %v3897, -0.28449672
      %v3906 = vadd.f32 %v3898, -0.28449672
      %v3907 = vmul.f32 %v3899, %v3844
      %v3908 = vmul.f32 %v3900, %v3846
      %v3909 = vmul.f32 %v3901, %v3848
      %v3910 = vmul.f32 %v3902, %v3850
      %v3911 = vmul.f32 %v3903, %v3852
      %v3912 = vmul.f32 %v3904, %v3854
      %v3913 = vmul.f32 %v3905, %v3856
      %v3914 = vmul.f32 %v3906, %v3858
      %v3915 = vadd.f32 %v3907, 0.2548296
      %v3916 = vadd.f32 %v3908, 0.2548296
      %v3917 = vadd.f32 %v3909, 0.2548296
      %v3918 = vadd.f32 %v3910, 0.2548296
      %v3919 = vadd.f32 %v3911, 0.2548296
      %v3920 = vadd.f32 %v3912, 0.2548296
      %v3921 = vadd.f32 %v3913, 0.2548296
      %v3922 = vadd.f32 %v3914, 0.2548296
      %v3923 = vmul.f32 %v3915, %v3844
      %v3924 = vmul.f32 %v3916, %v3846
      %v3925 = vmul.f32 %v3917, %v3848
      %v3926 = vmul.f32 %v3918, %v3850
      %v3927 = vmul.f32 %v3919, %v3852
      %v3928 = vmul.f32 %v3920, %v3854
      %v3929 = vmul.f32 %v3921, %v3856
      %v3930 = vmul.f32 %v3922, %v3858
      %v3931 = vsub.f32 0.0, %v3819
      %v3932 = vsub.f32 0.0, %v3820
      %v3933 = vsub.f32 0.0, %v3821
      %v3934 = vsub.f32 0.0, %v3822
      %v3935 = vsub.f32 0.0, %v3823
      %v3936 = vsub.f32 0.0, %v3824
      %v3937 = vsub.f32 0.0, %v3825
      %v3938 = vsub.f32 0.0, %v3826
      %v3939 = vmul.f32 %v3931, %v3819
      %v3940 = vmul.f32 %v3932, %v3820
      %v3941 = vmul.f32 %v3933, %v3821
      %v3942 = vmul.f32 %v3934, %v3822
      %v3943 = vmul.f32 %v3935, %v3823
      %v3944 = vmul.f32 %v3936, %v3824
      %v3945 = vmul.f32 %v3937, %v3825
      %v3946 = vmul.f32 %v3938, %v3826
      %v3947 = vmul.f32 %v3939, 1.442695
      %v3948 = vpow.pop %v3947
      %v3949 = vmul.f32 %v3940, 1.442695
      %v3950 = vpow.pop %v3949
      %v3951 = vmul.f32 %v3941, 1.442695
      %v3952 = vpow.pop %v3951
      %v3953 = vmul.f32 %v3942, 1.442695
      %v3954 = vpow.pop %v3953
      %v3955 = vmul.f32 %v3943, 1.442695
      %v3956 = vpow.pop %v3955
      %v3957 = vmul.f32 %v3944, 1.442695
      %v3958 = vpow.pop %v3957
      %v3959 = vmul.f32 %v3945, 1.442695
      %v3960 = vpow.pop %v3959
      %v3961 = vmul.f32 %v3946, 1.442695
      %v3962 = vpow.pop %v3961
      %v3963 = vmul.f32 %v3923, %v3948
      %v3964 = vmul.f32 %v3924, %v3950
      %v3965 = vmul.f32 %v3925, %v3952
      %v3966 = vmul.f32 %v3926, %v3954
      %v3967 = vmul.f32 %v3927, %v3956
      %v3968 = vmul.f32 %v3928, %v3958
      %v3969 = vmul.f32 %v3929, %v3960
      %v3970 = vmul.f32 %v3930, %v3962
      %v3971 = vsub.f32 1.0, %v3963
      %v3972 = vsub.f32 1.0, %v3964
      %v3973 = vsub.f32 1.0, %v3965
      %v3974 = vsub.f32 1.0, %v3966
      %v3975 = vsub.f32 1.0, %v3967
      %v3976 = vsub.f32 1.0, %v3968
      %v3977 = vsub.f32 1.0, %v3969
      %v3978 = vsub.f32 1.0, %v3970
      %vm3979 = vcmp.lt.f32.partialorder %v3811, 0.0
      %vm3980 = vcmp.lt.f32.partialorder %v3812, 0.0
      %vm3981 = vcmp.lt.f32.partialorder %v3813, 0.0
      %vm3982 = vcmp.lt.f32.partialorder %v3814, 0.0
      %vm3983 = vcmp.lt.f32.partialorder %v3815, 0.0
      %vm3984 = vcmp.lt.f32.partialorder %v3816, 0.0
      %vm3985 = vcmp.lt.f32.partialorder %v3817, 0.0
      %vm3986 = vcmp.lt.f32.partialorder %v3818, 0.0
      %v3987 = vsub.f32 0.0, %v3971
      %v3988 = vsub.f32 0.0, %v3972
      %v3989 = vsub.f32 0.0, %v3973
      %v3990 = vsub.f32 0.0, %v3974
      %v3991 = vsub.f32 0.0, %v3975
      %v3992 = vsub.f32 0.0, %v3976
      %v3993 = vsub.f32 0.0, %v3977
      %v3994 = vsub.f32 0.0, %v3978
      %v3995 = vsel %vm3979, %v3987, %v3971
      %v3996 = vsel %vm3980, %v3988, %v3972
      %v3997 = vsel %vm3981, %v3989, %v3973
      %v3998 = vsel %vm3982, %v3990, %v3974
      %v3999 = vsel %vm3983, %v3991, %v3975
      %v4000 = vsel %vm3984, %v3992, %v3976
      %v4001 = vsel %vm3985, %v3993, %v3977
      %v4002 = vsel %vm3986, %v3994, %v3978
      %v4003 = vadd.f32 %v3995, 1.0
      %v4004 = vadd.f32 %v3996, 1.0
      %v4005 = vadd.f32 %v3997, 1.0
      %v4006 = vadd.f32 %v3998, 1.0
      %v4007 = vadd.f32 %v3999, 1.0
      %v4008 = vadd.f32 %v4000, 1.0
      %v4009 = vadd.f32 %v4001, 1.0
      %v4010 = vadd.f32 %v4002, 1.0
      %v4011 = vmul.f32 %v3803, %v4003
      %v4012 = vmul.f32 %v3804, %v4004
      %v4013 = vmul.f32 %v3805, %v4005
      %v4014 = vmul.f32 %v3806, %v4006
      %v4015 = vmul.f32 %v3807, %v4007
      %v4016 = vmul.f32 %v3808, %v4008
      %v4017 = vmul.f32 %v3809, %v4009
      %v4018 = vmul.f32 %v3810, %v4010
      %v4019 = vpack.c.bf16 %v4012, %v4011
      %v4020 = vpack.c.bf16 %v4014, %v4013
      %v4021 = vpack.c.bf16 %v4016, %v4015
      %v4022 = vpack.c.bf16 %v4018, %v4017
      %v4023 = vld [vmem:[%s16] sm:$0xf]
      %v4024 = vld [vmem:[%s16 + $0x4] sm:$0xf]
      %v4025 = vld [vmem:[%s16 + $0x8] sm:$0xf]
      %v4026 = vld [vmem:[%s16 + $0xc] sm:$0xf]
      %v4027 = vld [vmem:[%s16 + $0x10] sm:$0xf]
      %v4028 = vld [vmem:[%s16 + $0x14] sm:$0xf]
      %v4029 = vld [vmem:[%s16 + $0x18] sm:$0xf]
      %v4030 = vld [vmem:[%s16 + $0x1c] sm:$0xf]
      %v4031 = vld [vmem:[%s16 + $0x20] sm:$0xf]
      %v4032 = vld [vmem:[%s16 + $0x24] sm:$0xf]
      %v4033 = vld [vmem:[%s16 + $0x28] sm:$0xf]
      %v4034 = vld [vmem:[%s16 + $0x2c] sm:$0xf]
      %v4035 = vld [vmem:[%s16 + $0x30] sm:$0xf]
      %v4036 = vld [vmem:[%s16 + $0x34] sm:$0xf]
      %v4037 = vld [vmem:[%s16 + $0x38] sm:$0xf]
      %v4038 = vld [vmem:[%s16 + $0x3c] sm:$0xf]
      %v4039 = vld [vmem:[%s17] sm:$0x1]
      %v4041 = vlaneseq
      %v4042 = vshrl.u32 %v4041, 7
      %v4043 = vsub.s32 0, %v4042
      %v4044 = vrot.slane %v4039, %v4043
      %v4062 = vunpack.c.l.b16 %v4023
      %v4063 = vunpack.c.l.b16 %v4024
      %v4064 = vunpack.c.l.b16 %v4025
      %v4065 = vunpack.c.l.b16 %v4026
      %v4066 = vunpack.c.l.b16 %v4027
      %v4067 = vunpack.c.l.b16 %v4028
      %v4068 = vunpack.c.l.b16 %v4029
      %v4069 = vunpack.c.l.b16 %v4030
      %v4070 = vunpack.c.l.b16 %v4031
      %v4071 = vunpack.c.l.b16 %v4032
      %v4072 = vunpack.c.l.b16 %v4033
      %v4073 = vunpack.c.l.b16 %v4034
      %v4074 = vunpack.c.l.b16 %v4035
      %v4075 = vunpack.c.l.b16 %v4036
      %v4076 = vunpack.c.l.b16 %v4037
      %v4077 = vunpack.c.l.b16 %v4038
      %v4078 = vpack.c.b16 %v4063, %v4062
      %v4079 = vpack.c.b16 %v4065, %v4064
      %v4080 = vpack.c.b16 %v4067, %v4066
      %v4081 = vpack.c.b16 %v4069, %v4068
      %v4082 = vpack.c.b16 %v4071, %v4070
      %v4083 = vpack.c.b16 %v4073, %v4072
      %v4084 = vpack.c.b16 %v4075, %v4074
      %v4085 = vpack.c.b16 %v4077, %v4076
      %4094 = vmatprep.subr.bf16.mxu0 0
      %4095 = vmatpush1.bf16.msra.mxu0 %v4085
      %4096 = vmatprep.subr.bf16.mxu0 0
      %4097 = vmatpush1.bf16.msra.mxu0 %v4084
      %4098 = vmatprep.subr.bf16.mxu0 0
      %4099 = vmatpush1.bf16.msra.mxu0 %v4083
      %4100 = vmatprep.subr.bf16.mxu0 0
      %4101 = vmatpush1.bf16.msra.mxu0 %v4082
      %4102 = vmatprep.subr.bf16.mxu0 0
      %4103 = vmatpush1.bf16.msra.mxu0 %v4081
      %4104 = vmatprep.subr.bf16.mxu0 0
      %4105 = vmatpush1.bf16.msra.mxu0 %v4080
      %4106 = vmatprep.subr.bf16.mxu0 0
      %4107 = vmatpush1.bf16.msra.mxu0 %v4079
      %4108 = vmatprep.subr.bf16.mxu0 0
      %4109 = vmatpush1.bf16.msra.mxu0 %v4078
      %4110 = vmatprep.subr.bf16.mxu0 0
      %4111 = vmatpush2.bf16.msra.mxu0 0
      %4112 = vmatprep.subr.bf16.mxu0 0
      %4113 = vmatpush2.bf16.msra.mxu0 0
      %4114 = vmatprep.subr.bf16.mxu0 0
      %4115 = vmatpush2.bf16.msra.mxu0 0
      %4116 = vmatprep.subr.bf16.mxu0 0
      %4117 = vmatpush2.bf16.msra.mxu0 0
      %4118 = vmatprep.subr.bf16.mxu0 0
      %4119 = vmatpush2.bf16.msra.mxu0 0
      %4120 = vmatprep.subr.bf16.mxu0 0
      %4121 = vmatpush2.bf16.msra.mxu0 0
      %4122 = vmatprep.subr.bf16.mxu0 0
      %4123 = vmatpush2.bf16.msra.mxu0 0
      %4124 = vmatprep.subr.bf16.mxu0 0
      %4125 = vmatpush2.bf16.msra.mxu0 0
      %4126 = vmatprep.mubr.bf16.mxu0 0
      %4127 = vmatmul.mubr.bf16.gmra.mxu0 %v4019
      %v4128 = vpop.f32.mrf.mxu0
      %v4129 = vadd.f32 %v4044, %v4128
      %v4130 = vpop.f32.mrf.mxu0
      %v4131 = vpop.f32.mrf.mxu0
      %v4132 = vadd.f32 %v4044, %v4131
      %v4133 = vpop.f32.mrf.mxu0
      %4134 = vmatprep.mubr.bf16.mxu0 0
      %4135 = vmatmul.mubr.bf16.gmra.mxu0 %v4020
      %v4136 = vpop.f32.mrf.mxu0
      %v4137 = vadd.f32 %v4044, %v4136
      %v4138 = vpop.f32.mrf.mxu0
      %v4139 = vpop.f32.mrf.mxu0
      %v4140 = vadd.f32 %v4044, %v4139
      %v4141 = vpop.f32.mrf.mxu0
      %4142 = vmatprep.mubr.bf16.mxu0 0
      %4143 = vmatmul.mubr.bf16.gmra.mxu0 %v4021
      %v4144 = vpop.f32.mrf.mxu0
      %v4145 = vadd.f32 %v4044, %v4144
      %v4146 = vpop.f32.mrf.mxu0
      %v4147 = vpop.f32.mrf.mxu0
      %v4148 = vadd.f32 %v4044, %v4147
      %v4149 = vpop.f32.mrf.mxu0
      %4150 = vmatprep.mubr.bf16.mxu0 0
      %4151 = vmatmul.mubr.bf16.gmra.mxu0 %v4022
      %v4152 = vpop.f32.mrf.mxu0
      %v4153 = vadd.f32 %v4044, %v4152
      %v4154 = vpop.f32.mrf.mxu0
      %v4155 = vpop.f32.mrf.mxu0
      %v4156 = vadd.f32 %v4044, %v4155
      %v4157 = vpop.f32.mrf.mxu0
      %4158 = vdwg.mxu0
      %4159 = vst [vmem:[%s575] sm:$0xff] %v4129
      %4160 = vst [vmem:[%s575 + $0x8] sm:$0xff] %v4132
      %4161 = vst [vmem:[%s575 + $0x10] sm:$0xff] %v4137
      %4162 = vst [vmem:[%s575 + $0x18] sm:$0xff] %v4140
      %4163 = vst [vmem:[%s575 + $0x20] sm:$0xff] %v4145
      %4164 = vst [vmem:[%s575 + $0x28] sm:$0xff] %v4148
      %4165 = vst [vmem:[%s575 + $0x30] sm:$0xff] %v4153
      %4166 = vst [vmem:[%s575 + $0x38] sm:$0xff] %v4156
      %p4167 = scmp.lt.s32.totalorder %s29, 1
      %s4168 = scalar_select %p4167, %s29, 1
      %s4169 = smul.addr %s4168, 8
      %s4170 = smul.addr %s4169, 8
      %s4171 = scalar_lea.vmem %s18, %s4170
      // Predicated region
      $region93: #{attention_forward.1} parent=91 // pred_check
        %p4172 = pneg %p430
      $region94: #{attention_forward.1} parent=91 // pred_check_branch
        %4174 = sbr.rel (%p4172) target = $region96
      $region95: #{attention_forward.1} parent=91 // pred_region
        _
      $region96: #{attention_forward.1} parent=91 // pred_fallthru
        _
    $region92: #{attention_forward.1} parent=5 // pred_fallthru
      _
    %p4175 = scmp.le.s32.totalorder 2, %s24
    // Predicated region
    $region97: #{attention_forward.1} parent=5 // pred_check
      %p4176 = pneg %p4175
    $region98: #{attention_forward.1} parent=5 // pred_check_branch
      %4178 = sbr.rel (%p4176) target = $region100
    $region99: #{attention_forward.1} parent=5 // pred_region
      %s4179 = ssub.s32 %s24, 2
      // Predicated region
      $region101: #{attention_forward.1} parent=99 // pred_check
        %p4180 = pneg %p436
      $region102: #{attention_forward.1} parent=99 // pred_check_branch
        %4182 = sbr.rel (%p4180) target = $region104
      $region103: #{attention_forward.1} parent=99 // pred_region
        %p4183 = scmp.lt.s32.totalorder %s30, 1
        %s4184 = scalar_select %p4183, %s30, 1
        %s4185 = smul.addr %s4184, 8
        %s4186 = smul.addr %s4185, 8
        %s4187 = scalar_lea.vmem %s18, %s4186
      $region104: #{attention_forward.1} parent=99 // pred_fallthru
        _
    $region100: #{attention_forward.1} parent=5 // pred_fallthru
      _
  $region6: #{attention_forward.1} parent=0 // loop_footer
    %s28 = sadd.s32 1, %s24
  $region7: #{attention_forward.1} parent=0 // loop_footer_branch
    %23 = sbr.rel target = $region3
  $region8: #{attention_forward.1} parent=0 // loop_exit
    _

</llo_original>
